<compile_context>
chip_gen: v5e
topology: v5e:2x2
jax: 0.10.0
libtpu: 0.0.40
codegen_flags: <defaults>
</compile_context>

<pallas_src>
import numpy as np
import jax
import jax.numpy as jnp
from jax import lax
from jax.experimental import pallas as pl
from jax.experimental.pallas import tpu as pltpu

# ----------------------------- small synthetic config ------------------------
BATCH = 2
IN_CH = 4
H = W = 16
HW = H * W
NUM_CONV = 2
CONV_DIM = 8
NUM_FC = 2              # fc1: flat+27 -> FC_DIM, fc2: FC_DIM -> 3*NUM_BINS
FC_DIM = 32
NUM_BINS = 16
NUM_OUT = 3 * NUM_BINS  # 48
EXTRA_DIM = 27          # Kcs (9) + rotations (9) + Hinfs (9)

ROI_TILE = 8            # ROIs per grid step (>=8 so FC matmuls get M>=8)
LANES = ROI_TILE * HW   # 2048-lane batched conv activation axis
OUT_LANES = 128         # single lane-dense output block per ROI


# ----------------------------- in-kernel helpers ------------------------------
def _conv3x3_batched(x_cf, w_ref, b_ref, masks):
    """3x3 same-conv + bias + ReLU over a whole ROI tile as ONE im2col matmul.

    x_cf:  (Cin, ROI_TILE*HW)  channels-first, lane = roi*HW + y*W + x.
    w_ref: (Cout, 9*Cin)       K index = (dy*3+dx)*Cin + cin.
    b_ref: (Cout, 1) bias.     masks: (9, ROI_TILE*HW) tap-validity (zero padding);
    the masks also kill any roll wrap-around across ROI boundaries.
    Returns (Cout, ROI_TILE*HW).
    """
    taps = []
    for dy in range(3):
        for dx in range(3):
            t = dy * 3 + dx
            # tap (dy,dx) reads input pixel (y+dy-1, x+dx-1): a static lane roll over
            # the full batched lane axis (normalized signed shift) plus a zero mask.
            shift = ((1 - dy) * W + (1 - dx)) % LANES
            src = jnp.roll(x_cf, shift, axis=1) if shift else x_cf
            taps.append(src * masks[t:t + 1, :])
    patches = jnp.concatenate(taps, axis=0)                   # (9*Cin, ROI_TILE*HW)
    out = jnp.dot(w_ref[...], patches, preferred_element_type=jnp.float32)
    return jnp.maximum(out + b_ref[...], 0.0)


def _fused_pose_head_kernel(x_ref, extras_ref, masks_ref,
                            wc1_ref, bc1_ref, wc2_ref, bc2_ref,
                            w1i_ref, w1e_ref, b1_ref, w2s_ref, b2s_ref,
                            csb_ref, out_ref):
    masks = masks_ref[...]                                    # (9, LANES)

    # ---- conv stack: one im2col matmul per conv for the whole ROI tile ----
    a1 = _conv3x3_batched(x_ref[0], wc1_ref, bc1_ref, masks)  # (CONV_DIM, LANES)
    a2 = _conv3x3_batched(a1, wc2_ref, bc2_ref, masks)        # (CONV_DIM, LANES)

    # ---- flatten each ROI to torch.flatten(NCHW) order: (ROI_TILE, CONV_DIM*HW) ----
    feat = jnp.concatenate(
        [a2[:, b * HW:(b + 1) * HW].reshape(1, CONV_DIM * HW)
         for b in range(ROI_TILE)], axis=0)

    # ---- fc1: ONE K=2048 matmul (lane-dense (FC_DIM, 2048) weight, contracted on the
    #      last dims) + the 27-wide extras matmul; bias + ReLU. ----
    h_img = lax.dot_general(feat, w1i_ref[...],
                            dimension_numbers=(((1,), (1,)), ((), ())),
                            preferred_element_type=jnp.float32)       # (ROI_TILE, FC_DIM)
    h_ext = jnp.dot(extras_ref[0], w1e_ref[...],
                    preferred_element_type=jnp.float32)               # (ROI_TILE, FC_DIM)
    h1 = jnp.maximum(h_img + h_ext + b1_ref[...], 0.0)

    # ---- fc2 (+ ReLU after the last fc, per the reference module).  The 1/exp(log_T)
    #      temperature is pre-folded into w2s/b2s (valid since it is > 0). ----
    z = jnp.maximum(
        jnp.dot(h1, w2s_ref[...], preferred_element_type=jnp.float32) + b2s_ref[...],
        0.0)                                                          # (ROI_TILE, 48)

    # ---- tempered log-softmax per rpy group (static 3-group loop, batched rows) ----
    logp_parts = []
    for g in range(3):
        zg = z[:, g * NUM_BINS:(g + 1) * NUM_BINS]                    # (ROI_TILE, 16)
        m = jnp.max(zg, axis=-1, keepdims=True)
        lse = m + jnp.log(jnp.sum(jnp.exp(zg - m), axis=-1, keepdims=True))
        logp_parts.append(zg - lse)
    logp = jnp.concatenate(logp_parts, axis=1)                        # (ROI_TILE, 48)

    # ---- circular-mean real/imag via block-diagonal [cos | sin] matmul ----
    ri = jnp.dot(jnp.exp(logp), csb_ref[...],
                 preferred_element_type=jnp.float32)                  # (ROI_TILE, 6)

    # ---- ONE lane-dense 128-wide store: [logp(48) | real(3) imag(3) | zero pad] ----
    pad = jnp.zeros((ROI_TILE, OUT_LANES - NUM_OUT - 6), jnp.float32)
    out_ref[0] = jnp.concatenate([logp, ri, pad], axis=1)


# ----------------------------- pallas_call wrapper ----------------------------
def _pose_head_call(x_cf, extras3, prep):
    n_tiles = x_cf.shape[0]
    return pl.pallas_call(
        _fused_pose_head_kernel,
        out_shape=jax.ShapeDtypeStruct((n_tiles, ROI_TILE, OUT_LANES), jnp.float32),
        grid_spec=pltpu.PrefetchScalarGridSpec(
            num_scalar_prefetch=0,
            grid=(n_tiles,),                                          # one ROI tile per step
            in_specs=[
                pl.BlockSpec((1, IN_CH, LANES), lambda t: (t, 0, 0)),        # x (one ROI tile)
                pl.BlockSpec((1, ROI_TILE, EXTRA_DIM), lambda t: (t, 0, 0)), # extras
                pl.BlockSpec((9, LANES), lambda t: (0, 0)),                  # conv tap masks
                pl.BlockSpec((CONV_DIM, 9 * IN_CH), lambda t: (0, 0)),       # conv1 W
                pl.BlockSpec((CONV_DIM, 1), lambda t: (0, 0)),               # conv1 b
                pl.BlockSpec((CONV_DIM, 9 * CONV_DIM), lambda t: (0, 0)),    # conv2 W
                pl.BlockSpec((CONV_DIM, 1), lambda t: (0, 0)),               # conv2 b
                pl.BlockSpec((FC_DIM, CONV_DIM * HW), lambda t: (0, 0)),     # fc1 W (image, lane-dense)
                pl.BlockSpec((EXTRA_DIM, FC_DIM), lambda t: (0, 0)),         # fc1 W (extras)
                pl.BlockSpec((1, FC_DIM), lambda t: (0, 0)),                 # fc1 b
                pl.BlockSpec((FC_DIM, NUM_OUT), lambda t: (0, 0)),           # fc2 W (tempered)
                pl.BlockSpec((1, NUM_OUT), lambda t: (0, 0)),                # fc2 b (tempered)
                pl.BlockSpec((NUM_OUT, 6), lambda t: (0, 0)),                # block-diag [cos|sin]
            ],
            out_specs=pl.BlockSpec((1, ROI_TILE, OUT_LANES), lambda t: (t, 0, 0)),
        ),
        compiler_params=pltpu.CompilerParams(
            dimension_semantics=("parallel",),    # independent ROI tiles
        ),
    )(x_cf, extras3, prep["masks"], prep["wc1"], prep["bc1"], prep["wc2"],
      prep["bc2"], prep["w1i"], prep["w1e"], prep["b1"], prep["w2s"],
      prep["b2s"], prep["csb"])


# ----------------------------- parameters (deterministic) --------------------
def init_params(key):
    keys = jax.random.split(key, NUM_CONV + 2)
    convs = []
    cin = IN_CH
    for k in range(NUM_CONV):
        fan_in = 3 * 3 * cin
        w = jax.random.normal(keys[k], (3, 3, cin, CONV_DIM), jnp.float32) * np.sqrt(2.0 / fan_in)
        b = jnp.zeros((CONV_DIM,), jnp.float32)               # c2_msra_fill: bias = 0
        convs.append((w, b))
        cin = CONV_DIM
    flat_dim = CONV_DIM * H * W + EXTRA_DIM                   # +27 for Kcs/rotations/Hinfs
    w1 = jax.random.normal(keys[NUM_CONV], (flat_dim, FC_DIM), jnp.float32) * np.sqrt(1.0 / flat_dim)
    b1 = jnp.zeros((FC_DIM,), jnp.float32)                    # c2_xavier_fill: bias = 0
    w2 = jax.random.normal(keys[NUM_CONV + 1], (FC_DIM, NUM_OUT), jnp.float32) * np.sqrt(1.0 / FC_DIM)
    b2 = jnp.zeros((NUM_OUT,), jnp.float32)
    log_T = jnp.log(jnp.array([0.5], jnp.float32))
    corners = jnp.stack(
        [jnp.linspace(-np.pi, np.pi, NUM_BINS).astype(jnp.float32)] * 3)  # (3, NB), endpoints incl.
    return dict(convs=convs, w1=w1, b1=b1, w2=w2, b2=b2, log_T=log_T, corners=corners)


def prep_params(params):
    """One-time repack of module parameters into the kernel's layouts."""
    (w_c1, b_c1), (w_c2, b_c2) = params["convs"]

    def conv_mat(w):  # (3,3,Cin,Cout) -> (Cout, 9*Cin), K index = (dy*3+dx)*Cin + c
        cout, cin = w.shape[3], w.shape[2]
        return jnp.transpose(w, (3, 0, 1, 2)).reshape(cout, 9 * cin)

    inv_t = jnp.exp(-params["log_T"])                         # 1/exp(log_T) > 0
    n_img = CONV_DIM * H * W
    corners = np.asarray(params["corners"])

    # 3x3/pad-1 tap-validity masks on the flattened (y*W + x) lane axis, tiled per ROI.
    ys, xs = np.divmod(np.arange(HW), W)
    masks = np.zeros((9, HW), np.float32)
    for dy in range(3):
        for dx in range(3):
            yi, xi = ys + dy - 1, xs + dx - 1
            masks[dy * 3 + dx] = ((yi >= 0) & (yi < H) & (xi >= 0) & (xi < W)).astype(np.float32)
    masks_tiled = np.tile(masks, (1, ROI_TILE))               # (9, ROI_TILE*HW)

    # block-diagonal [cos | sin] bin matrix (48, 6) for the circular means.
    csb = np.zeros((NUM_OUT, 6), np.float32)
    for g in range(3):
        sl = slice(g * NUM_BINS, (g + 1) * NUM_BINS)
        csb[sl, g] = np.cos(corners[g])
        csb[sl, 3 + g] = np.sin(corners[g])

    return dict(
        wc1=conv_mat(w_c1), bc1=b_c1.reshape(CONV_DIM, 1),
        wc2=conv_mat(w_c2), bc2=b_c2.reshape(CONV_DIM, 1),
        w1i=jnp.transpose(params["w1"][:n_img]),              # (FC_DIM, 2048), lane-dense
        w1e=params["w1"][n_img:],                             # (27, FC_DIM)
        b1=params["b1"].reshape(1, FC_DIM),
        w2s=params["w2"] * inv_t,                             # fold temperature into fc2
        b2s=(params["b2"] * inv_t).reshape(1, NUM_OUT),
        masks=jnp.asarray(masks_tiled), csb=jnp.asarray(csb),
    )


# ----------------------------- full forward -----------------------------------
def _forward(prep, x_nchw, Kcs, rotations, Hinfs):
    B = x_nchw.shape[0]
    n_tiles = (B + ROI_TILE - 1) // ROI_TILE
    bp = n_tiles * ROI_TILE

    x = x_nchw.astype(jnp.float32).reshape(B, IN_CH, HW)
    x = jnp.pad(x, ((0, bp - B), (0, 0), (0, 0)))
    # (n_tiles, TB, Cin, HW) -> (n_tiles, Cin, TB*HW): lane axis = roi*HW + y*W + x.
    x_cf = (x.reshape(n_tiles, ROI_TILE, IN_CH, HW)
             .transpose(0, 2, 1, 3)
             .reshape(n_tiles, IN_CH, LANES))

    extras = jnp.concatenate(
        [Kcs.reshape(B, -1), rotations.reshape(B, -1), Hinfs.reshape(B, -1)],
        axis=-1).astype(jnp.float32)
    extras = jnp.pad(extras, ((0, bp - B), (0, 0))).reshape(n_tiles, ROI_TILE, EXTRA_DIM)

    out = _pose_head_call(x_cf, extras, prep).reshape(bp, OUT_LANES)[:B]
    log_P = out[:, :NUM_OUT].reshape(B, 3, NUM_BINS)
    # TODO(synk): atan2 over the tiny (B, 3) circular-mean sums stays in JAX glue
    # (no verified Mosaic atan2 lowering); the kernel emits real/imag sums.
    rpy_estimate = jnp.arctan2(out[:, NUM_OUT + 3:NUM_OUT + 6],
                               out[:, NUM_OUT:NUM_OUT + 3])
    return rpy_estimate, log_P


forward = jax.jit(_forward)


# ----------------------------- pure-JAX reference (for self-check) ------------
def reference_forward(params, x, Kcs, rotations, Hinfs):
    B = x.shape[0]
    a = x.astype(jnp.float32)
    for (w, b) in params["convs"]:
        a = lax.conv_general_dilated(
            a, w, window_strides=(1, 1), padding=((1, 1), (1, 1)),
            dimension_numbers=("NCHW", "HWIO", "NCHW"),
            precision=lax.Precision.HIGHEST)
        a = jax.nn.relu(a + b.reshape(1, -1, 1, 1))
    feat = jnp.concatenate([a.reshape(B, -1), Kcs.reshape(B, -1),
                            rotations.reshape(B, -1), Hinfs.reshape(B, -1)], axis=-1)
    h = jax.nn.relu(jnp.dot(feat, params["w1"], precision=lax.Precision.HIGHEST) + params["b1"])
    h = jax.nn.relu(jnp.dot(h, params["w2"], precision=lax.Precision.HIGHEST) + params["b2"])
    z = h.reshape(B, 3, NUM_BINS) / jnp.exp(params["log_T"])
    log_P = jax.nn.log_softmax(z, axis=-1)
    P = jnp.exp(log_P)
    real = jnp.sum(P * jnp.cos(params["corners"]), axis=2)
    imag = jnp.sum(P * jnp.sin(params["corners"]), axis=2)
    return jnp.arctan2(imag, real), log_P


if __name__ == "__main__":
    key = jax.random.PRNGKey(0)
    kp, kx, kk, kr, kh = jax.random.split(key, 5)
    params = init_params(kp)
    prep = prep_params(params)

    x = jax.random.normal(kx, (BATCH, IN_CH, H, W), jnp.float32)
    Kcs = jax.random.normal(kk, (BATCH, 3, 3), jnp.float32)
    rotations = jax.random.normal(kr, (BATCH, 3, 3), jnp.float32)
    Hinfs = jax.random.normal(kh, (BATCH, 3, 3), jnp.float32)

    rpy_estimate, log_P = forward(prep, x, Kcs, rotations, Hinfs)
    jax.block_until_ready((rpy_estimate, log_P))

    assert rpy_estimate.shape == (BATCH, 3)
    assert log_P.shape == (BATCH, 3, NUM_BINS)
    # log-softmax rows must exponentiate-sum to 1
    assert np.allclose(np.exp(np.asarray(log_P)).sum(-1), 1.0, atol=1e-4)

    # cross-check the fused kernel against a pure-JAX reference
    rpy_ref, log_P_ref = reference_forward(params, x, Kcs, rotations, Hinfs)
    assert np.allclose(np.asarray(log_P), np.asarray(log_P_ref), atol=1e-3, rtol=1e-3)
    ang_err = np.abs((np.asarray(rpy_estimate) - np.asarray(rpy_ref) + np.pi)
                     % (2.0 * np.pi) - np.pi)
    assert np.all(ang_err < 1e-2)

    print("KERNEL_OK")
</pallas_src>

<mosaic_0001>
module attributes {stable_mosaic.version = 11 : i64} {
  func.func @_fused_pose_head_kernel(%arg0: i32, %arg1: memref<1x4x2048xf32, #tpu.memory_space<vmem>>, %arg2: memref<1x8x27xf32, #tpu.memory_space<vmem>>, %arg3: memref<9x2048xf32, #tpu.memory_space<vmem>>, %arg4: memref<8x36xf32, #tpu.memory_space<vmem>>, %arg5: memref<8x1xf32, #tpu.memory_space<vmem>>, %arg6: memref<8x72xf32, #tpu.memory_space<vmem>>, %arg7: memref<8x1xf32, #tpu.memory_space<vmem>>, %arg8: memref<32x2048xf32, #tpu.memory_space<vmem>>, %arg9: memref<27x32xf32, #tpu.memory_space<vmem>>, %arg10: memref<1x32xf32, #tpu.memory_space<vmem>>, %arg11: memref<32x48xf32, #tpu.memory_space<vmem>>, %arg12: memref<1x48xf32, #tpu.memory_space<vmem>>, %arg13: memref<48x6xf32, #tpu.memory_space<vmem>>, %arg14: memref<1x8x128xf32, #tpu.memory_space<vmem>>) attributes {dimension_semantics = [#tpu.dimension_semantics<parallel>], iteration_bounds = array<i64: 1>, scalar_prefetch = 0 : i64, scratch_operands = 0 : i64, tpu.core_type = #tpu.core_type<tc>, window_params = [{transform_indices = @transform_0, window_bounds = array<i64: 1, 4, 2048>}, {transform_indices = @transform_1, window_bounds = array<i64: 1, 8, 27>}, {pipeline_mode = #tpu.pipeline_mode<synchronous>, transform_indices = @transform_2, window_bounds = array<i64: 9, 2048>}, {pipeline_mode = #tpu.pipeline_mode<synchronous>, transform_indices = @transform_3, window_bounds = array<i64: 8, 36>}, {pipeline_mode = #tpu.pipeline_mode<synchronous>, transform_indices = @transform_4, window_bounds = array<i64: 8, 1>}, {pipeline_mode = #tpu.pipeline_mode<synchronous>, transform_indices = @transform_5, window_bounds = array<i64: 8, 72>}, {pipeline_mode = #tpu.pipeline_mode<synchronous>, transform_indices = @transform_6, window_bounds = array<i64: 8, 1>}, {pipeline_mode = #tpu.pipeline_mode<synchronous>, transform_indices = @transform_7, window_bounds = array<i64: 32, 2048>}, {pipeline_mode = #tpu.pipeline_mode<synchronous>, transform_indices = @transform_8, window_bounds = array<i64: 27, 32>}, {pipeline_mode = #tpu.pipeline_mode<synchronous>, transform_indices = @transform_9, window_bounds = array<i64: 1, 32>}, {pipeline_mode = #tpu.pipeline_mode<synchronous>, transform_indices = @transform_10, window_bounds = array<i64: 32, 48>}, {pipeline_mode = #tpu.pipeline_mode<synchronous>, transform_indices = @transform_11, window_bounds = array<i64: 1, 48>}, {pipeline_mode = #tpu.pipeline_mode<synchronous>, transform_indices = @transform_12, window_bounds = array<i64: 48, 6>}, {transform_indices = @transform_13, window_bounds = array<i64: 1, 8, 128>}]} {
    %c0 = arith.constant 0 : index
    %c0_0 = arith.constant 0 : index
    %0 = vector.load %arg3[%c0, %c0_0] : memref<9x2048xf32, #tpu.memory_space<vmem>>, vector<9x2048xf32>
    %c0_1 = arith.constant 0 : index
    %c0_2 = arith.constant 0 : index
    %c0_3 = arith.constant 0 : index
    %1 = vector.load %arg1[%c0_1, %c0_2, %c0_3] : memref<1x4x2048xf32, #tpu.memory_space<vmem>>, vector<1x4x2048xf32>
    %2 = vector.shape_cast %1 : vector<1x4x2048xf32> to vector<4x2048xf32>
    %3 = vector.extract_strided_slice %2 {offsets = [0, 2031], sizes = [4, 17], strides = [1, 1]} : vector<4x2048xf32> to vector<4x17xf32>
    %4 = vector.extract_strided_slice %2 {offsets = [0, 0], sizes = [4, 2031], strides = [1, 1]} : vector<4x2048xf32> to vector<4x2031xf32>
    %5 = tpu.concatenate %3, %4 in 1 : vector<4x17xf32>, vector<4x2031xf32> -> vector<4x2048xf32>
    %6 = vector.extract_strided_slice %0 {offsets = [0, 0], sizes = [1, 2048], strides = [1, 1]} : vector<9x2048xf32> to vector<1x2048xf32>
    %7 = vector.broadcast %6 : vector<1x2048xf32> to vector<4x2048xf32>
    %8 = arith.mulf %5, %7 : vector<4x2048xf32>
    %9 = vector.extract_strided_slice %2 {offsets = [0, 2032], sizes = [4, 16], strides = [1, 1]} : vector<4x2048xf32> to vector<4x16xf32>
    %10 = vector.extract_strided_slice %2 {offsets = [0, 0], sizes = [4, 2032], strides = [1, 1]} : vector<4x2048xf32> to vector<4x2032xf32>
    %11 = tpu.concatenate %9, %10 in 1 : vector<4x16xf32>, vector<4x2032xf32> -> vector<4x2048xf32>
    %12 = vector.extract_strided_slice %0 {offsets = [1, 0], sizes = [1, 2048], strides = [1, 1]} : vector<9x2048xf32> to vector<1x2048xf32>
    %13 = vector.broadcast %12 : vector<1x2048xf32> to vector<4x2048xf32>
    %14 = arith.mulf %11, %13 : vector<4x2048xf32>
    %15 = vector.extract_strided_slice %2 {offsets = [0, 2033], sizes = [4, 15], strides = [1, 1]} : vector<4x2048xf32> to vector<4x15xf32>
    %16 = vector.extract_strided_slice %2 {offsets = [0, 0], sizes = [4, 2033], strides = [1, 1]} : vector<4x2048xf32> to vector<4x2033xf32>
    %17 = tpu.concatenate %15, %16 in 1 : vector<4x15xf32>, vector<4x2033xf32> -> vector<4x2048xf32>
    %18 = vector.extract_strided_slice %0 {offsets = [2, 0], sizes = [1, 2048], strides = [1, 1]} : vector<9x2048xf32> to vector<1x2048xf32>
    %19 = vector.broadcast %18 : vector<1x2048xf32> to vector<4x2048xf32>
    %20 = arith.mulf %17, %19 : vector<4x2048xf32>
    %21 = vector.extract_strided_slice %2 {offsets = [0, 2047], sizes = [4, 1], strides = [1, 1]} : vector<4x2048xf32> to vector<4x1xf32>
    %22 = vector.extract_strided_slice %2 {offsets = [0, 0], sizes = [4, 2047], strides = [1, 1]} : vector<4x2048xf32> to vector<4x2047xf32>
    %23 = tpu.concatenate %21, %22 in 1 : vector<4x1xf32>, vector<4x2047xf32> -> vector<4x2048xf32>
    %24 = vector.extract_strided_slice %0 {offsets = [3, 0], sizes = [1, 2048], strides = [1, 1]} : vector<9x2048xf32> to vector<1x2048xf32>
    %25 = vector.broadcast %24 : vector<1x2048xf32> to vector<4x2048xf32>
    %26 = arith.mulf %23, %25 : vector<4x2048xf32>
    %27 = vector.extract_strided_slice %0 {offsets = [4, 0], sizes = [1, 2048], strides = [1, 1]} : vector<9x2048xf32> to vector<1x2048xf32>
    %28 = vector.broadcast %27 : vector<1x2048xf32> to vector<4x2048xf32>
    %29 = arith.mulf %2, %28 : vector<4x2048xf32>
    %30 = vector.extract_strided_slice %2 {offsets = [0, 1], sizes = [4, 2047], strides = [1, 1]} : vector<4x2048xf32> to vector<4x2047xf32>
    %31 = vector.extract_strided_slice %2 {offsets = [0, 0], sizes = [4, 1], strides = [1, 1]} : vector<4x2048xf32> to vector<4x1xf32>
    %32 = tpu.concatenate %30, %31 in 1 : vector<4x2047xf32>, vector<4x1xf32> -> vector<4x2048xf32>
    %33 = vector.extract_strided_slice %0 {offsets = [5, 0], sizes = [1, 2048], strides = [1, 1]} : vector<9x2048xf32> to vector<1x2048xf32>
    %34 = vector.broadcast %33 : vector<1x2048xf32> to vector<4x2048xf32>
    %35 = arith.mulf %32, %34 : vector<4x2048xf32>
    %36 = vector.extract_strided_slice %2 {offsets = [0, 15], sizes = [4, 2033], strides = [1, 1]} : vector<4x2048xf32> to vector<4x2033xf32>
    %37 = vector.extract_strided_slice %2 {offsets = [0, 0], sizes = [4, 15], strides = [1, 1]} : vector<4x2048xf32> to vector<4x15xf32>
    %38 = tpu.concatenate %36, %37 in 1 : vector<4x2033xf32>, vector<4x15xf32> -> vector<4x2048xf32>
    %39 = vector.extract_strided_slice %0 {offsets = [6, 0], sizes = [1, 2048], strides = [1, 1]} : vector<9x2048xf32> to vector<1x2048xf32>
    %40 = vector.broadcast %39 : vector<1x2048xf32> to vector<4x2048xf32>
    %41 = arith.mulf %38, %40 : vector<4x2048xf32>
    %42 = vector.extract_strided_slice %2 {offsets = [0, 16], sizes = [4, 2032], strides = [1, 1]} : vector<4x2048xf32> to vector<4x2032xf32>
    %43 = vector.extract_strided_slice %2 {offsets = [0, 0], sizes = [4, 16], strides = [1, 1]} : vector<4x2048xf32> to vector<4x16xf32>
    %44 = tpu.concatenate %42, %43 in 1 : vector<4x2032xf32>, vector<4x16xf32> -> vector<4x2048xf32>
    %45 = vector.extract_strided_slice %0 {offsets = [7, 0], sizes = [1, 2048], strides = [1, 1]} : vector<9x2048xf32> to vector<1x2048xf32>
    %46 = vector.broadcast %45 : vector<1x2048xf32> to vector<4x2048xf32>
    %47 = arith.mulf %44, %46 : vector<4x2048xf32>
    %48 = vector.extract_strided_slice %2 {offsets = [0, 17], sizes = [4, 2031], strides = [1, 1]} : vector<4x2048xf32> to vector<4x2031xf32>
    %49 = vector.extract_strided_slice %2 {offsets = [0, 0], sizes = [4, 17], strides = [1, 1]} : vector<4x2048xf32> to vector<4x17xf32>
    %50 = tpu.concatenate %48, %49 in 1 : vector<4x2031xf32>, vector<4x17xf32> -> vector<4x2048xf32>
    %51 = vector.extract_strided_slice %0 {offsets = [8, 0], sizes = [1, 2048], strides = [1, 1]} : vector<9x2048xf32> to vector<1x2048xf32>
    %52 = vector.broadcast %51 : vector<1x2048xf32> to vector<4x2048xf32>
    %53 = arith.mulf %50, %52 : vector<4x2048xf32>
    %54 = tpu.concatenate %8, %14, %20, %26, %29, %35, %41, %47, %53 in 0 : vector<4x2048xf32>, vector<4x2048xf32>, vector<4x2048xf32>, vector<4x2048xf32>, vector<4x2048xf32>, vector<4x2048xf32>, vector<4x2048xf32>, vector<4x2048xf32>, vector<4x2048xf32> -> vector<36x2048xf32>
    %c0_4 = arith.constant 0 : index
    %c0_5 = arith.constant 0 : index
    %55 = vector.load %arg4[%c0_4, %c0_5] : memref<8x36xf32, #tpu.memory_space<vmem>>, vector<8x36xf32>
    %cst = arith.constant dense<0.000000e+00> : vector<8x2048xf32>
    %56 = tpu.matmul %55, %54, %cst {dimension_numbers = #tpu.dot_dimension_numbers<[1], [0], [0], [1], [0, 0, 1, 1], [], []>} : vector<8x36xf32>, vector<36x2048xf32>, vector<8x2048xf32> -> vector<8x2048xf32>
    %c0_6 = arith.constant 0 : index
    %c0_7 = arith.constant 0 : index
    %57 = vector.load %arg5[%c0_6, %c0_7] : memref<8x1xf32, #tpu.memory_space<vmem>>, vector<8x1xf32>
    %58 = vector.broadcast %57 : vector<8x1xf32> to vector<8x2048xf32>
    %59 = arith.addf %56, %58 : vector<8x2048xf32>
    %cst_8 = arith.constant 0.000000e+00 : f32
    %60 = vector.broadcast %cst_8 : f32 to vector<8x2048xf32>
    %61 = arith.maximumf %59, %60 : vector<8x2048xf32>
    %62 = vector.extract_strided_slice %61 {offsets = [0, 2031], sizes = [8, 17], strides = [1, 1]} : vector<8x2048xf32> to vector<8x17xf32>
    %63 = vector.extract_strided_slice %61 {offsets = [0, 0], sizes = [8, 2031], strides = [1, 1]} : vector<8x2048xf32> to vector<8x2031xf32>
    %64 = tpu.concatenate %62, %63 in 1 : vector<8x17xf32>, vector<8x2031xf32> -> vector<8x2048xf32>
    %65 = vector.extract_strided_slice %0 {offsets = [0, 0], sizes = [1, 2048], strides = [1, 1]} : vector<9x2048xf32> to vector<1x2048xf32>
    %66 = vector.broadcast %65 : vector<1x2048xf32> to vector<8x2048xf32>
    %67 = arith.mulf %64, %66 : vector<8x2048xf32>
    %68 = vector.extract_strided_slice %61 {offsets = [0, 2032], sizes = [8, 16], strides = [1, 1]} : vector<8x2048xf32> to vector<8x16xf32>
    %69 = vector.extract_strided_slice %61 {offsets = [0, 0], sizes = [8, 2032], strides = [1, 1]} : vector<8x2048xf32> to vector<8x2032xf32>
    %70 = tpu.concatenate %68, %69 in 1 : vector<8x16xf32>, vector<8x2032xf32> -> vector<8x2048xf32>
    %71 = vector.extract_strided_slice %0 {offsets = [1, 0], sizes = [1, 2048], strides = [1, 1]} : vector<9x2048xf32> to vector<1x2048xf32>
    %72 = vector.broadcast %71 : vector<1x2048xf32> to vector<8x2048xf32>
    %73 = arith.mulf %70, %72 : vector<8x2048xf32>
    %74 = vector.extract_strided_slice %61 {offsets = [0, 2033], sizes = [8, 15], strides = [1, 1]} : vector<8x2048xf32> to vector<8x15xf32>
    %75 = vector.extract_strided_slice %61 {offsets = [0, 0], sizes = [8, 2033], strides = [1, 1]} : vector<8x2048xf32> to vector<8x2033xf32>
    %76 = tpu.concatenate %74, %75 in 1 : vector<8x15xf32>, vector<8x2033xf32> -> vector<8x2048xf32>
    %77 = vector.extract_strided_slice %0 {offsets = [2, 0], sizes = [1, 2048], strides = [1, 1]} : vector<9x2048xf32> to vector<1x2048xf32>
    %78 = vector.broadcast %77 : vector<1x2048xf32> to vector<8x2048xf32>
    %79 = arith.mulf %76, %78 : vector<8x2048xf32>
    %80 = vector.extract_strided_slice %61 {offsets = [0, 2047], sizes = [8, 1], strides = [1, 1]} : vector<8x2048xf32> to vector<8x1xf32>
    %81 = vector.extract_strided_slice %61 {offsets = [0, 0], sizes = [8, 2047], strides = [1, 1]} : vector<8x2048xf32> to vector<8x2047xf32>
    %82 = tpu.concatenate %80, %81 in 1 : vector<8x1xf32>, vector<8x2047xf32> -> vector<8x2048xf32>
    %83 = vector.extract_strided_slice %0 {offsets = [3, 0], sizes = [1, 2048], strides = [1, 1]} : vector<9x2048xf32> to vector<1x2048xf32>
    %84 = vector.broadcast %83 : vector<1x2048xf32> to vector<8x2048xf32>
    %85 = arith.mulf %82, %84 : vector<8x2048xf32>
    %86 = vector.extract_strided_slice %0 {offsets = [4, 0], sizes = [1, 2048], strides = [1, 1]} : vector<9x2048xf32> to vector<1x2048xf32>
    %87 = vector.broadcast %86 : vector<1x2048xf32> to vector<8x2048xf32>
    %88 = arith.mulf %61, %87 : vector<8x2048xf32>
    %89 = vector.extract_strided_slice %61 {offsets = [0, 1], sizes = [8, 2047], strides = [1, 1]} : vector<8x2048xf32> to vector<8x2047xf32>
    %90 = vector.extract_strided_slice %61 {offsets = [0, 0], sizes = [8, 1], strides = [1, 1]} : vector<8x2048xf32> to vector<8x1xf32>
    %91 = tpu.concatenate %89, %90 in 1 : vector<8x2047xf32>, vector<8x1xf32> -> vector<8x2048xf32>
    %92 = vector.extract_strided_slice %0 {offsets = [5, 0], sizes = [1, 2048], strides = [1, 1]} : vector<9x2048xf32> to vector<1x2048xf32>
    %93 = vector.broadcast %92 : vector<1x2048xf32> to vector<8x2048xf32>
    %94 = arith.mulf %91, %93 : vector<8x2048xf32>
    %95 = vector.extract_strided_slice %61 {offsets = [0, 15], sizes = [8, 2033], strides = [1, 1]} : vector<8x2048xf32> to vector<8x2033xf32>
    %96 = vector.extract_strided_slice %61 {offsets = [0, 0], sizes = [8, 15], strides = [1, 1]} : vector<8x2048xf32> to vector<8x15xf32>
    %97 = tpu.concatenate %95, %96 in 1 : vector<8x2033xf32>, vector<8x15xf32> -> vector<8x2048xf32>
    %98 = vector.extract_strided_slice %0 {offsets = [6, 0], sizes = [1, 2048], strides = [1, 1]} : vector<9x2048xf32> to vector<1x2048xf32>
    %99 = vector.broadcast %98 : vector<1x2048xf32> to vector<8x2048xf32>
    %100 = arith.mulf %97, %99 : vector<8x2048xf32>
    %101 = vector.extract_strided_slice %61 {offsets = [0, 16], sizes = [8, 2032], strides = [1, 1]} : vector<8x2048xf32> to vector<8x2032xf32>
    %102 = vector.extract_strided_slice %61 {offsets = [0, 0], sizes = [8, 16], strides = [1, 1]} : vector<8x2048xf32> to vector<8x16xf32>
    %103 = tpu.concatenate %101, %102 in 1 : vector<8x2032xf32>, vector<8x16xf32> -> vector<8x2048xf32>
    %104 = vector.extract_strided_slice %0 {offsets = [7, 0], sizes = [1, 2048], strides = [1, 1]} : vector<9x2048xf32> to vector<1x2048xf32>
    %105 = vector.broadcast %104 : vector<1x2048xf32> to vector<8x2048xf32>
    %106 = arith.mulf %103, %105 : vector<8x2048xf32>
    %107 = vector.extract_strided_slice %61 {offsets = [0, 17], sizes = [8, 2031], strides = [1, 1]} : vector<8x2048xf32> to vector<8x2031xf32>
    %108 = vector.extract_strided_slice %61 {offsets = [0, 0], sizes = [8, 17], strides = [1, 1]} : vector<8x2048xf32> to vector<8x17xf32>
    %109 = tpu.concatenate %107, %108 in 1 : vector<8x2031xf32>, vector<8x17xf32> -> vector<8x2048xf32>
    %110 = vector.extract_strided_slice %0 {offsets = [8, 0], sizes = [1, 2048], strides = [1, 1]} : vector<9x2048xf32> to vector<1x2048xf32>
    %111 = vector.broadcast %110 : vector<1x2048xf32> to vector<8x2048xf32>
    %112 = arith.mulf %109, %111 : vector<8x2048xf32>
    %113 = tpu.concatenate %67, %73, %79, %85, %88, %94, %100, %106, %112 in 0 : vector<8x2048xf32>, vector<8x2048xf32>, vector<8x2048xf32>, vector<8x2048xf32>, vector<8x2048xf32>, vector<8x2048xf32>, vector<8x2048xf32>, vector<8x2048xf32>, vector<8x2048xf32> -> vector<72x2048xf32>
    %c0_9 = arith.constant 0 : index
    %c0_10 = arith.constant 0 : index
    %114 = vector.load %arg6[%c0_9, %c0_10] : memref<8x72xf32, #tpu.memory_space<vmem>>, vector<8x72xf32>
    %cst_11 = arith.constant dense<0.000000e+00> : vector<8x2048xf32>
    %115 = tpu.matmul %114, %113, %cst_11 {dimension_numbers = #tpu.dot_dimension_numbers<[1], [0], [0], [1], [0, 0, 1, 1], [], []>} : vector<8x72xf32>, vector<72x2048xf32>, vector<8x2048xf32> -> vector<8x2048xf32>
    %c0_12 = arith.constant 0 : index
    %c0_13 = arith.constant 0 : index
    %116 = vector.load %arg7[%c0_12, %c0_13] : memref<8x1xf32, #tpu.memory_space<vmem>>, vector<8x1xf32>
    %117 = vector.broadcast %116 : vector<8x1xf32> to vector<8x2048xf32>
    %118 = arith.addf %115, %117 : vector<8x2048xf32>
    %cst_14 = arith.constant 0.000000e+00 : f32
    %119 = vector.broadcast %cst_14 : f32 to vector<8x2048xf32>
    %120 = arith.maximumf %118, %119 : vector<8x2048xf32>
    %121 = vector.extract_strided_slice %120 {offsets = [0, 0], sizes = [8, 256], strides = [1, 1]} : vector<8x2048xf32> to vector<8x256xf32>
    %122 = vector.shape_cast %121 : vector<8x256xf32> to vector<1x2048xf32>
    %123 = vector.extract_strided_slice %120 {offsets = [0, 256], sizes = [8, 256], strides = [1, 1]} : vector<8x2048xf32> to vector<8x256xf32>
    %124 = vector.shape_cast %123 : vector<8x256xf32> to vector<1x2048xf32>
    %125 = vector.extract_strided_slice %120 {offsets = [0, 512], sizes = [8, 256], strides = [1, 1]} : vector<8x2048xf32> to vector<8x256xf32>
    %126 = vector.shape_cast %125 : vector<8x256xf32> to vector<1x2048xf32>
    %127 = vector.extract_strided_slice %120 {offsets = [0, 768], sizes = [8, 256], strides = [1, 1]} : vector<8x2048xf32> to vector<8x256xf32>
    %128 = vector.shape_cast %127 : vector<8x256xf32> to vector<1x2048xf32>
    %129 = vector.extract_strided_slice %120 {offsets = [0, 1024], sizes = [8, 256], strides = [1, 1]} : vector<8x2048xf32> to vector<8x256xf32>
    %130 = vector.shape_cast %129 : vector<8x256xf32> to vector<1x2048xf32>
    %131 = vector.extract_strided_slice %120 {offsets = [0, 1280], sizes = [8, 256], strides = [1, 1]} : vector<8x2048xf32> to vector<8x256xf32>
    %132 = vector.shape_cast %131 : vector<8x256xf32> to vector<1x2048xf32>
    %133 = vector.extract_strided_slice %120 {offsets = [0, 1536], sizes = [8, 256], strides = [1, 1]} : vector<8x2048xf32> to vector<8x256xf32>
    %134 = vector.shape_cast %133 : vector<8x256xf32> to vector<1x2048xf32>
    %135 = vector.extract_strided_slice %120 {offsets = [0, 1792], sizes = [8, 256], strides = [1, 1]} : vector<8x2048xf32> to vector<8x256xf32>
    %136 = vector.shape_cast %135 : vector<8x256xf32> to vector<1x2048xf32>
    %137 = tpu.concatenate %122, %124, %126, %128, %130, %132, %134, %136 in 0 : vector<1x2048xf32>, vector<1x2048xf32>, vector<1x2048xf32>, vector<1x2048xf32>, vector<1x2048xf32>, vector<1x2048xf32>, vector<1x2048xf32>, vector<1x2048xf32> -> vector<8x2048xf32>
    %c0_15 = arith.constant 0 : index
    %c0_16 = arith.constant 0 : index
    %138 = vector.load %arg8[%c0_15, %c0_16] : memref<32x2048xf32, #tpu.memory_space<vmem>>, vector<32x2048xf32>
    %cst_17 = arith.constant dense<0.000000e+00> : vector<8x32xf32>
    %139 = tpu.matmul %137, %138, %cst_17 {dimension_numbers = #tpu.dot_dimension_numbers<[1], [1], [0], [0], [0, 0, 1, 0], [], []>} : vector<8x2048xf32>, vector<32x2048xf32>, vector<8x32xf32> -> vector<8x32xf32>
    %c0_18 = arith.constant 0 : index
    %c0_19 = arith.constant 0 : index
    %c0_20 = arith.constant 0 : index
    %140 = vector.load %arg2[%c0_18, %c0_19, %c0_20] : memref<1x8x27xf32, #tpu.memory_space<vmem>>, vector<1x8x27xf32>
    %141 = vector.shape_cast %140 : vector<1x8x27xf32> to vector<8x27xf32>
    %c0_21 = arith.constant 0 : index
    %c0_22 = arith.constant 0 : index
    %142 = vector.load %arg9[%c0_21, %c0_22] : memref<27x32xf32, #tpu.memory_space<vmem>>, vector<27x32xf32>
    %cst_23 = arith.constant dense<0.000000e+00> : vector<8x32xf32>
    %143 = tpu.matmul %141, %142, %cst_23 {dimension_numbers = #tpu.dot_dimension_numbers<[1], [0], [0], [1], [0, 0, 1, 1], [], []>} : vector<8x27xf32>, vector<27x32xf32>, vector<8x32xf32> -> vector<8x32xf32>
    %144 = arith.addf %139, %143 : vector<8x32xf32>
    %c0_24 = arith.constant 0 : index
    %c0_25 = arith.constant 0 : index
    %145 = vector.load %arg10[%c0_24, %c0_25] : memref<1x32xf32, #tpu.memory_space<vmem>>, vector<1x32xf32>
    %146 = vector.broadcast %145 : vector<1x32xf32> to vector<8x32xf32>
    %147 = arith.addf %144, %146 : vector<8x32xf32>
    %cst_26 = arith.constant 0.000000e+00 : f32
    %148 = vector.broadcast %cst_26 : f32 to vector<8x32xf32>
    %149 = arith.maximumf %147, %148 : vector<8x32xf32>
    %c0_27 = arith.constant 0 : index
    %c0_28 = arith.constant 0 : index
    %150 = vector.load %arg11[%c0_27, %c0_28] : memref<32x48xf32, #tpu.memory_space<vmem>>, vector<32x48xf32>
    %cst_29 = arith.constant dense<0.000000e+00> : vector<8x48xf32>
    %151 = tpu.matmul %149, %150, %cst_29 {dimension_numbers = #tpu.dot_dimension_numbers<[1], [0], [0], [1], [0, 0, 1, 1], [], []>} : vector<8x32xf32>, vector<32x48xf32>, vector<8x48xf32> -> vector<8x48xf32>
    %c0_30 = arith.constant 0 : index
    %c0_31 = arith.constant 0 : index
    %152 = vector.load %arg12[%c0_30, %c0_31] : memref<1x48xf32, #tpu.memory_space<vmem>>, vector<1x48xf32>
    %153 = vector.broadcast %152 : vector<1x48xf32> to vector<8x48xf32>
    %154 = arith.addf %151, %153 : vector<8x48xf32>
    %cst_32 = arith.constant 0.000000e+00 : f32
    %155 = vector.broadcast %cst_32 : f32 to vector<8x48xf32>
    %156 = arith.maximumf %154, %155 : vector<8x48xf32>
    %157 = vector.extract_strided_slice %156 {offsets = [0, 0], sizes = [8, 16], strides = [1, 1]} : vector<8x48xf32> to vector<8x16xf32>
    %cst_33 = arith.constant dense<0xFF800000> : vector<8xf32>
    %158 = vector.multi_reduction <maximumf>, %157, %cst_33 [1] : vector<8x16xf32> to vector<8xf32>
    %159 = vector.shape_cast %158 : vector<8xf32> to vector<8x1xf32>
    %160 = vector.broadcast %159 : vector<8x1xf32> to vector<8x16xf32>
    %161 = arith.subf %157, %160 : vector<8x16xf32>
    %162 = math.exp %161 : vector<8x16xf32>
    %cst_34 = arith.constant dense<0.000000e+00> : vector<8xf32>
    %163 = vector.multi_reduction <add>, %162, %cst_34 [1] : vector<8x16xf32> to vector<8xf32>
    %164 = vector.shape_cast %163 : vector<8xf32> to vector<8x1xf32>
    %165 = math.log %164 : vector<8x1xf32>
    %166 = arith.addf %159, %165 : vector<8x1xf32>
    %167 = vector.broadcast %166 : vector<8x1xf32> to vector<8x16xf32>
    %168 = arith.subf %157, %167 : vector<8x16xf32>
    %169 = vector.extract_strided_slice %156 {offsets = [0, 16], sizes = [8, 16], strides = [1, 1]} : vector<8x48xf32> to vector<8x16xf32>
    %cst_35 = arith.constant dense<0xFF800000> : vector<8xf32>
    %170 = vector.multi_reduction <maximumf>, %169, %cst_35 [1] : vector<8x16xf32> to vector<8xf32>
    %171 = vector.shape_cast %170 : vector<8xf32> to vector<8x1xf32>
    %172 = vector.broadcast %171 : vector<8x1xf32> to vector<8x16xf32>
    %173 = arith.subf %169, %172 : vector<8x16xf32>
    %174 = math.exp %173 : vector<8x16xf32>
    %cst_36 = arith.constant dense<0.000000e+00> : vector<8xf32>
    %175 = vector.multi_reduction <add>, %174, %cst_36 [1] : vector<8x16xf32> to vector<8xf32>
    %176 = vector.shape_cast %175 : vector<8xf32> to vector<8x1xf32>
    %177 = math.log %176 : vector<8x1xf32>
    %178 = arith.addf %171, %177 : vector<8x1xf32>
    %179 = vector.broadcast %178 : vector<8x1xf32> to vector<8x16xf32>
    %180 = arith.subf %169, %179 : vector<8x16xf32>
    %181 = vector.extract_strided_slice %156 {offsets = [0, 32], sizes = [8, 16], strides = [1, 1]} : vector<8x48xf32> to vector<8x16xf32>
    %cst_37 = arith.constant dense<0xFF800000> : vector<8xf32>
    %182 = vector.multi_reduction <maximumf>, %181, %cst_37 [1] : vector<8x16xf32> to vector<8xf32>
    %183 = vector.shape_cast %182 : vector<8xf32> to vector<8x1xf32>
    %184 = vector.broadcast %183 : vector<8x1xf32> to vector<8x16xf32>
    %185 = arith.subf %181, %184 : vector<8x16xf32>
    %186 = math.exp %185 : vector<8x16xf32>
    %cst_38 = arith.constant dense<0.000000e+00> : vector<8xf32>
    %187 = vector.multi_reduction <add>, %186, %cst_38 [1] : vector<8x16xf32> to vector<8xf32>
    %188 = vector.shape_cast %187 : vector<8xf32> to vector<8x1xf32>
    %189 = math.log %188 : vector<8x1xf32>
    %190 = arith.addf %183, %189 : vector<8x1xf32>
    %191 = vector.broadcast %190 : vector<8x1xf32> to vector<8x16xf32>
    %192 = arith.subf %181, %191 : vector<8x16xf32>
    %193 = tpu.concatenate %168, %180, %192 in 1 : vector<8x16xf32>, vector<8x16xf32>, vector<8x16xf32> -> vector<8x48xf32>
    %194 = math.exp %193 : vector<8x48xf32>
    %c0_39 = arith.constant 0 : index
    %c0_40 = arith.constant 0 : index
    %195 = vector.load %arg13[%c0_39, %c0_40] : memref<48x6xf32, #tpu.memory_space<vmem>>, vector<48x6xf32>
    %cst_41 = arith.constant dense<0.000000e+00> : vector<8x6xf32>
    %196 = tpu.matmul %194, %195, %cst_41 {dimension_numbers = #tpu.dot_dimension_numbers<[1], [0], [0], [1], [0, 0, 1, 1], [], []>} : vector<8x48xf32>, vector<48x6xf32>, vector<8x6xf32> -> vector<8x6xf32>
    %cst_42 = arith.constant 0.000000e+00 : f32
    %197 = vector.broadcast %cst_42 : f32 to vector<8x74xf32>
    %198 = tpu.concatenate %193, %196, %197 in 1 : vector<8x48xf32>, vector<8x6xf32>, vector<8x74xf32> -> vector<8x128xf32>
    %c0_43 = arith.constant 0 : index
    %c0_44 = arith.constant 0 : index
    %c0_45 = arith.constant 0 : index
    %199 = vector.load %arg14[%c0_43, %c0_44, %c0_45] : memref<1x8x128xf32, #tpu.memory_space<vmem>>, vector<1x8x128xf32>
    %200 = vector.shape_cast %199 : vector<1x8x128xf32> to vector<8x128xf32>
    %201 = vector.shape_cast %198 : vector<8x128xf32> to vector<1x8x128xf32>
    tpu.vector_store %arg14[%c0_43, %c0_44, %c0_45], %201 {strides = array<i32>} : memref<1x8x128xf32, #tpu.memory_space<vmem>>, vector<1x8x128xf32>,
    return
  }
  func.func @transform_0(%arg0: i32) -> (i32, i32, i32) {
    %c0_i32 = arith.constant 0 : i32
    %c0_i32_0 = arith.constant 0 : i32
    %c0_i32_1 = arith.constant 0 : i32
    return %arg0, %c0_i32, %c0_i32_0 : i32, i32, i32
  }
  func.func @transform_1(%arg0: i32) -> (i32, i32, i32) {
    %c0_i32 = arith.constant 0 : i32
    %c0_i32_0 = arith.constant 0 : i32
    %c0_i32_1 = arith.constant 0 : i32
    return %arg0, %c0_i32, %c0_i32_0 : i32, i32, i32
  }
  func.func @transform_2(%arg0: i32) -> (i32, i32) {
    %c0_i32 = arith.constant 0 : i32
    %c0_i32_0 = arith.constant 0 : i32
    %c0_i32_1 = arith.constant 0 : i32
    return %c0_i32, %c0_i32_0 : i32, i32
  }
  func.func @transform_3(%arg0: i32) -> (i32, i32) {
    %c0_i32 = arith.constant 0 : i32
    %c0_i32_0 = arith.constant 0 : i32
    %c0_i32_1 = arith.constant 0 : i32
    return %c0_i32, %c0_i32_0 : i32, i32
  }
  func.func @transform_4(%arg0: i32) -> (i32, i32) {
    %c0_i32 = arith.constant 0 : i32
    %c0_i32_0 = arith.constant 0 : i32
    %c0_i32_1 = arith.constant 0 : i32
    return %c0_i32, %c0_i32_0 : i32, i32
  }
  func.func @transform_5(%arg0: i32) -> (i32, i32) {
    %c0_i32 = arith.constant 0 : i32
    %c0_i32_0 = arith.constant 0 : i32
    %c0_i32_1 = arith.constant 0 : i32
    return %c0_i32, %c0_i32_0 : i32, i32
  }
  func.func @transform_6(%arg0: i32) -> (i32, i32) {
    %c0_i32 = arith.constant 0 : i32
    %c0_i32_0 = arith.constant 0 : i32
    %c0_i32_1 = arith.constant 0 : i32
    return %c0_i32, %c0_i32_0 : i32, i32
  }
  func.func @transform_7(%arg0: i32) -> (i32, i32) {
    %c0_i32 = arith.constant 0 : i32
    %c0_i32_0 = arith.constant 0 : i32
    %c0_i32_1 = arith.constant 0 : i32
    return %c0_i32, %c0_i32_0 : i32, i32
  }
  func.func @transform_8(%arg0: i32) -> (i32, i32) {
    %c0_i32 = arith.constant 0 : i32
    %c0_i32_0 = arith.constant 0 : i32
    %c0_i32_1 = arith.constant 0 : i32
    return %c0_i32, %c0_i32_0 : i32, i32
  }
  func.func @transform_9(%arg0: i32) -> (i32, i32) {
    %c0_i32 = arith.constant 0 : i32
    %c0_i32_0 = arith.constant 0 : i32
    %c0_i32_1 = arith.constant 0 : i32
    return %c0_i32, %c0_i32_0 : i32, i32
  }
  func.func @transform_10(%arg0: i32) -> (i32, i32) {
    %c0_i32 = arith.constant 0 : i32
    %c0_i32_0 = arith.constant 0 : i32
    %c0_i32_1 = arith.constant 0 : i32
    return %c0_i32, %c0_i32_0 : i32, i32
  }
  func.func @transform_11(%arg0: i32) -> (i32, i32) {
    %c0_i32 = arith.constant 0 : i32
    %c0_i32_0 = arith.constant 0 : i32
    %c0_i32_1 = arith.constant 0 : i32
    return %c0_i32, %c0_i32_0 : i32, i32
  }
  func.func @transform_12(%arg0: i32) -> (i32, i32) {
    %c0_i32 = arith.constant 0 : i32
    %c0_i32_0 = arith.constant 0 : i32
    %c0_i32_1 = arith.constant 0 : i32
    return %c0_i32, %c0_i32_0 : i32, i32
  }
  func.func @transform_13(%arg0: i32) -> (i32, i32, i32) {
    %c0_i32 = arith.constant 0 : i32
    %c0_i32_0 = arith.constant 0 : i32
    %c0_i32_1 = arith.constant 0 : i32
    return %arg0, %c0_i32, %c0_i32_0 : i32, i32, i32
  }
}

</mosaic_0001>

<llo_original>
// kernel: _forward.1
$region0: #{_forward.1}
  #allocation0 [shape = 'u32[]', space=smem, size = 0x4, offset = 0x4, fixed_abs, tag = 'smem constant byte address 0x4 - core index']
  #allocation1 [shape = 'u32[72,128]{1,0:T(1,128)}', space=vmem, size = 0x9000, scoped, tag = 'internal scratch']
  %s0 = inlined_call_operand.vmem [shape: f32[1,4,2048], index: 0, kind: input, shape index: {}]
  %s1 = inlined_call_operand.vmem [shape: f32[1,8,27], index: 1, kind: input, shape index: {}]
  %s2 = inlined_call_operand.vmem [shape: f32[9,2048], index: 2, kind: input, shape index: {}]
  %s3 = inlined_call_operand.vmem [shape: f32[8,36], index: 3, kind: input, shape index: {}]
  %s4 = inlined_call_operand.vmem [shape: f32[8,1], index: 4, kind: input, shape index: {}]
  %s5 = inlined_call_operand.vmem [shape: f32[8,72], index: 5, kind: input, shape index: {}]
  %s6 = inlined_call_operand.vmem [shape: f32[8,1], index: 6, kind: input, shape index: {}]
  %s7 = inlined_call_operand.hbm [shape: f32[32,2048], index: 7, kind: input, shape index: {}]
  %s8 = inlined_call_operand.vmem [shape: f32[27,32], index: 8, kind: input, shape index: {}]
  %s9 = inlined_call_operand.vmem [shape: f32[1,32], index: 9, kind: input, shape index: {}]
  %s10 = inlined_call_operand.vmem [shape: f32[32,48], index: 10, kind: input, shape index: {}]
  %s11 = inlined_call_operand.vmem [shape: f32[1,48], index: 11, kind: input, shape index: {}]
  %s12 = inlined_call_operand.vmem [shape: f32[48,6], index: 12, kind: input, shape index: {}]
  %s13 = inlined_call_operand.vmem [shape: f32[1,8,128], index: 13, kind: output, shape index: {}]
  %s14 = sld [smem:[#allocation0]]
  $region66: #{_forward.1} parent=0
    _
  %s16 = ssub.s32 1, %s14
  %s17 = scalar_select 0, %s16, %s14
  $region1: #{_forward.1} parent=0
    #allocation2 [shape = 'u8[262144]{0}', space=vmem, size = 0x40000, scoped, tag = 'input window, operand 7, single buffered']
    #allocation3 [shape = 's32[1]{0}', space=sflag, size = 0x4, scoped, tag = 'scoped memory for _forward.1']
    %18 = vsyncpa [#allocation3], 0
    // Predicated region
    $region2: #{_forward.1} parent=1 // pred_check
      _
    $region3: #{_forward.1} parent=1 // pred_check_branch
      %20 = sbr.rel (0) target = $region5
    $region4: #{_forward.1} parent=1 // pred_region
      _
    $region5: #{_forward.1} parent=1 // pred_fallthru
      _
    // Predicated region
    $region6: #{_forward.1} parent=1 // pred_check
      _
    $region7: #{_forward.1} parent=1 // pred_check_branch
      %22 = sbr.rel (0) target = $region9
    $region8: #{_forward.1} parent=1 // pred_region
      _
    $region9: #{_forward.1} parent=1 // pred_fallthru
      _
    // Predicated region
    $region10: #{_forward.1} parent=1 // pred_check
      _
    $region11: #{_forward.1} parent=1 // pred_check_branch
      %24 = sbr.rel (0) target = $region13
    $region12: #{_forward.1} parent=1 // pred_region
      _
    $region13: #{_forward.1} parent=1 // pred_fallthru
      _
    // Predicated region
    $region14: #{_forward.1} parent=1 // pred_check
      _
    $region15: #{_forward.1} parent=1 // pred_check_branch
      %26 = sbr.rel (0) target = $region17
    $region16: #{_forward.1} parent=1 // pred_region
      _
    $region17: #{_forward.1} parent=1 // pred_fallthru
      _
    // Predicated region
    $region18: #{_forward.1} parent=1 // pred_check
      _
    $region19: #{_forward.1} parent=1 // pred_check_branch
      %28 = sbr.rel (0) target = $region21
    $region20: #{_forward.1} parent=1 // pred_region
      _
    $region21: #{_forward.1} parent=1 // pred_fallthru
      _
    // Predicated region
    $region22: #{_forward.1} parent=1 // pred_check
      _
    $region23: #{_forward.1} parent=1 // pred_check_branch
      %30 = sbr.rel (0) target = $region25
    $region24: #{_forward.1} parent=1 // pred_region
      _
    $region25: #{_forward.1} parent=1 // pred_fallthru
      _
    // Predicated region
    $region26: #{_forward.1} parent=1 // pred_check
      _
    $region27: #{_forward.1} parent=1 // pred_check_branch
      %32 = sbr.rel (0) target = $region29
    $region28: #{_forward.1} parent=1 // pred_region
      _
    $region29: #{_forward.1} parent=1 // pred_fallthru
      _
    // Predicated region
    $region30: #{_forward.1} parent=1 // pred_check
      _
    $region31: #{_forward.1} parent=1 // pred_check_branch
      %34 = sbr.rel (0) target = $region33
    $region32: #{_forward.1} parent=1 // pred_region
      %36 = vsyncadd [#allocation3], 0
      %s37 = sshll.u32 %s7, 4
      %s38 = int_to_ptr.hbm [resolvable:$true] %s37
      %s39 = sshll.u32 [#allocation2], 4
      %s40 = int_to_ptr.vmem [resolvable:$true] %s39
      %45 = dma.hbm_to_vmem [thread:$0]  %s38, 8192, %s40, [#allocation3], 2048, 2048, 128
    $region33: #{_forward.1} parent=1 // pred_fallthru
      _
    // Predicated region
    $region34: #{_forward.1} parent=1 // pred_check
      _
    $region35: #{_forward.1} parent=1 // pred_check_branch
      %47 = sbr.rel (0) target = $region37
    $region36: #{_forward.1} parent=1 // pred_region
      _
    $region37: #{_forward.1} parent=1 // pred_fallthru
      _
    // Predicated region
    $region38: #{_forward.1} parent=1 // pred_check
      _
    $region39: #{_forward.1} parent=1 // pred_check_branch
      %49 = sbr.rel (0) target = $region41
    $region40: #{_forward.1} parent=1 // pred_region
      _
    $region41: #{_forward.1} parent=1 // pred_fallthru
      _
    // Predicated region
    $region42: #{_forward.1} parent=1 // pred_check
      _
    $region43: #{_forward.1} parent=1 // pred_check_branch
      %51 = sbr.rel (0) target = $region45
    $region44: #{_forward.1} parent=1 // pred_region
      _
    $region45: #{_forward.1} parent=1 // pred_fallthru
      _
    // Predicated region
    $region46: #{_forward.1} parent=1 // pred_check
      _
    $region47: #{_forward.1} parent=1 // pred_check_branch
      %53 = sbr.rel (0) target = $region49
    $region48: #{_forward.1} parent=1 // pred_region
      _
    $region49: #{_forward.1} parent=1 // pred_fallthru
      _
    // Predicated region
    $region50: #{_forward.1} parent=1 // pred_check
      _
    $region51: #{_forward.1} parent=1 // pred_check_branch
      %55 = sbr.rel (0) target = $region53
    $region52: #{_forward.1} parent=1 // pred_region
      _
    $region53: #{_forward.1} parent=1 // pred_fallthru
      _
    // Predicated region
    $region54: #{_forward.1} parent=1 // pred_check
      _
    $region55: #{_forward.1} parent=1 // pred_check_branch
      %57 = sbr.rel (0) target = $region57
    $region56: #{_forward.1} parent=1 // pred_region
      %59 = dma.done [#allocation3], 8192
    $region57: #{_forward.1} parent=1 // pred_fallthru
      _
    %v60 = vld [vmem:[%s2] sm:$0xff]
    %v61 = vld [vmem:[%s2 + $0x8] sm:$0xff]
    %v62 = vld [vmem:[%s2 + $0x10] sm:$0xff]
    %v63 = vld [vmem:[%s2 + $0x18] sm:$0xff]
    %v64 = vld [vmem:[%s2 + $0x20] sm:$0xff]
    %v65 = vld [vmem:[%s2 + $0x28] sm:$0xff]
    %v66 = vld [vmem:[%s2 + $0x30] sm:$0xff]
    %v67 = vld [vmem:[%s2 + $0x38] sm:$0xff]
    %v68 = vld [vmem:[%s2 + $0x40] sm:$0xff]
    %v69 = vld [vmem:[%s2 + $0x48] sm:$0xff]
    %v70 = vld [vmem:[%s2 + $0x50] sm:$0xff]
    %v71 = vld [vmem:[%s2 + $0x58] sm:$0xff]
    %v72 = vld [vmem:[%s2 + $0x60] sm:$0xff]
    %v73 = vld [vmem:[%s2 + $0x68] sm:$0xff]
    %v74 = vld [vmem:[%s2 + $0x70] sm:$0xff]
    %v75 = vld [vmem:[%s2 + $0x78] sm:$0xff]
    %v76 = vld [vmem:[%s2 + $0x80] sm:$0x1]
    %v77 = vld [vmem:[%s2 + $0x88] sm:$0x1]
    %v78 = vld [vmem:[%s2 + $0x90] sm:$0x1]
    %v79 = vld [vmem:[%s2 + $0x98] sm:$0x1]
    %v80 = vld [vmem:[%s2 + $0xa0] sm:$0x1]
    %v81 = vld [vmem:[%s2 + $0xa8] sm:$0x1]
    %v82 = vld [vmem:[%s2 + $0xb0] sm:$0x1]
    %v83 = vld [vmem:[%s2 + $0xb8] sm:$0x1]
    %v84 = vld [vmem:[%s2 + $0xc0] sm:$0x1]
    %v85 = vld [vmem:[%s2 + $0xc8] sm:$0x1]
    %v86 = vld [vmem:[%s2 + $0xd0] sm:$0x1]
    %v87 = vld [vmem:[%s2 + $0xd8] sm:$0x1]
    %v88 = vld [vmem:[%s2 + $0xe0] sm:$0x1]
    %v89 = vld [vmem:[%s2 + $0xe8] sm:$0x1]
    %v90 = vld [vmem:[%s2 + $0xf0] sm:$0x1]
    %v91 = vld [vmem:[%s2 + $0xf8] sm:$0x1]
    %v92 = vld [vmem:[%s0] sm:$0xff]
    %v93 = vld [vmem:[%s0 + $0x8] sm:$0xff]
    %v94 = vld [vmem:[%s0 + $0x10] sm:$0xff]
    %v95 = vld [vmem:[%s0 + $0x18] sm:$0xff]
    %v96 = vld [vmem:[%s0 + $0x20] sm:$0xff]
    %v97 = vld [vmem:[%s0 + $0x28] sm:$0xff]
    %v98 = vld [vmem:[%s0 + $0x30] sm:$0xff]
    %v99 = vld [vmem:[%s0 + $0x38] sm:$0xff]
    %101 = vst [vmem:[#allocation1] ss:$2 sm:$0xff] %v99
    %v102 = vld.sshfl [vmem:[#allocation1 + $0x8] sm:$0xff pattern:$0x75316420]
    %103 = vrot.lane.b32.xlu0 %v102, 17
    %v104 = vpop.permute.xlu0 %103
    %113 = vst [vmem:[#allocation1] ss:$2 sm:$0xff] %v92
    %s114 = scalar_lea.vmem [#allocation1], 16
    %115 = vst [vmem:[%s114] ss:$2 sm:$0xff] %v93
    %s116 = scalar_lea.vmem [#allocation1], 32
    %117 = vst [vmem:[%s116] ss:$2 sm:$0xff] %v94
    %s118 = scalar_lea.vmem [#allocation1], 48
    %119 = vst [vmem:[%s118] ss:$2 sm:$0xff] %v95
    %v120 = vld.sshfl [vmem:[#allocation1] sm:$0xff pattern:$0x75316420]
    %v121 = vld.sshfl [vmem:[#allocation1 + $0x8] sm:$0xff pattern:$0x75316420]
    %v122 = vld.sshfl [vmem:[#allocation1 + $0x10] sm:$0xff pattern:$0x75316420]
    %v123 = vld.sshfl [vmem:[#allocation1 + $0x18] sm:$0xff pattern:$0x75316420]
    %v124 = vld.sshfl [vmem:[#allocation1 + $0x20] sm:$0xff pattern:$0x75316420]
    %v125 = vld.sshfl [vmem:[#allocation1 + $0x28] sm:$0xff pattern:$0x75316420]
    %v126 = vld.sshfl [vmem:[#allocation1 + $0x30] sm:$0xff pattern:$0x75316420]
    %v127 = vld.sshfl [vmem:[#allocation1 + $0x38] sm:$0xff pattern:$0x75316420]
    %128 = vst [vmem:[#allocation1] ss:$2 sm:$0xff] %v96
    %129 = vst [vmem:[%s114] ss:$2 sm:$0xff] %v97
    %130 = vst [vmem:[%s116] ss:$2 sm:$0xff] %v98
    %131 = vst [vmem:[%s118] ss:$2 sm:$0xff] %v99
    %v132 = vld.sshfl [vmem:[#allocation1] sm:$0xff pattern:$0x75316420]
    %v133 = vld.sshfl [vmem:[#allocation1 + $0x8] sm:$0xff pattern:$0x75316420]
    %v134 = vld.sshfl [vmem:[#allocation1 + $0x10] sm:$0xff pattern:$0x75316420]
    %v135 = vld.sshfl [vmem:[#allocation1 + $0x18] sm:$0xff pattern:$0x75316420]
    %v136 = vld.sshfl [vmem:[#allocation1 + $0x20] sm:$0xff pattern:$0x75316420]
    %v137 = vld.sshfl [vmem:[#allocation1 + $0x28] sm:$0xff pattern:$0x75316420]
    %v138 = vld.sshfl [vmem:[#allocation1 + $0x30] sm:$0xff pattern:$0x75316420]
    %v139 = vld.sshfl [vmem:[#allocation1 + $0x38] sm:$0xff pattern:$0x75316420]
    %140 = vrot.lane.b32.xlu0 %v120, 17
    %v141 = vpop.permute.xlu0 %140
    %142 = vrot.lane.b32.xlu0 %v121, 17
    %v143 = vpop.permute.xlu0 %142
    %144 = vrot.lane.b32.xlu0 %v122, 17
    %v145 = vpop.permute.xlu0 %144
    %146 = vrot.lane.b32.xlu0 %v123, 17
    %v147 = vpop.permute.xlu0 %146
    %148 = vrot.lane.b32.xlu0 %v124, 17
    %v149 = vpop.permute.xlu0 %148
    %150 = vrot.lane.b32.xlu0 %v125, 17
    %v151 = vpop.permute.xlu0 %150
    %152 = vrot.lane.b32.xlu0 %v126, 17
    %v153 = vpop.permute.xlu0 %152
    %154 = vrot.lane.b32.xlu0 %v127, 17
    %v155 = vpop.permute.xlu0 %154
    %156 = vrot.lane.b32.xlu0 %v132, 17
    %v157 = vpop.permute.xlu0 %156
    %158 = vrot.lane.b32.xlu0 %v133, 17
    %v159 = vpop.permute.xlu0 %158
    %160 = vrot.lane.b32.xlu0 %v134, 17
    %v161 = vpop.permute.xlu0 %160
    %162 = vrot.lane.b32.xlu0 %v135, 17
    %v163 = vpop.permute.xlu0 %162
    %164 = vrot.lane.b32.xlu0 %v136, 17
    %v165 = vpop.permute.xlu0 %164
    %166 = vrot.lane.b32.xlu0 %v137, 17
    %v167 = vpop.permute.xlu0 %166
    %168 = vrot.lane.b32.xlu0 %v138, 17
    %v169 = vpop.permute.xlu0 %168
    %170 = vrot.lane.b32.xlu0 %v139, 17
    %v171 = vpop.permute.xlu0 %170
    %vm172 = vcmask 138240
    %v173 = vsel %vm172, %v141, %v143
    %v174 = vsel %vm172, %v143, %v145
    %v175 = vsel %vm172, %v145, %v147
    %v176 = vsel %vm172, %v147, %v149
    %v177 = vsel %vm172, %v149, %v151
    %v178 = vsel %vm172, %v151, %v153
    %v179 = vsel %vm172, %v153, %v155
    %v180 = vsel %vm172, %v155, %v157
    %v181 = vsel %vm172, %v157, %v159
    %v182 = vsel %vm172, %v159, %v161
    %v183 = vsel %vm172, %v161, %v163
    %v184 = vsel %vm172, %v163, %v165
    %v185 = vsel %vm172, %v165, %v167
    %v186 = vsel %vm172, %v167, %v169
    %v187 = vsel %vm172, %v169, %v171
    %v204 = vsel %vm172, %v104, %v141
    %v205 = vperm.slane %v60, 0
    %v206 = vperm.slane %v61, 0
    %v207 = vperm.slane %v62, 0
    %v208 = vperm.slane %v63, 0
    %v209 = vperm.slane %v64, 0
    %v210 = vperm.slane %v65, 0
    %v211 = vperm.slane %v66, 0
    %v212 = vperm.slane %v67, 0
    %v213 = vperm.slane %v68, 0
    %v214 = vperm.slane %v69, 0
    %v215 = vperm.slane %v70, 0
    %v216 = vperm.slane %v71, 0
    %v217 = vperm.slane %v72, 0
    %v218 = vperm.slane %v73, 0
    %v219 = vperm.slane %v74, 0
    %v220 = vperm.slane %v75, 0
    %v221 = vmul.f32 %v204, %v205
    %v222 = vmul.f32 %v173, %v206
    %v223 = vmul.f32 %v174, %v207
    %v224 = vmul.f32 %v175, %v208
    %v225 = vmul.f32 %v176, %v209
    %v226 = vmul.f32 %v177, %v210
    %v227 = vmul.f32 %v178, %v211
    %v228 = vmul.f32 %v179, %v212
    %v229 = vmul.f32 %v180, %v213
    %v230 = vmul.f32 %v181, %v214
    %v231 = vmul.f32 %v182, %v215
    %v232 = vmul.f32 %v183, %v216
    %v233 = vmul.f32 %v184, %v217
    %v234 = vmul.f32 %v185, %v218
    %v235 = vmul.f32 %v186, %v219
    %v236 = vmul.f32 %v187, %v220
    %237 = vst [vmem:[#allocation1] ss:$2 sm:$0xff] %v99
    %v238 = vld.sshfl [vmem:[#allocation1 + $0x8] sm:$0xff pattern:$0x75316420]
    %239 = vrot.lane.b32.xlu0 %v238, 16
    %v240 = vpop.permute.xlu0 %239
    %242 = vst [vmem:[#allocation1] ss:$2 sm:$0xff] %v92
    %s243 = scalar_lea.vmem [#allocation1], 16
    %244 = vst [vmem:[%s243] ss:$2 sm:$0xff] %v93
    %s245 = scalar_lea.vmem [#allocation1], 32
    %246 = vst [vmem:[%s245] ss:$2 sm:$0xff] %v94
    %s247 = scalar_lea.vmem [#allocation1], 48
    %248 = vst [vmem:[%s247] ss:$2 sm:$0xff] %v95
    %v249 = vld.sshfl [vmem:[#allocation1] sm:$0xff pattern:$0x75316420]
    %v250 = vld.sshfl [vmem:[#allocation1 + $0x8] sm:$0xff pattern:$0x75316420]
    %v251 = vld.sshfl [vmem:[#allocation1 + $0x10] sm:$0xff pattern:$0x75316420]
    %v252 = vld.sshfl [vmem:[#allocation1 + $0x18] sm:$0xff pattern:$0x75316420]
    %v253 = vld.sshfl [vmem:[#allocation1 + $0x20] sm:$0xff pattern:$0x75316420]
    %v254 = vld.sshfl [vmem:[#allocation1 + $0x28] sm:$0xff pattern:$0x75316420]
    %v255 = vld.sshfl [vmem:[#allocation1 + $0x30] sm:$0xff pattern:$0x75316420]
    %v256 = vld.sshfl [vmem:[#allocation1 + $0x38] sm:$0xff pattern:$0x75316420]
    %257 = vst [vmem:[#allocation1] ss:$2 sm:$0xff] %v96
    %258 = vst [vmem:[%s243] ss:$2 sm:$0xff] %v97
    %259 = vst [vmem:[%s245] ss:$2 sm:$0xff] %v98
    %260 = vst [vmem:[%s247] ss:$2 sm:$0xff] %v99
    %v261 = vld.sshfl [vmem:[#allocation1] sm:$0xff pattern:$0x75316420]
    %v262 = vld.sshfl [vmem:[#allocation1 + $0x8] sm:$0xff pattern:$0x75316420]
    %v263 = vld.sshfl [vmem:[#allocation1 + $0x10] sm:$0xff pattern:$0x75316420]
    %v264 = vld.sshfl [vmem:[#allocation1 + $0x18] sm:$0xff pattern:$0x75316420]
    %v265 = vld.sshfl [vmem:[#allocation1 + $0x20] sm:$0xff pattern:$0x75316420]
    %v266 = vld.sshfl [vmem:[#allocation1 + $0x28] sm:$0xff pattern:$0x75316420]
    %v267 = vld.sshfl [vmem:[#allocation1 + $0x30] sm:$0xff pattern:$0x75316420]
    %v268 = vld.sshfl [vmem:[#allocation1 + $0x38] sm:$0xff pattern:$0x75316420]
    %269 = vrot.lane.b32.xlu0 %v249, 16
    %v270 = vpop.permute.xlu0 %269
    %271 = vrot.lane.b32.xlu0 %v250, 16
    %v272 = vpop.permute.xlu0 %271
    %273 = vrot.lane.b32.xlu0 %v251, 16
    %v274 = vpop.permute.xlu0 %273
    %275 = vrot.lane.b32.xlu0 %v252, 16
    %v276 = vpop.permute.xlu0 %275
    %277 = vrot.lane.b32.xlu0 %v253, 16
    %v278 = vpop.permute.xlu0 %277
    %279 = vrot.lane.b32.xlu0 %v254, 16
    %v280 = vpop.permute.xlu0 %279
    %281 = vrot.lane.b32.xlu0 %v255, 16
    %v282 = vpop.permute.xlu0 %281
    %283 = vrot.lane.b32.xlu0 %v256, 16
    %v284 = vpop.permute.xlu0 %283
    %285 = vrot.lane.b32.xlu0 %v261, 16
    %v286 = vpop.permute.xlu0 %285
    %287 = vrot.lane.b32.xlu0 %v262, 16
    %v288 = vpop.permute.xlu0 %287
    %289 = vrot.lane.b32.xlu0 %v263, 16
    %v290 = vpop.permute.xlu0 %289
    %291 = vrot.lane.b32.xlu0 %v264, 16
    %v292 = vpop.permute.xlu0 %291
    %293 = vrot.lane.b32.xlu0 %v265, 16
    %v294 = vpop.permute.xlu0 %293
    %295 = vrot.lane.b32.xlu0 %v266, 16
    %v296 = vpop.permute.xlu0 %295
    %297 = vrot.lane.b32.xlu0 %v267, 16
    %v298 = vpop.permute.xlu0 %297
    %299 = vrot.lane.b32.xlu0 %v268, 16
    %v300 = vpop.permute.xlu0 %299
    %vm301 = vcmask 130048
    %v302 = vsel %vm301, %v270, %v272
    %v303 = vsel %vm301, %v272, %v274
    %v304 = vsel %vm301, %v274, %v276
    %v305 = vsel %vm301, %v276, %v278
    %v306 = vsel %vm301, %v278, %v280
    %v307 = vsel %vm301, %v280, %v282
    %v308 = vsel %vm301, %v282, %v284
    %v309 = vsel %vm301, %v284, %v286
    %v310 = vsel %vm301, %v286, %v288
    %v311 = vsel %vm301, %v288, %v290
    %v312 = vsel %vm301, %v290, %v292
    %v313 = vsel %vm301, %v292, %v294
    %v314 = vsel %vm301, %v294, %v296
    %v315 = vsel %vm301, %v296, %v298
    %v316 = vsel %vm301, %v298, %v300
    %v333 = vsel %vm301, %v240, %v270
    %v334 = vperm.slane %v60, 1
    %v335 = vperm.slane %v61, 1
    %v336 = vperm.slane %v62, 1
    %v337 = vperm.slane %v63, 1
    %v338 = vperm.slane %v64, 1
    %v339 = vperm.slane %v65, 1
    %v340 = vperm.slane %v66, 1
    %v341 = vperm.slane %v67, 1
    %v342 = vperm.slane %v68, 1
    %v343 = vperm.slane %v69, 1
    %v344 = vperm.slane %v70, 1
    %v345 = vperm.slane %v71, 1
    %v346 = vperm.slane %v72, 1
    %v347 = vperm.slane %v73, 1
    %v348 = vperm.slane %v74, 1
    %v349 = vperm.slane %v75, 1
    %v350 = vmul.f32 %v333, %v334
    %v351 = vmul.f32 %v302, %v335
    %v352 = vmul.f32 %v303, %v336
    %v353 = vmul.f32 %v304, %v337
    %v354 = vmul.f32 %v305, %v338
    %v355 = vmul.f32 %v306, %v339
    %v356 = vmul.f32 %v307, %v340
    %v357 = vmul.f32 %v308, %v341
    %v358 = vmul.f32 %v309, %v342
    %v359 = vmul.f32 %v310, %v343
    %v360 = vmul.f32 %v311, %v344
    %v361 = vmul.f32 %v312, %v345
    %v362 = vmul.f32 %v313, %v346
    %v363 = vmul.f32 %v314, %v347
    %v364 = vmul.f32 %v315, %v348
    %v365 = vmul.f32 %v316, %v349
    %366 = vst [vmem:[#allocation1] ss:$2 sm:$0xff] %v99
    %v367 = vld.sshfl [vmem:[#allocation1 + $0x8] sm:$0xff pattern:$0x75316420]
    %368 = vrot.lane.b32.xlu0 %v367, 15
    %v369 = vpop.permute.xlu0 %368
    %371 = vst [vmem:[#allocation1] ss:$2 sm:$0xff] %v92
    %s372 = scalar_lea.vmem [#allocation1], 16
    %373 = vst [vmem:[%s372] ss:$2 sm:$0xff] %v93
    %s374 = scalar_lea.vmem [#allocation1], 32
    %375 = vst [vmem:[%s374] ss:$2 sm:$0xff] %v94
    %s376 = scalar_lea.vmem [#allocation1], 48
    %377 = vst [vmem:[%s376] ss:$2 sm:$0xff] %v95
    %v378 = vld.sshfl [vmem:[#allocation1] sm:$0xff pattern:$0x75316420]
    %v379 = vld.sshfl [vmem:[#allocation1 + $0x8] sm:$0xff pattern:$0x75316420]
    %v380 = vld.sshfl [vmem:[#allocation1 + $0x10] sm:$0xff pattern:$0x75316420]
    %v381 = vld.sshfl [vmem:[#allocation1 + $0x18] sm:$0xff pattern:$0x75316420]
    %v382 = vld.sshfl [vmem:[#allocation1 + $0x20] sm:$0xff pattern:$0x75316420]
    %v383 = vld.sshfl [vmem:[#allocation1 + $0x28] sm:$0xff pattern:$0x75316420]
    %v384 = vld.sshfl [vmem:[#allocation1 + $0x30] sm:$0xff pattern:$0x75316420]
    %v385 = vld.sshfl [vmem:[#allocation1 + $0x38] sm:$0xff pattern:$0x75316420]
    %386 = vst [vmem:[#allocation1] ss:$2 sm:$0xff] %v96
    %387 = vst [vmem:[%s372] ss:$2 sm:$0xff] %v97
    %388 = vst [vmem:[%s374] ss:$2 sm:$0xff] %v98
    %389 = vst [vmem:[%s376] ss:$2 sm:$0xff] %v99
    %v390 = vld.sshfl [vmem:[#allocation1] sm:$0xff pattern:$0x75316420]
    %v391 = vld.sshfl [vmem:[#allocation1 + $0x8] sm:$0xff pattern:$0x75316420]
    %v392 = vld.sshfl [vmem:[#allocation1 + $0x10] sm:$0xff pattern:$0x75316420]
    %v393 = vld.sshfl [vmem:[#allocation1 + $0x18] sm:$0xff pattern:$0x75316420]
    %v394 = vld.sshfl [vmem:[#allocation1 + $0x20] sm:$0xff pattern:$0x75316420]
    %v395 = vld.sshfl [vmem:[#allocation1 + $0x28] sm:$0xff pattern:$0x75316420]
    %v396 = vld.sshfl [vmem:[#allocation1 + $0x30] sm:$0xff pattern:$0x75316420]
    %v397 = vld.sshfl [vmem:[#allocation1 + $0x38] sm:$0xff pattern:$0x75316420]
    %398 = vrot.lane.b32.xlu0 %v378, 15
    %v399 = vpop.permute.xlu0 %398
    %400 = vrot.lane.b32.xlu0 %v379, 15
    %v401 = vpop.permute.xlu0 %400
    %402 = vrot.lane.b32.xlu0 %v380, 15
    %v403 = vpop.permute.xlu0 %402
    %404 = vrot.lane.b32.xlu0 %v381, 15
    %v405 = vpop.permute.xlu0 %404
    %406 = vrot.lane.b32.xlu0 %v382, 15
    %v407 = vpop.permute.xlu0 %406
    %408 = vrot.lane.b32.xlu0 %v383, 15
    %v409 = vpop.permute.xlu0 %408
    %410 = vrot.lane.b32.xlu0 %v384, 15
    %v411 = vpop.permute.xlu0 %410
    %412 = vrot.lane.b32.xlu0 %v385, 15
    %v413 = vpop.permute.xlu0 %412
    %414 = vrot.lane.b32.xlu0 %v390, 15
    %v415 = vpop.permute.xlu0 %414
    %416 = vrot.lane.b32.xlu0 %v391, 15
    %v417 = vpop.permute.xlu0 %416
    %418 = vrot.lane.b32.xlu0 %v392, 15
    %v419 = vpop.permute.xlu0 %418
    %420 = vrot.lane.b32.xlu0 %v393, 15
    %v421 = vpop.permute.xlu0 %420
    %422 = vrot.lane.b32.xlu0 %v394, 15
    %v423 = vpop.permute.xlu0 %422
    %424 = vrot.lane.b32.xlu0 %v395, 15
    %v425 = vpop.permute.xlu0 %424
    %426 = vrot.lane.b32.xlu0 %v396, 15
    %v427 = vpop.permute.xlu0 %426
    %428 = vrot.lane.b32.xlu0 %v397, 15
    %v429 = vpop.permute.xlu0 %428
    %vm430 = vcmask 121856
    %v431 = vsel %vm430, %v399, %v401
    %v432 = vsel %vm430, %v401, %v403
    %v433 = vsel %vm430, %v403, %v405
    %v434 = vsel %vm430, %v405, %v407
    %v435 = vsel %vm430, %v407, %v409
    %v436 = vsel %vm430, %v409, %v411
    %v437 = vsel %vm430, %v411, %v413
    %v438 = vsel %vm430, %v413, %v415
    %v439 = vsel %vm430, %v415, %v417
    %v440 = vsel %vm430, %v417, %v419
    %v441 = vsel %vm430, %v419, %v421
    %v442 = vsel %vm430, %v421, %v423
    %v443 = vsel %vm430, %v423, %v425
    %v444 = vsel %vm430, %v425, %v427
    %v445 = vsel %vm430, %v427, %v429
    %v462 = vsel %vm430, %v369, %v399
    %v463 = vperm.slane %v60, 2
    %v464 = vperm.slane %v61, 2
    %v465 = vperm.slane %v62, 2
    %v466 = vperm.slane %v63, 2
    %v467 = vperm.slane %v64, 2
    %v468 = vperm.slane %v65, 2
    %v469 = vperm.slane %v66, 2
    %v470 = vperm.slane %v67, 2
    %v471 = vperm.slane %v68, 2
    %v472 = vperm.slane %v69, 2
    %v473 = vperm.slane %v70, 2
    %v474 = vperm.slane %v71, 2
    %v475 = vperm.slane %v72, 2
    %v476 = vperm.slane %v73, 2
    %v477 = vperm.slane %v74, 2
    %v478 = vperm.slane %v75, 2
    %v479 = vmul.f32 %v462, %v463
    %v480 = vmul.f32 %v431, %v464
    %v481 = vmul.f32 %v432, %v465
    %v482 = vmul.f32 %v433, %v466
    %v483 = vmul.f32 %v434, %v467
    %v484 = vmul.f32 %v435, %v468
    %v485 = vmul.f32 %v436, %v469
    %v486 = vmul.f32 %v437, %v470
    %v487 = vmul.f32 %v438, %v471
    %v488 = vmul.f32 %v439, %v472
    %v489 = vmul.f32 %v440, %v473
    %v490 = vmul.f32 %v441, %v474
    %v491 = vmul.f32 %v442, %v475
    %v492 = vmul.f32 %v443, %v476
    %v493 = vmul.f32 %v444, %v477
    %v494 = vmul.f32 %v445, %v478
    %495 = vst [vmem:[#allocation1] ss:$2 sm:$0xff] %v99
    %v496 = vld.sshfl [vmem:[#allocation1 + $0x8] sm:$0xff pattern:$0x75316420]
    %497 = vrot.lane.b32.xlu0 %v496, 1
    %v498 = vpop.permute.xlu0 %497
    %500 = vst [vmem:[#allocation1] ss:$2 sm:$0xff] %v92
    %s501 = scalar_lea.vmem [#allocation1], 16
    %502 = vst [vmem:[%s501] ss:$2 sm:$0xff] %v93
    %s503 = scalar_lea.vmem [#allocation1], 32
    %504 = vst [vmem:[%s503] ss:$2 sm:$0xff] %v94
    %s505 = scalar_lea.vmem [#allocation1], 48
    %506 = vst [vmem:[%s505] ss:$2 sm:$0xff] %v95
    %v507 = vld.sshfl [vmem:[#allocation1] sm:$0xff pattern:$0x75316420]
    %v508 = vld.sshfl [vmem:[#allocation1 + $0x8] sm:$0xff pattern:$0x75316420]
    %v509 = vld.sshfl [vmem:[#allocation1 + $0x10] sm:$0xff pattern:$0x75316420]
    %v510 = vld.sshfl [vmem:[#allocation1 + $0x18] sm:$0xff pattern:$0x75316420]
    %v511 = vld.sshfl [vmem:[#allocation1 + $0x20] sm:$0xff pattern:$0x75316420]
    %v512 = vld.sshfl [vmem:[#allocation1 + $0x28] sm:$0xff pattern:$0x75316420]
    %v513 = vld.sshfl [vmem:[#allocation1 + $0x30] sm:$0xff pattern:$0x75316420]
    %v514 = vld.sshfl [vmem:[#allocation1 + $0x38] sm:$0xff pattern:$0x75316420]
    %515 = vst [vmem:[#allocation1] ss:$2 sm:$0xff] %v96
    %516 = vst [vmem:[%s501] ss:$2 sm:$0xff] %v97
    %517 = vst [vmem:[%s503] ss:$2 sm:$0xff] %v98
    %518 = vst [vmem:[%s505] ss:$2 sm:$0xff] %v99
    %v519 = vld.sshfl [vmem:[#allocation1] sm:$0xff pattern:$0x75316420]
    %v520 = vld.sshfl [vmem:[#allocation1 + $0x8] sm:$0xff pattern:$0x75316420]
    %v521 = vld.sshfl [vmem:[#allocation1 + $0x10] sm:$0xff pattern:$0x75316420]
    %v522 = vld.sshfl [vmem:[#allocation1 + $0x18] sm:$0xff pattern:$0x75316420]
    %v523 = vld.sshfl [vmem:[#allocation1 + $0x20] sm:$0xff pattern:$0x75316420]
    %v524 = vld.sshfl [vmem:[#allocation1 + $0x28] sm:$0xff pattern:$0x75316420]
    %v525 = vld.sshfl [vmem:[#allocation1 + $0x30] sm:$0xff pattern:$0x75316420]
    %v526 = vld.sshfl [vmem:[#allocation1 + $0x38] sm:$0xff pattern:$0x75316420]
    %527 = vrot.lane.b32.xlu0 %v507, 1
    %v528 = vpop.permute.xlu0 %527
    %529 = vrot.lane.b32.xlu0 %v508, 1
    %v530 = vpop.permute.xlu0 %529
    %531 = vrot.lane.b32.xlu0 %v509, 1
    %v532 = vpop.permute.xlu0 %531
    %533 = vrot.lane.b32.xlu0 %v510, 1
    %v534 = vpop.permute.xlu0 %533
    %535 = vrot.lane.b32.xlu0 %v511, 1
    %v536 = vpop.permute.xlu0 %535
    %537 = vrot.lane.b32.xlu0 %v512, 1
    %v538 = vpop.permute.xlu0 %537
    %539 = vrot.lane.b32.xlu0 %v513, 1
    %v540 = vpop.permute.xlu0 %539
    %541 = vrot.lane.b32.xlu0 %v514, 1
    %v542 = vpop.permute.xlu0 %541
    %543 = vrot.lane.b32.xlu0 %v519, 1
    %v544 = vpop.permute.xlu0 %543
    %545 = vrot.lane.b32.xlu0 %v520, 1
    %v546 = vpop.permute.xlu0 %545
    %547 = vrot.lane.b32.xlu0 %v521, 1
    %v548 = vpop.permute.xlu0 %547
    %549 = vrot.lane.b32.xlu0 %v522, 1
    %v550 = vpop.permute.xlu0 %549
    %551 = vrot.lane.b32.xlu0 %v523, 1
    %v552 = vpop.permute.xlu0 %551
    %553 = vrot.lane.b32.xlu0 %v524, 1
    %v554 = vpop.permute.xlu0 %553
    %555 = vrot.lane.b32.xlu0 %v525, 1
    %v556 = vpop.permute.xlu0 %555
    %557 = vrot.lane.b32.xlu0 %v526, 1
    %v558 = vpop.permute.xlu0 %557
    %vm559 = vcmask 7168
    %v560 = vsel %vm559, %v528, %v530
    %v561 = vsel %vm559, %v530, %v532
    %v562 = vsel %vm559, %v532, %v534
    %v563 = vsel %vm559, %v534, %v536
    %v564 = vsel %vm559, %v536, %v538
    %v565 = vsel %vm559, %v538, %v540
    %v566 = vsel %vm559, %v540, %v542
    %v567 = vsel %vm559, %v542, %v544
    %v568 = vsel %vm559, %v544, %v546
    %v569 = vsel %vm559, %v546, %v548
    %v570 = vsel %vm559, %v548, %v550
    %v571 = vsel %vm559, %v550, %v552
    %v572 = vsel %vm559, %v552, %v554
    %v573 = vsel %vm559, %v554, %v556
    %v574 = vsel %vm559, %v556, %v558
    %v591 = vsel %vm559, %v498, %v528
    %v592 = vperm.slane %v60, 3
    %v593 = vperm.slane %v61, 3
    %v594 = vperm.slane %v62, 3
    %v595 = vperm.slane %v63, 3
    %v596 = vperm.slane %v64, 3
    %v597 = vperm.slane %v65, 3
    %v598 = vperm.slane %v66, 3
    %v599 = vperm.slane %v67, 3
    %v600 = vperm.slane %v68, 3
    %v601 = vperm.slane %v69, 3
    %v602 = vperm.slane %v70, 3
    %v603 = vperm.slane %v71, 3
    %v604 = vperm.slane %v72, 3
    %v605 = vperm.slane %v73, 3
    %v606 = vperm.slane %v74, 3
    %v607 = vperm.slane %v75, 3
    %v608 = vmul.f32 %v591, %v592
    %v609 = vmul.f32 %v560, %v593
    %v610 = vmul.f32 %v561, %v594
    %v611 = vmul.f32 %v562, %v595
    %v612 = vmul.f32 %v563, %v596
    %v613 = vmul.f32 %v564, %v597
    %v614 = vmul.f32 %v565, %v598
    %v615 = vmul.f32 %v566, %v599
    %v616 = vmul.f32 %v567, %v600
    %v617 = vmul.f32 %v568, %v601
    %v618 = vmul.f32 %v569, %v602
    %v619 = vmul.f32 %v570, %v603
    %v620 = vmul.f32 %v571, %v604
    %v621 = vmul.f32 %v572, %v605
    %v622 = vmul.f32 %v573, %v606
    %v623 = vmul.f32 %v574, %v607
    %v624 = vperm.slane %v60, 4
    %v625 = vperm.slane %v61, 4
    %v626 = vperm.slane %v62, 4
    %v627 = vperm.slane %v63, 4
    %v628 = vperm.slane %v64, 4
    %v629 = vperm.slane %v65, 4
    %v630 = vperm.slane %v66, 4
    %v631 = vperm.slane %v67, 4
    %v632 = vperm.slane %v68, 4
    %v633 = vperm.slane %v69, 4
    %v634 = vperm.slane %v70, 4
    %v635 = vperm.slane %v71, 4
    %v636 = vperm.slane %v72, 4
    %v637 = vperm.slane %v73, 4
    %v638 = vperm.slane %v74, 4
    %v639 = vperm.slane %v75, 4
    %v656 = vrot.slane %v625, 4
    %v657 = vrot.slane %v627, 4
    %v658 = vrot.slane %v629, 4
    %v659 = vrot.slane %v631, 4
    %v660 = vrot.slane %v633, 4
    %v661 = vrot.slane %v635, 4
    %v662 = vrot.slane %v637, 4
    %v663 = vrot.slane %v639, 4
    %vm664 = vcmask 1043456
    %v665 = vsel %vm664, %v624, %v656
    %v666 = vsel %vm664, %v626, %v657
    %v667 = vsel %vm664, %v628, %v658
    %v668 = vsel %vm664, %v630, %v659
    %v669 = vsel %vm664, %v632, %v660
    %v670 = vsel %vm664, %v634, %v661
    %v671 = vsel %vm664, %v636, %v662
    %v672 = vsel %vm664, %v638, %v663
    %v681 = vmul.f32 %v92, %v665
    %v682 = vmul.f32 %v93, %v666
    %v683 = vmul.f32 %v94, %v667
    %v684 = vmul.f32 %v95, %v668
    %v685 = vmul.f32 %v96, %v669
    %v686 = vmul.f32 %v97, %v670
    %v687 = vmul.f32 %v98, %v671
    %v688 = vmul.f32 %v99, %v672
    %689 = vst [vmem:[#allocation1] ss:$2 sm:$0xff] %v92
    %s690 = scalar_lea.vmem [#allocation1], 16
    %691 = vst [vmem:[%s690] ss:$2 sm:$0xff] %v93
    %s692 = scalar_lea.vmem [#allocation1], 32
    %693 = vst [vmem:[%s692] ss:$2 sm:$0xff] %v94
    %s694 = scalar_lea.vmem [#allocation1], 48
    %695 = vst [vmem:[%s694] ss:$2 sm:$0xff] %v95
    %v696 = vld.sshfl [vmem:[#allocation1] sm:$0xff pattern:$0x75316420]
    %v697 = vld.sshfl [vmem:[#allocation1 + $0x8] sm:$0xff pattern:$0x75316420]
    %v698 = vld.sshfl [vmem:[#allocation1 + $0x10] sm:$0xff pattern:$0x75316420]
    %v699 = vld.sshfl [vmem:[#allocation1 + $0x18] sm:$0xff pattern:$0x75316420]
    %v700 = vld.sshfl [vmem:[#allocation1 + $0x20] sm:$0xff pattern:$0x75316420]
    %v701 = vld.sshfl [vmem:[#allocation1 + $0x28] sm:$0xff pattern:$0x75316420]
    %v702 = vld.sshfl [vmem:[#allocation1 + $0x30] sm:$0xff pattern:$0x75316420]
    %v703 = vld.sshfl [vmem:[#allocation1 + $0x38] sm:$0xff pattern:$0x75316420]
    %704 = vst [vmem:[#allocation1] ss:$2 sm:$0xff] %v96
    %705 = vst [vmem:[%s690] ss:$2 sm:$0xff] %v97
    %706 = vst [vmem:[%s692] ss:$2 sm:$0xff] %v98
    %707 = vst [vmem:[%s694] ss:$2 sm:$0xff] %v99
    %v708 = vld.sshfl [vmem:[#allocation1] sm:$0xff pattern:$0x75316420]
    %v709 = vld.sshfl [vmem:[#allocation1 + $0x8] sm:$0xff pattern:$0x75316420]
    %v710 = vld.sshfl [vmem:[#allocation1 + $0x10] sm:$0xff pattern:$0x75316420]
    %v711 = vld.sshfl [vmem:[#allocation1 + $0x18] sm:$0xff pattern:$0x75316420]
    %v712 = vld.sshfl [vmem:[#allocation1 + $0x20] sm:$0xff pattern:$0x75316420]
    %v713 = vld.sshfl [vmem:[#allocation1 + $0x28] sm:$0xff pattern:$0x75316420]
    %v714 = vld.sshfl [vmem:[#allocation1 + $0x30] sm:$0xff pattern:$0x75316420]
    %v715 = vld.sshfl [vmem:[#allocation1 + $0x38] sm:$0xff pattern:$0x75316420]
    %716 = vrot.lane.b32.xlu0 %v696, 127
    %v717 = vpop.permute.xlu0 %716
    %718 = vrot.lane.b32.xlu0 %v697, 127
    %v719 = vpop.permute.xlu0 %718
    %720 = vrot.lane.b32.xlu0 %v698, 127
    %v721 = vpop.permute.xlu0 %720
    %722 = vrot.lane.b32.xlu0 %v699, 127
    %v723 = vpop.permute.xlu0 %722
    %724 = vrot.lane.b32.xlu0 %v700, 127
    %v725 = vpop.permute.xlu0 %724
    %726 = vrot.lane.b32.xlu0 %v701, 127
    %v727 = vpop.permute.xlu0 %726
    %728 = vrot.lane.b32.xlu0 %v702, 127
    %v729 = vpop.permute.xlu0 %728
    %730 = vrot.lane.b32.xlu0 %v703, 127
    %v731 = vpop.permute.xlu0 %730
    %732 = vrot.lane.b32.xlu0 %v708, 127
    %v733 = vpop.permute.xlu0 %732
    %734 = vrot.lane.b32.xlu0 %v709, 127
    %v735 = vpop.permute.xlu0 %734
    %736 = vrot.lane.b32.xlu0 %v710, 127
    %v737 = vpop.permute.xlu0 %736
    %738 = vrot.lane.b32.xlu0 %v711, 127
    %v739 = vpop.permute.xlu0 %738
    %740 = vrot.lane.b32.xlu0 %v712, 127
    %v741 = vpop.permute.xlu0 %740
    %742 = vrot.lane.b32.xlu0 %v713, 127
    %v743 = vpop.permute.xlu0 %742
    %744 = vrot.lane.b32.xlu0 %v714, 127
    %v745 = vpop.permute.xlu0 %744
    %746 = vrot.lane.b32.xlu0 %v715, 127
    %v747 = vpop.permute.xlu0 %746
    %vm748 = vcmask 1039360
    %v749 = vsel %vm748, %v717, %v719
    %v750 = vsel %vm748, %v719, %v721
    %v751 = vsel %vm748, %v721, %v723
    %v752 = vsel %vm748, %v723, %v725
    %v753 = vsel %vm748, %v725, %v727
    %v754 = vsel %vm748, %v727, %v729
    %v755 = vsel %vm748, %v729, %v731
    %v756 = vsel %vm748, %v731, %v733
    %v757 = vsel %vm748, %v733, %v735
    %v758 = vsel %vm748, %v735, %v737
    %v759 = vsel %vm748, %v737, %v739
    %v760 = vsel %vm748, %v739, %v741
    %v761 = vsel %vm748, %v741, %v743
    %v762 = vsel %vm748, %v743, %v745
    %v763 = vsel %vm748, %v745, %v747
    %780 = vst [vmem:[#allocation1] ss:$2 sm:$0xff] %v92
    %v781 = vld.sshfl [vmem:[#allocation1] sm:$0xff pattern:$0x75316420]
    %782 = vrot.lane.b32.xlu0 %v781, 127
    %v783 = vpop.permute.xlu0 %782
    %v785 = vsel %vm748, %v747, %v783
    %v786 = vperm.slane %v60, 5
    %v787 = vperm.slane %v61, 5
    %v788 = vperm.slane %v62, 5
    %v789 = vperm.slane %v63, 5
    %v790 = vperm.slane %v64, 5
    %v791 = vperm.slane %v65, 5
    %v792 = vperm.slane %v66, 5
    %v793 = vperm.slane %v67, 5
    %v794 = vperm.slane %v68, 5
    %v795 = vperm.slane %v69, 5
    %v796 = vperm.slane %v70, 5
    %v797 = vperm.slane %v71, 5
    %v798 = vperm.slane %v72, 5
    %v799 = vperm.slane %v73, 5
    %v800 = vperm.slane %v74, 5
    %v801 = vperm.slane %v75, 5
    %v802 = vmul.f32 %v749, %v786
    %v803 = vmul.f32 %v750, %v787
    %v804 = vmul.f32 %v751, %v788
    %v805 = vmul.f32 %v752, %v789
    %v806 = vmul.f32 %v753, %v790
    %v807 = vmul.f32 %v754, %v791
    %v808 = vmul.f32 %v755, %v792
    %v809 = vmul.f32 %v756, %v793
    %v810 = vmul.f32 %v757, %v794
    %v811 = vmul.f32 %v758, %v795
    %v812 = vmul.f32 %v759, %v796
    %v813 = vmul.f32 %v760, %v797
    %v814 = vmul.f32 %v761, %v798
    %v815 = vmul.f32 %v762, %v799
    %v816 = vmul.f32 %v763, %v800
    %v817 = vmul.f32 %v785, %v801
    %818 = vst [vmem:[#allocation1] ss:$2 sm:$0xff] %v92
    %s819 = scalar_lea.vmem [#allocation1], 16
    %820 = vst [vmem:[%s819] ss:$2 sm:$0xff] %v93
    %s821 = scalar_lea.vmem [#allocation1], 32
    %822 = vst [vmem:[%s821] ss:$2 sm:$0xff] %v94
    %s823 = scalar_lea.vmem [#allocation1], 48
    %824 = vst [vmem:[%s823] ss:$2 sm:$0xff] %v95
    %v825 = vld.sshfl [vmem:[#allocation1] sm:$0xff pattern:$0x75316420]
    %v826 = vld.sshfl [vmem:[#allocation1 + $0x8] sm:$0xff pattern:$0x75316420]
    %v827 = vld.sshfl [vmem:[#allocation1 + $0x10] sm:$0xff pattern:$0x75316420]
    %v828 = vld.sshfl [vmem:[#allocation1 + $0x18] sm:$0xff pattern:$0x75316420]
    %v829 = vld.sshfl [vmem:[#allocation1 + $0x20] sm:$0xff pattern:$0x75316420]
    %v830 = vld.sshfl [vmem:[#allocation1 + $0x28] sm:$0xff pattern:$0x75316420]
    %v831 = vld.sshfl [vmem:[#allocation1 + $0x30] sm:$0xff pattern:$0x75316420]
    %v832 = vld.sshfl [vmem:[#allocation1 + $0x38] sm:$0xff pattern:$0x75316420]
    %833 = vst [vmem:[#allocation1] ss:$2 sm:$0xff] %v96
    %834 = vst [vmem:[%s819] ss:$2 sm:$0xff] %v97
    %835 = vst [vmem:[%s821] ss:$2 sm:$0xff] %v98
    %836 = vst [vmem:[%s823] ss:$2 sm:$0xff] %v99
    %v837 = vld.sshfl [vmem:[#allocation1] sm:$0xff pattern:$0x75316420]
    %v838 = vld.sshfl [vmem:[#allocation1 + $0x8] sm:$0xff pattern:$0x75316420]
    %v839 = vld.sshfl [vmem:[#allocation1 + $0x10] sm:$0xff pattern:$0x75316420]
    %v840 = vld.sshfl [vmem:[#allocation1 + $0x18] sm:$0xff pattern:$0x75316420]
    %v841 = vld.sshfl [vmem:[#allocation1 + $0x20] sm:$0xff pattern:$0x75316420]
    %v842 = vld.sshfl [vmem:[#allocation1 + $0x28] sm:$0xff pattern:$0x75316420]
    %v843 = vld.sshfl [vmem:[#allocation1 + $0x30] sm:$0xff pattern:$0x75316420]
    %v844 = vld.sshfl [vmem:[#allocation1 + $0x38] sm:$0xff pattern:$0x75316420]
    %845 = vrot.lane.b32.xlu0 %v825, 113
    %v846 = vpop.permute.xlu0 %845
    %847 = vrot.lane.b32.xlu0 %v826, 113
    %v848 = vpop.permute.xlu0 %847
    %849 = vrot.lane.b32.xlu0 %v827, 113
    %v850 = vpop.permute.xlu0 %849
    %851 = vrot.lane.b32.xlu0 %v828, 113
    %v852 = vpop.permute.xlu0 %851
    %853 = vrot.lane.b32.xlu0 %v829, 113
    %v854 = vpop.permute.xlu0 %853
    %855 = vrot.lane.b32.xlu0 %v830, 113
    %v856 = vpop.permute.xlu0 %855
    %857 = vrot.lane.b32.xlu0 %v831, 113
    %v858 = vpop.permute.xlu0 %857
    %859 = vrot.lane.b32.xlu0 %v832, 113
    %v860 = vpop.permute.xlu0 %859
    %861 = vrot.lane.b32.xlu0 %v837, 113
    %v862 = vpop.permute.xlu0 %861
    %863 = vrot.lane.b32.xlu0 %v838, 113
    %v864 = vpop.permute.xlu0 %863
    %865 = vrot.lane.b32.xlu0 %v839, 113
    %v866 = vpop.permute.xlu0 %865
    %867 = vrot.lane.b32.xlu0 %v840, 113
    %v868 = vpop.permute.xlu0 %867
    %869 = vrot.lane.b32.xlu0 %v841, 113
    %v870 = vpop.permute.xlu0 %869
    %871 = vrot.lane.b32.xlu0 %v842, 113
    %v872 = vpop.permute.xlu0 %871
    %873 = vrot.lane.b32.xlu0 %v843, 113
    %v874 = vpop.permute.xlu0 %873
    %875 = vrot.lane.b32.xlu0 %v844, 113
    %v876 = vpop.permute.xlu0 %875
    %vm877 = vcmask 924672
    %v878 = vsel %vm877, %v846, %v848
    %v879 = vsel %vm877, %v848, %v850
    %v880 = vsel %vm877, %v850, %v852
    %v881 = vsel %vm877, %v852, %v854
    %v882 = vsel %vm877, %v854, %v856
    %v883 = vsel %vm877, %v856, %v858
    %v884 = vsel %vm877, %v858, %v860
    %v885 = vsel %vm877, %v860, %v862
    %v886 = vsel %vm877, %v862, %v864
    %v887 = vsel %vm877, %v864, %v866
    %v888 = vsel %vm877, %v866, %v868
    %v889 = vsel %vm877, %v868, %v870
    %v890 = vsel %vm877, %v870, %v872
    %v891 = vsel %vm877, %v872, %v874
    %v892 = vsel %vm877, %v874, %v876
    %909 = vst [vmem:[#allocation1] ss:$2 sm:$0xff] %v92
    %v910 = vld.sshfl [vmem:[#allocation1] sm:$0xff pattern:$0x75316420]
    %911 = vrot.lane.b32.xlu0 %v910, 113
    %v912 = vpop.permute.xlu0 %911
    %v914 = vsel %vm877, %v876, %v912
    %v915 = vperm.slane %v60, 6
    %v916 = vperm.slane %v61, 6
    %v917 = vperm.slane %v62, 6
    %v918 = vperm.slane %v63, 6
    %v919 = vperm.slane %v64, 6
    %v920 = vperm.slane %v65, 6
    %v921 = vperm.slane %v66, 6
    %v922 = vperm.slane %v67, 6
    %v923 = vperm.slane %v68, 6
    %v924 = vperm.slane %v69, 6
    %v925 = vperm.slane %v70, 6
    %v926 = vperm.slane %v71, 6
    %v927 = vperm.slane %v72, 6
    %v928 = vperm.slane %v73, 6
    %v929 = vperm.slane %v74, 6
    %v930 = vperm.slane %v75, 6
    %v931 = vmul.f32 %v878, %v915
    %v932 = vmul.f32 %v879, %v916
    %v933 = vmul.f32 %v880, %v917
    %v934 = vmul.f32 %v881, %v918
    %v935 = vmul.f32 %v882, %v919
    %v936 = vmul.f32 %v883, %v920
    %v937 = vmul.f32 %v884, %v921
    %v938 = vmul.f32 %v885, %v922
    %v939 = vmul.f32 %v886, %v923
    %v940 = vmul.f32 %v887, %v924
    %v941 = vmul.f32 %v888, %v925
    %v942 = vmul.f32 %v889, %v926
    %v943 = vmul.f32 %v890, %v927
    %v944 = vmul.f32 %v891, %v928
    %v945 = vmul.f32 %v892, %v929
    %v946 = vmul.f32 %v914, %v930
    %947 = vst [vmem:[#allocation1] ss:$2 sm:$0xff] %v92
    %s948 = scalar_lea.vmem [#allocation1], 16
    %949 = vst [vmem:[%s948] ss:$2 sm:$0xff] %v93
    %s950 = scalar_lea.vmem [#allocation1], 32
    %951 = vst [vmem:[%s950] ss:$2 sm:$0xff] %v94
    %s952 = scalar_lea.vmem [#allocation1], 48
    %953 = vst [vmem:[%s952] ss:$2 sm:$0xff] %v95
    %v954 = vld.sshfl [vmem:[#allocation1] sm:$0xff pattern:$0x75316420]
    %v955 = vld.sshfl [vmem:[#allocation1 + $0x8] sm:$0xff pattern:$0x75316420]
    %v956 = vld.sshfl [vmem:[#allocation1 + $0x10] sm:$0xff pattern:$0x75316420]
    %v957 = vld.sshfl [vmem:[#allocation1 + $0x18] sm:$0xff pattern:$0x75316420]
    %v958 = vld.sshfl [vmem:[#allocation1 + $0x20] sm:$0xff pattern:$0x75316420]
    %v959 = vld.sshfl [vmem:[#allocation1 + $0x28] sm:$0xff pattern:$0x75316420]
    %v960 = vld.sshfl [vmem:[#allocation1 + $0x30] sm:$0xff pattern:$0x75316420]
    %v961 = vld.sshfl [vmem:[#allocation1 + $0x38] sm:$0xff pattern:$0x75316420]
    %962 = vst [vmem:[#allocation1] ss:$2 sm:$0xff] %v96
    %963 = vst [vmem:[%s948] ss:$2 sm:$0xff] %v97
    %964 = vst [vmem:[%s950] ss:$2 sm:$0xff] %v98
    %965 = vst [vmem:[%s952] ss:$2 sm:$0xff] %v99
    %v966 = vld.sshfl [vmem:[#allocation1] sm:$0xff pattern:$0x75316420]
    %v967 = vld.sshfl [vmem:[#allocation1 + $0x8] sm:$0xff pattern:$0x75316420]
    %v968 = vld.sshfl [vmem:[#allocation1 + $0x10] sm:$0xff pattern:$0x75316420]
    %v969 = vld.sshfl [vmem:[#allocation1 + $0x18] sm:$0xff pattern:$0x75316420]
    %v970 = vld.sshfl [vmem:[#allocation1 + $0x20] sm:$0xff pattern:$0x75316420]
    %v971 = vld.sshfl [vmem:[#allocation1 + $0x28] sm:$0xff pattern:$0x75316420]
    %v972 = vld.sshfl [vmem:[#allocation1 + $0x30] sm:$0xff pattern:$0x75316420]
    %v973 = vld.sshfl [vmem:[#allocation1 + $0x38] sm:$0xff pattern:$0x75316420]
    %974 = vrot.lane.b32.xlu0 %v954, 112
    %v975 = vpop.permute.xlu0 %974
    %976 = vrot.lane.b32.xlu0 %v955, 112
    %v977 = vpop.permute.xlu0 %976
    %978 = vrot.lane.b32.xlu0 %v956, 112
    %v979 = vpop.permute.xlu0 %978
    %980 = vrot.lane.b32.xlu0 %v957, 112
    %v981 = vpop.permute.xlu0 %980
    %982 = vrot.lane.b32.xlu0 %v958, 112
    %v983 = vpop.permute.xlu0 %982
    %984 = vrot.lane.b32.xlu0 %v959, 112
    %v985 = vpop.permute.xlu0 %984
    %986 = vrot.lane.b32.xlu0 %v960, 112
    %v987 = vpop.permute.xlu0 %986
    %988 = vrot.lane.b32.xlu0 %v961, 112
    %v989 = vpop.permute.xlu0 %988
    %990 = vrot.lane.b32.xlu0 %v966, 112
    %v991 = vpop.permute.xlu0 %990
    %992 = vrot.lane.b32.xlu0 %v967, 112
    %v993 = vpop.permute.xlu0 %992
    %994 = vrot.lane.b32.xlu0 %v968, 112
    %v995 = vpop.permute.xlu0 %994
    %996 = vrot.lane.b32.xlu0 %v969, 112
    %v997 = vpop.permute.xlu0 %996
    %998 = vrot.lane.b32.xlu0 %v970, 112
    %v999 = vpop.permute.xlu0 %998
    %1000 = vrot.lane.b32.xlu0 %v971, 112
    %v1001 = vpop.permute.xlu0 %1000
    %1002 = vrot.lane.b32.xlu0 %v972, 112
    %v1003 = vpop.permute.xlu0 %1002
    %1004 = vrot.lane.b32.xlu0 %v973, 112
    %v1005 = vpop.permute.xlu0 %1004
    %vm1006 = vcmask 916480
    %v1007 = vsel %vm1006, %v975, %v977
    %v1008 = vsel %vm1006, %v977, %v979
    %v1009 = vsel %vm1006, %v979, %v981
    %v1010 = vsel %vm1006, %v981, %v983
    %v1011 = vsel %vm1006, %v983, %v985
    %v1012 = vsel %vm1006, %v985, %v987
    %v1013 = vsel %vm1006, %v987, %v989
    %v1014 = vsel %vm1006, %v989, %v991
    %v1015 = vsel %vm1006, %v991, %v993
    %v1016 = vsel %vm1006, %v993, %v995
    %v1017 = vsel %vm1006, %v995, %v997
    %v1018 = vsel %vm1006, %v997, %v999
    %v1019 = vsel %vm1006, %v999, %v1001
    %v1020 = vsel %vm1006, %v1001, %v1003
    %v1021 = vsel %vm1006, %v1003, %v1005
    %1038 = vst [vmem:[#allocation1] ss:$2 sm:$0xff] %v92
    %v1039 = vld.sshfl [vmem:[#allocation1] sm:$0xff pattern:$0x75316420]
    %1040 = vrot.lane.b32.xlu0 %v1039, 112
    %v1041 = vpop.permute.xlu0 %1040
    %v1043 = vsel %vm1006, %v1005, %v1041
    %v1044 = vperm.slane %v60, 7
    %v1045 = vperm.slane %v61, 7
    %v1046 = vperm.slane %v62, 7
    %v1047 = vperm.slane %v63, 7
    %v1048 = vperm.slane %v64, 7
    %v1049 = vperm.slane %v65, 7
    %v1050 = vperm.slane %v66, 7
    %v1051 = vperm.slane %v67, 7
    %v1052 = vperm.slane %v68, 7
    %v1053 = vperm.slane %v69, 7
    %v1054 = vperm.slane %v70, 7
    %v1055 = vperm.slane %v71, 7
    %v1056 = vperm.slane %v72, 7
    %v1057 = vperm.slane %v73, 7
    %v1058 = vperm.slane %v74, 7
    %v1059 = vperm.slane %v75, 7
    %v1060 = vmul.f32 %v1007, %v1044
    %v1061 = vmul.f32 %v1008, %v1045
    %v1062 = vmul.f32 %v1009, %v1046
    %v1063 = vmul.f32 %v1010, %v1047
    %v1064 = vmul.f32 %v1011, %v1048
    %v1065 = vmul.f32 %v1012, %v1049
    %v1066 = vmul.f32 %v1013, %v1050
    %v1067 = vmul.f32 %v1014, %v1051
    %v1068 = vmul.f32 %v1015, %v1052
    %v1069 = vmul.f32 %v1016, %v1053
    %v1070 = vmul.f32 %v1017, %v1054
    %v1071 = vmul.f32 %v1018, %v1055
    %v1072 = vmul.f32 %v1019, %v1056
    %v1073 = vmul.f32 %v1020, %v1057
    %v1074 = vmul.f32 %v1021, %v1058
    %v1075 = vmul.f32 %v1043, %v1059
    %1076 = vst [vmem:[#allocation1] ss:$2 sm:$0xff] %v92
    %s1077 = scalar_lea.vmem [#allocation1], 16
    %1078 = vst [vmem:[%s1077] ss:$2 sm:$0xff] %v93
    %s1079 = scalar_lea.vmem [#allocation1], 32
    %1080 = vst [vmem:[%s1079] ss:$2 sm:$0xff] %v94
    %s1081 = scalar_lea.vmem [#allocation1], 48
    %1082 = vst [vmem:[%s1081] ss:$2 sm:$0xff] %v95
    %v1083 = vld.sshfl [vmem:[#allocation1] sm:$0xff pattern:$0x75316420]
    %v1084 = vld.sshfl [vmem:[#allocation1 + $0x8] sm:$0xff pattern:$0x75316420]
    %v1085 = vld.sshfl [vmem:[#allocation1 + $0x10] sm:$0xff pattern:$0x75316420]
    %v1086 = vld.sshfl [vmem:[#allocation1 + $0x18] sm:$0xff pattern:$0x75316420]
    %v1087 = vld.sshfl [vmem:[#allocation1 + $0x20] sm:$0xff pattern:$0x75316420]
    %v1088 = vld.sshfl [vmem:[#allocation1 + $0x28] sm:$0xff pattern:$0x75316420]
    %v1089 = vld.sshfl [vmem:[#allocation1 + $0x30] sm:$0xff pattern:$0x75316420]
    %v1090 = vld.sshfl [vmem:[#allocation1 + $0x38] sm:$0xff pattern:$0x75316420]
    %1091 = vst [vmem:[#allocation1] ss:$2 sm:$0xff] %v96
    %1092 = vst [vmem:[%s1077] ss:$2 sm:$0xff] %v97
    %1093 = vst [vmem:[%s1079] ss:$2 sm:$0xff] %v98
    %1094 = vst [vmem:[%s1081] ss:$2 sm:$0xff] %v99
    %v1095 = vld.sshfl [vmem:[#allocation1] sm:$0xff pattern:$0x75316420]
    %v1096 = vld.sshfl [vmem:[#allocation1 + $0x8] sm:$0xff pattern:$0x75316420]
    %v1097 = vld.sshfl [vmem:[#allocation1 + $0x10] sm:$0xff pattern:$0x75316420]
    %v1098 = vld.sshfl [vmem:[#allocation1 + $0x18] sm:$0xff pattern:$0x75316420]
    %v1099 = vld.sshfl [vmem:[#allocation1 + $0x20] sm:$0xff pattern:$0x75316420]
    %v1100 = vld.sshfl [vmem:[#allocation1 + $0x28] sm:$0xff pattern:$0x75316420]
    %v1101 = vld.sshfl [vmem:[#allocation1 + $0x30] sm:$0xff pattern:$0x75316420]
    %v1102 = vld.sshfl [vmem:[#allocation1 + $0x38] sm:$0xff pattern:$0x75316420]
    %1103 = vrot.lane.b32.xlu0 %v1083, 111
    %v1104 = vpop.permute.xlu0 %1103
    %1105 = vrot.lane.b32.xlu0 %v1084, 111
    %v1106 = vpop.permute.xlu0 %1105
    %1107 = vrot.lane.b32.xlu0 %v1085, 111
    %v1108 = vpop.permute.xlu0 %1107
    %1109 = vrot.lane.b32.xlu0 %v1086, 111
    %v1110 = vpop.permute.xlu0 %1109
    %1111 = vrot.lane.b32.xlu0 %v1087, 111
    %v1112 = vpop.permute.xlu0 %1111
    %1113 = vrot.lane.b32.xlu0 %v1088, 111
    %v1114 = vpop.permute.xlu0 %1113
    %1115 = vrot.lane.b32.xlu0 %v1089, 111
    %v1116 = vpop.permute.xlu0 %1115
    %1117 = vrot.lane.b32.xlu0 %v1090, 111
    %v1118 = vpop.permute.xlu0 %1117
    %1119 = vrot.lane.b32.xlu0 %v1095, 111
    %v1120 = vpop.permute.xlu0 %1119
    %1121 = vrot.lane.b32.xlu0 %v1096, 111
    %v1122 = vpop.permute.xlu0 %1121
    %1123 = vrot.lane.b32.xlu0 %v1097, 111
    %v1124 = vpop.permute.xlu0 %1123
    %1125 = vrot.lane.b32.xlu0 %v1098, 111
    %v1126 = vpop.permute.xlu0 %1125
    %1127 = vrot.lane.b32.xlu0 %v1099, 111
    %v1128 = vpop.permute.xlu0 %1127
    %1129 = vrot.lane.b32.xlu0 %v1100, 111
    %v1130 = vpop.permute.xlu0 %1129
    %1131 = vrot.lane.b32.xlu0 %v1101, 111
    %v1132 = vpop.permute.xlu0 %1131
    %1133 = vrot.lane.b32.xlu0 %v1102, 111
    %v1134 = vpop.permute.xlu0 %1133
    %vm1135 = vcmask 908288
    %v1136 = vsel %vm1135, %v1104, %v1106
    %v1137 = vsel %vm1135, %v1106, %v1108
    %v1138 = vsel %vm1135, %v1108, %v1110
    %v1139 = vsel %vm1135, %v1110, %v1112
    %v1140 = vsel %vm1135, %v1112, %v1114
    %v1141 = vsel %vm1135, %v1114, %v1116
    %v1142 = vsel %vm1135, %v1116, %v1118
    %v1143 = vsel %vm1135, %v1118, %v1120
    %v1144 = vsel %vm1135, %v1120, %v1122
    %v1145 = vsel %vm1135, %v1122, %v1124
    %v1146 = vsel %vm1135, %v1124, %v1126
    %v1147 = vsel %vm1135, %v1126, %v1128
    %v1148 = vsel %vm1135, %v1128, %v1130
    %v1149 = vsel %vm1135, %v1130, %v1132
    %v1150 = vsel %vm1135, %v1132, %v1134
    %1167 = vst [vmem:[#allocation1] ss:$2 sm:$0xff] %v92
    %v1168 = vld.sshfl [vmem:[#allocation1] sm:$0xff pattern:$0x75316420]
    %1169 = vrot.lane.b32.xlu0 %v1168, 111
    %v1170 = vpop.permute.xlu0 %1169
    %v1172 = vsel %vm1135, %v1134, %v1170
    %v1173 = vperm.slane %v76, 0
    %v1174 = vperm.slane %v77, 0
    %v1175 = vperm.slane %v78, 0
    %v1176 = vperm.slane %v79, 0
    %v1177 = vperm.slane %v80, 0
    %v1178 = vperm.slane %v81, 0
    %v1179 = vperm.slane %v82, 0
    %v1180 = vperm.slane %v83, 0
    %v1181 = vperm.slane %v84, 0
    %v1182 = vperm.slane %v85, 0
    %v1183 = vperm.slane %v86, 0
    %v1184 = vperm.slane %v87, 0
    %v1185 = vperm.slane %v88, 0
    %v1186 = vperm.slane %v89, 0
    %v1187 = vperm.slane %v90, 0
    %v1188 = vperm.slane %v91, 0
    %v1189 = vmul.f32 %v1136, %v1173
    %v1190 = vmul.f32 %v1137, %v1174
    %v1191 = vmul.f32 %v1138, %v1175
    %v1192 = vmul.f32 %v1139, %v1176
    %v1193 = vmul.f32 %v1140, %v1177
    %v1194 = vmul.f32 %v1141, %v1178
    %v1195 = vmul.f32 %v1142, %v1179
    %v1196 = vmul.f32 %v1143, %v1180
    %v1197 = vmul.f32 %v1144, %v1181
    %v1198 = vmul.f32 %v1145, %v1182
    %v1199 = vmul.f32 %v1146, %v1183
    %v1200 = vmul.f32 %v1147, %v1184
    %v1201 = vmul.f32 %v1148, %v1185
    %v1202 = vmul.f32 %v1149, %v1186
    %v1203 = vmul.f32 %v1150, %v1187
    %v1204 = vmul.f32 %v1172, %v1188
    %v1221 = vrot.slane %v350, 4
    %v1222 = vrot.slane %v351, 4
    %v1223 = vrot.slane %v352, 4
    %v1224 = vrot.slane %v353, 4
    %v1225 = vrot.slane %v354, 4
    %v1226 = vrot.slane %v355, 4
    %v1227 = vrot.slane %v356, 4
    %v1228 = vrot.slane %v357, 4
    %v1229 = vrot.slane %v358, 4
    %v1230 = vrot.slane %v359, 4
    %v1231 = vrot.slane %v360, 4
    %v1232 = vrot.slane %v361, 4
    %v1233 = vrot.slane %v362, 4
    %v1234 = vrot.slane %v363, 4
    %v1235 = vrot.slane %v364, 4
    %v1236 = vrot.slane %v365, 4
    %v1269 = vrot.slane %v608, 4
    %v1270 = vrot.slane %v609, 4
    %v1271 = vrot.slane %v610, 4
    %v1272 = vrot.slane %v611, 4
    %v1273 = vrot.slane %v612, 4
    %v1274 = vrot.slane %v613, 4
    %v1275 = vrot.slane %v614, 4
    %v1276 = vrot.slane %v615, 4
    %v1277 = vrot.slane %v616, 4
    %v1278 = vrot.slane %v617, 4
    %v1279 = vrot.slane %v618, 4
    %v1280 = vrot.slane %v619, 4
    %v1281 = vrot.slane %v620, 4
    %v1282 = vrot.slane %v621, 4
    %v1283 = vrot.slane %v622, 4
    %v1284 = vrot.slane %v623, 4
    %1309 = vst [vmem:[#allocation1] ss:$2 sm:$0xff] %v681
    %s1310 = scalar_lea.vmem [#allocation1], 16
    %1311 = vst [vmem:[%s1310] ss:$2 sm:$0xff] %v682
    %s1312 = scalar_lea.vmem [#allocation1], 32
    %1313 = vst [vmem:[%s1312] ss:$2 sm:$0xff] %v683
    %s1314 = scalar_lea.vmem [#allocation1], 48
    %1315 = vst [vmem:[%s1314] ss:$2 sm:$0xff] %v684
    %v1316 = vld.sshfl [vmem:[#allocation1] sm:$0xff pattern:$0x75316420]
    %v1317 = vld.sshfl [vmem:[#allocation1 + $0x8] sm:$0xff pattern:$0x75316420]
    %v1318 = vld.sshfl [vmem:[#allocation1 + $0x10] sm:$0xff pattern:$0x75316420]
    %v1319 = vld.sshfl [vmem:[#allocation1 + $0x18] sm:$0xff pattern:$0x75316420]
    %v1320 = vld.sshfl [vmem:[#allocation1 + $0x20] sm:$0xff pattern:$0x75316420]
    %v1321 = vld.sshfl [vmem:[#allocation1 + $0x28] sm:$0xff pattern:$0x75316420]
    %v1322 = vld.sshfl [vmem:[#allocation1 + $0x30] sm:$0xff pattern:$0x75316420]
    %v1323 = vld.sshfl [vmem:[#allocation1 + $0x38] sm:$0xff pattern:$0x75316420]
    %1324 = vst [vmem:[#allocation1] ss:$2 sm:$0xff] %v685
    %1325 = vst [vmem:[%s1310] ss:$2 sm:$0xff] %v686
    %1326 = vst [vmem:[%s1312] ss:$2 sm:$0xff] %v687
    %1327 = vst [vmem:[%s1314] ss:$2 sm:$0xff] %v688
    %v1328 = vld.sshfl [vmem:[#allocation1] sm:$0xff pattern:$0x75316420]
    %v1329 = vld.sshfl [vmem:[#allocation1 + $0x8] sm:$0xff pattern:$0x75316420]
    %v1330 = vld.sshfl [vmem:[#allocation1 + $0x10] sm:$0xff pattern:$0x75316420]
    %v1331 = vld.sshfl [vmem:[#allocation1 + $0x18] sm:$0xff pattern:$0x75316420]
    %v1332 = vld.sshfl [vmem:[#allocation1 + $0x20] sm:$0xff pattern:$0x75316420]
    %v1333 = vld.sshfl [vmem:[#allocation1 + $0x28] sm:$0xff pattern:$0x75316420]
    %v1334 = vld.sshfl [vmem:[#allocation1 + $0x30] sm:$0xff pattern:$0x75316420]
    %v1335 = vld.sshfl [vmem:[#allocation1 + $0x38] sm:$0xff pattern:$0x75316420]
    %v1368 = vrot.slane %v802, 4
    %v1369 = vrot.slane %v803, 4
    %v1370 = vrot.slane %v804, 4
    %v1371 = vrot.slane %v805, 4
    %v1372 = vrot.slane %v806, 4
    %v1373 = vrot.slane %v807, 4
    %v1374 = vrot.slane %v808, 4
    %v1375 = vrot.slane %v809, 4
    %v1376 = vrot.slane %v810, 4
    %v1377 = vrot.slane %v811, 4
    %v1378 = vrot.slane %v812, 4
    %v1379 = vrot.slane %v813, 4
    %v1380 = vrot.slane %v814, 4
    %v1381 = vrot.slane %v815, 4
    %v1382 = vrot.slane %v816, 4
    %v1383 = vrot.slane %v817, 4
    %v1416 = vrot.slane %v1060, 4
    %v1417 = vrot.slane %v1061, 4
    %v1418 = vrot.slane %v1062, 4
    %v1419 = vrot.slane %v1063, 4
    %v1420 = vrot.slane %v1064, 4
    %v1421 = vrot.slane %v1065, 4
    %v1422 = vrot.slane %v1066, 4
    %v1423 = vrot.slane %v1067, 4
    %v1424 = vrot.slane %v1068, 4
    %v1425 = vrot.slane %v1069, 4
    %v1426 = vrot.slane %v1070, 4
    %v1427 = vrot.slane %v1071, 4
    %v1428 = vrot.slane %v1072, 4
    %v1429 = vrot.slane %v1073, 4
    %v1430 = vrot.slane %v1074, 4
    %v1431 = vrot.slane %v1075, 4
    %v1448 = vsel %vm664, %v221, %v1221
    %v1449 = vsel %vm664, %v222, %v1222
    %v1450 = vsel %vm664, %v223, %v1223
    %v1451 = vsel %vm664, %v224, %v1224
    %v1452 = vsel %vm664, %v225, %v1225
    %v1453 = vsel %vm664, %v226, %v1226
    %v1454 = vsel %vm664, %v227, %v1227
    %v1455 = vsel %vm664, %v228, %v1228
    %v1456 = vsel %vm664, %v229, %v1229
    %v1457 = vsel %vm664, %v230, %v1230
    %v1458 = vsel %vm664, %v231, %v1231
    %v1459 = vsel %vm664, %v232, %v1232
    %v1460 = vsel %vm664, %v233, %v1233
    %v1461 = vsel %vm664, %v234, %v1234
    %v1462 = vsel %vm664, %v235, %v1235
    %v1463 = vsel %vm664, %v236, %v1236
    %v1464 = vsel %vm664, %v479, %v1269
    %v1465 = vsel %vm664, %v480, %v1270
    %v1466 = vsel %vm664, %v481, %v1271
    %v1467 = vsel %vm664, %v482, %v1272
    %v1468 = vsel %vm664, %v483, %v1273
    %v1469 = vsel %vm664, %v484, %v1274
    %v1470 = vsel %vm664, %v485, %v1275
    %v1471 = vsel %vm664, %v486, %v1276
    %v1472 = vsel %vm664, %v487, %v1277
    %v1473 = vsel %vm664, %v488, %v1278
    %v1474 = vsel %vm664, %v489, %v1279
    %v1475 = vsel %vm664, %v490, %v1280
    %v1476 = vsel %vm664, %v491, %v1281
    %v1477 = vsel %vm664, %v492, %v1282
    %v1478 = vsel %vm664, %v493, %v1283
    %v1479 = vsel %vm664, %v494, %v1284
    %v1480 = vsel %vm664, %v1316, %v1368
    %v1481 = vsel %vm664, %v1317, %v1369
    %v1482 = vsel %vm664, %v1318, %v1370
    %v1483 = vsel %vm664, %v1319, %v1371
    %v1484 = vsel %vm664, %v1320, %v1372
    %v1485 = vsel %vm664, %v1321, %v1373
    %v1486 = vsel %vm664, %v1322, %v1374
    %v1487 = vsel %vm664, %v1323, %v1375
    %v1488 = vsel %vm664, %v1328, %v1376
    %v1489 = vsel %vm664, %v1329, %v1377
    %v1490 = vsel %vm664, %v1330, %v1378
    %v1491 = vsel %vm664, %v1331, %v1379
    %v1492 = vsel %vm664, %v1332, %v1380
    %v1493 = vsel %vm664, %v1333, %v1381
    %v1494 = vsel %vm664, %v1334, %v1382
    %v1495 = vsel %vm664, %v1335, %v1383
    %v1496 = vsel %vm664, %v931, %v1416
    %v1497 = vsel %vm664, %v932, %v1417
    %v1498 = vsel %vm664, %v933, %v1418
    %v1499 = vsel %vm664, %v934, %v1419
    %v1500 = vsel %vm664, %v935, %v1420
    %v1501 = vsel %vm664, %v936, %v1421
    %v1502 = vsel %vm664, %v937, %v1422
    %v1503 = vsel %vm664, %v938, %v1423
    %v1504 = vsel %vm664, %v939, %v1424
    %v1505 = vsel %vm664, %v940, %v1425
    %v1506 = vsel %vm664, %v941, %v1426
    %v1507 = vsel %vm664, %v942, %v1427
    %v1508 = vsel %vm664, %v943, %v1428
    %v1509 = vsel %vm664, %v944, %v1429
    %v1510 = vsel %vm664, %v945, %v1430
    %v1511 = vsel %vm664, %v946, %v1431
    %v1512 = vld [vmem:[%s3] sm:$0xff]
    %v1513 = vld [vmem:[%s4] sm:$0xff]
    %1515 = vset.pattern.permute.xlu0 0
    %1516 = vperm.xlu0 %1515, %v1513
    %v1517 = vpop.permute.xlu0 %1516
    %vm1519 = vcmask 293888
    %v1521 = vsel %vm1519, %v1512, 0
    %v1524 = vsel %vm664, %v1189, 0
    %v1527 = vsel %vm664, %v1190, 0
    %v1530 = vsel %vm664, %v1191, 0
    %v1533 = vsel %vm664, %v1192, 0
    %v1536 = vsel %vm664, %v1193, 0
    %v1539 = vsel %vm664, %v1194, 0
    %v1542 = vsel %vm664, %v1195, 0
    %v1545 = vsel %vm664, %v1196, 0
    %v1548 = vsel %vm664, %v1197, 0
    %v1551 = vsel %vm664, %v1198, 0
    %v1554 = vsel %vm664, %v1199, 0
    %v1557 = vsel %vm664, %v1200, 0
    %v1560 = vsel %vm664, %v1201, 0
    %v1563 = vsel %vm664, %v1202, 0
    %v1566 = vsel %vm664, %v1203, 0
    %v1569 = vsel %vm664, %v1204, 0
    %1571 = vmatpush.msra.mxu0 0.0
    %1572 = vmatpush.msra.mxu0 0.0
    %1573 = vmatpush.msra.mxu0 0.0
    %1574 = vmatpush.msra.mxu0 0.0
    %1575 = vmatpush.msra.mxu0 0.0
    %1576 = vmatpush.msra.mxu0 0.0
    %1577 = vmatpush.msra.mxu0 0.0
    %1578 = vmatpush.msra.mxu0 0.0
    %1579 = vmatpush.msra.mxu0 0.0
    %1580 = vmatpush.msra.mxu0 0.0
    %1581 = vmatpush.msra.mxu0 0.0
    %1582 = vmatpush.msra.mxu0 %v1524
    %1583 = vmatpush.msra.mxu0 %v1496
    %1584 = vmatpush.msra.mxu0 %v1480
    %1585 = vmatpush.msra.mxu0 %v1464
    %1586 = vmatpush.msra.mxu0 %v1448
    %1587 = vmatmul.f32.gmra.mxu0 %v1521
    %v1588 = vpop.f32.mrf.mxu0
    %v1589 = vadd.f32 %v1517, %v1588
    %1590 = vdwg.mxu0
    %1591 = vmatpush.msra.mxu0 0.0
    %1592 = vmatpush.msra.mxu0 0.0
    %1593 = vmatpush.msra.mxu0 0.0
    %1594 = vmatpush.msra.mxu0 0.0
    %1595 = vmatpush.msra.mxu0 0.0
    %1596 = vmatpush.msra.mxu0 0.0
    %1597 = vmatpush.msra.mxu0 0.0
    %1598 = vmatpush.msra.mxu0 0.0
    %1599 = vmatpush.msra.mxu0 0.0
    %1600 = vmatpush.msra.mxu0 0.0
    %1601 = vmatpush.msra.mxu0 0.0
    %1602 = vmatpush.msra.mxu0 %v1527
    %1603 = vmatpush.msra.mxu0 %v1497
    %1604 = vmatpush.msra.mxu0 %v1481
    %1605 = vmatpush.msra.mxu0 %v1465
    %1606 = vmatpush.msra.mxu0 %v1449
    %1607 = vmatmul.f32.gmra.mxu0 %v1521
    %v1608 = vpop.f32.mrf.mxu0
    %v1609 = vadd.f32 %v1517, %v1608
    %1610 = vdwg.mxu0
    %1611 = vmatpush.msra.mxu0 0.0
    %1612 = vmatpush.msra.mxu0 0.0
    %1613 = vmatpush.msra.mxu0 0.0
    %1614 = vmatpush.msra.mxu0 0.0
    %1615 = vmatpush.msra.mxu0 0.0
    %1616 = vmatpush.msra.mxu0 0.0
    %1617 = vmatpush.msra.mxu0 0.0
    %1618 = vmatpush.msra.mxu0 0.0
    %1619 = vmatpush.msra.mxu0 0.0
    %1620 = vmatpush.msra.mxu0 0.0
    %1621 = vmatpush.msra.mxu0 0.0
    %1622 = vmatpush.msra.mxu0 %v1530
    %1623 = vmatpush.msra.mxu0 %v1498
    %1624 = vmatpush.msra.mxu0 %v1482
    %1625 = vmatpush.msra.mxu0 %v1466
    %1626 = vmatpush.msra.mxu0 %v1450
    %1627 = vmatmul.f32.gmra.mxu0 %v1521
    %v1628 = vpop.f32.mrf.mxu0
    %v1629 = vadd.f32 %v1517, %v1628
    %1630 = vdwg.mxu0
    %1631 = vmatpush.msra.mxu0 0.0
    %1632 = vmatpush.msra.mxu0 0.0
    %1633 = vmatpush.msra.mxu0 0.0
    %1634 = vmatpush.msra.mxu0 0.0
    %1635 = vmatpush.msra.mxu0 0.0
    %1636 = vmatpush.msra.mxu0 0.0
    %1637 = vmatpush.msra.mxu0 0.0
    %1638 = vmatpush.msra.mxu0 0.0
    %1639 = vmatpush.msra.mxu0 0.0
    %1640 = vmatpush.msra.mxu0 0.0
    %1641 = vmatpush.msra.mxu0 0.0
    %1642 = vmatpush.msra.mxu0 %v1533
    %1643 = vmatpush.msra.mxu0 %v1499
    %1644 = vmatpush.msra.mxu0 %v1483
    %1645 = vmatpush.msra.mxu0 %v1467
    %1646 = vmatpush.msra.mxu0 %v1451
    %1647 = vmatmul.f32.gmra.mxu0 %v1521
    %v1648 = vpop.f32.mrf.mxu0
    %v1649 = vadd.f32 %v1517, %v1648
    %1650 = vdwg.mxu0
    %1651 = vmatpush.msra.mxu0 0.0
    %1652 = vmatpush.msra.mxu0 0.0
    %1653 = vmatpush.msra.mxu0 0.0
    %1654 = vmatpush.msra.mxu0 0.0
    %1655 = vmatpush.msra.mxu0 0.0
    %1656 = vmatpush.msra.mxu0 0.0
    %1657 = vmatpush.msra.mxu0 0.0
    %1658 = vmatpush.msra.mxu0 0.0
    %1659 = vmatpush.msra.mxu0 0.0
    %1660 = vmatpush.msra.mxu0 0.0
    %1661 = vmatpush.msra.mxu0 0.0
    %1662 = vmatpush.msra.mxu0 %v1536
    %1663 = vmatpush.msra.mxu0 %v1500
    %1664 = vmatpush.msra.mxu0 %v1484
    %1665 = vmatpush.msra.mxu0 %v1468
    %1666 = vmatpush.msra.mxu0 %v1452
    %1667 = vmatmul.f32.gmra.mxu0 %v1521
    %v1668 = vpop.f32.mrf.mxu0
    %v1669 = vadd.f32 %v1517, %v1668
    %1670 = vdwg.mxu0
    %1671 = vmatpush.msra.mxu0 0.0
    %1672 = vmatpush.msra.mxu0 0.0
    %1673 = vmatpush.msra.mxu0 0.0
    %1674 = vmatpush.msra.mxu0 0.0
    %1675 = vmatpush.msra.mxu0 0.0
    %1676 = vmatpush.msra.mxu0 0.0
    %1677 = vmatpush.msra.mxu0 0.0
    %1678 = vmatpush.msra.mxu0 0.0
    %1679 = vmatpush.msra.mxu0 0.0
    %1680 = vmatpush.msra.mxu0 0.0
    %1681 = vmatpush.msra.mxu0 0.0
    %1682 = vmatpush.msra.mxu0 %v1539
    %1683 = vmatpush.msra.mxu0 %v1501
    %1684 = vmatpush.msra.mxu0 %v1485
    %1685 = vmatpush.msra.mxu0 %v1469
    %1686 = vmatpush.msra.mxu0 %v1453
    %1687 = vmatmul.f32.gmra.mxu0 %v1521
    %v1688 = vpop.f32.mrf.mxu0
    %v1689 = vadd.f32 %v1517, %v1688
    %1690 = vdwg.mxu0
    %1691 = vmatpush.msra.mxu0 0.0
    %1692 = vmatpush.msra.mxu0 0.0
    %1693 = vmatpush.msra.mxu0 0.0
    %1694 = vmatpush.msra.mxu0 0.0
    %1695 = vmatpush.msra.mxu0 0.0
    %1696 = vmatpush.msra.mxu0 0.0
    %1697 = vmatpush.msra.mxu0 0.0
    %1698 = vmatpush.msra.mxu0 0.0
    %1699 = vmatpush.msra.mxu0 0.0
    %1700 = vmatpush.msra.mxu0 0.0
    %1701 = vmatpush.msra.mxu0 0.0
    %1702 = vmatpush.msra.mxu0 %v1542
    %1703 = vmatpush.msra.mxu0 %v1502
    %1704 = vmatpush.msra.mxu0 %v1486
    %1705 = vmatpush.msra.mxu0 %v1470
    %1706 = vmatpush.msra.mxu0 %v1454
    %1707 = vmatmul.f32.gmra.mxu0 %v1521
    %v1708 = vpop.f32.mrf.mxu0
    %v1709 = vadd.f32 %v1517, %v1708
    %1710 = vdwg.mxu0
    %1711 = vmatpush.msra.mxu0 0.0
    %1712 = vmatpush.msra.mxu0 0.0
    %1713 = vmatpush.msra.mxu0 0.0
    %1714 = vmatpush.msra.mxu0 0.0
    %1715 = vmatpush.msra.mxu0 0.0
    %1716 = vmatpush.msra.mxu0 0.0
    %1717 = vmatpush.msra.mxu0 0.0
    %1718 = vmatpush.msra.mxu0 0.0
    %1719 = vmatpush.msra.mxu0 0.0
    %1720 = vmatpush.msra.mxu0 0.0
    %1721 = vmatpush.msra.mxu0 0.0
    %1722 = vmatpush.msra.mxu0 %v1545
    %1723 = vmatpush.msra.mxu0 %v1503
    %1724 = vmatpush.msra.mxu0 %v1487
    %1725 = vmatpush.msra.mxu0 %v1471
    %1726 = vmatpush.msra.mxu0 %v1455
    %1727 = vmatmul.f32.gmra.mxu0 %v1521
    %v1728 = vpop.f32.mrf.mxu0
    %v1729 = vadd.f32 %v1517, %v1728
    %1730 = vdwg.mxu0
    %1731 = vmatpush.msra.mxu0 0.0
    %1732 = vmatpush.msra.mxu0 0.0
    %1733 = vmatpush.msra.mxu0 0.0
    %1734 = vmatpush.msra.mxu0 0.0
    %1735 = vmatpush.msra.mxu0 0.0
    %1736 = vmatpush.msra.mxu0 0.0
    %1737 = vmatpush.msra.mxu0 0.0
    %1738 = vmatpush.msra.mxu0 0.0
    %1739 = vmatpush.msra.mxu0 0.0
    %1740 = vmatpush.msra.mxu0 0.0
    %1741 = vmatpush.msra.mxu0 0.0
    %1742 = vmatpush.msra.mxu0 %v1548
    %1743 = vmatpush.msra.mxu0 %v1504
    %1744 = vmatpush.msra.mxu0 %v1488
    %1745 = vmatpush.msra.mxu0 %v1472
    %1746 = vmatpush.msra.mxu0 %v1456
    %1747 = vmatmul.f32.gmra.mxu0 %v1521
    %v1748 = vpop.f32.mrf.mxu0
    %v1749 = vadd.f32 %v1517, %v1748
    %1750 = vdwg.mxu0
    %1751 = vmatpush.msra.mxu0 0.0
    %1752 = vmatpush.msra.mxu0 0.0
    %1753 = vmatpush.msra.mxu0 0.0
    %1754 = vmatpush.msra.mxu0 0.0
    %1755 = vmatpush.msra.mxu0 0.0
    %1756 = vmatpush.msra.mxu0 0.0
    %1757 = vmatpush.msra.mxu0 0.0
    %1758 = vmatpush.msra.mxu0 0.0
    %1759 = vmatpush.msra.mxu0 0.0
    %1760 = vmatpush.msra.mxu0 0.0
    %1761 = vmatpush.msra.mxu0 0.0
    %1762 = vmatpush.msra.mxu0 %v1551
    %1763 = vmatpush.msra.mxu0 %v1505
    %1764 = vmatpush.msra.mxu0 %v1489
    %1765 = vmatpush.msra.mxu0 %v1473
    %1766 = vmatpush.msra.mxu0 %v1457
    %1767 = vmatmul.f32.gmra.mxu0 %v1521
    %v1768 = vpop.f32.mrf.mxu0
    %v1769 = vadd.f32 %v1517, %v1768
    %1770 = vdwg.mxu0
    %1771 = vmatpush.msra.mxu0 0.0
    %1772 = vmatpush.msra.mxu0 0.0
    %1773 = vmatpush.msra.mxu0 0.0
    %1774 = vmatpush.msra.mxu0 0.0
    %1775 = vmatpush.msra.mxu0 0.0
    %1776 = vmatpush.msra.mxu0 0.0
    %1777 = vmatpush.msra.mxu0 0.0
    %1778 = vmatpush.msra.mxu0 0.0
    %1779 = vmatpush.msra.mxu0 0.0
    %1780 = vmatpush.msra.mxu0 0.0
    %1781 = vmatpush.msra.mxu0 0.0
    %1782 = vmatpush.msra.mxu0 %v1554
    %1783 = vmatpush.msra.mxu0 %v1506
    %1784 = vmatpush.msra.mxu0 %v1490
    %1785 = vmatpush.msra.mxu0 %v1474
    %1786 = vmatpush.msra.mxu0 %v1458
    %1787 = vmatmul.f32.gmra.mxu0 %v1521
    %v1788 = vpop.f32.mrf.mxu0
    %v1789 = vadd.f32 %v1517, %v1788
    %1790 = vdwg.mxu0
    %1791 = vmatpush.msra.mxu0 0.0
    %1792 = vmatpush.msra.mxu0 0.0
    %1793 = vmatpush.msra.mxu0 0.0
    %1794 = vmatpush.msra.mxu0 0.0
    %1795 = vmatpush.msra.mxu0 0.0
    %1796 = vmatpush.msra.mxu0 0.0
    %1797 = vmatpush.msra.mxu0 0.0
    %1798 = vmatpush.msra.mxu0 0.0
    %1799 = vmatpush.msra.mxu0 0.0
    %1800 = vmatpush.msra.mxu0 0.0
    %1801 = vmatpush.msra.mxu0 0.0
    %1802 = vmatpush.msra.mxu0 %v1557
    %1803 = vmatpush.msra.mxu0 %v1507
    %1804 = vmatpush.msra.mxu0 %v1491
    %1805 = vmatpush.msra.mxu0 %v1475
    %1806 = vmatpush.msra.mxu0 %v1459
    %1807 = vmatmul.f32.gmra.mxu0 %v1521
    %v1808 = vpop.f32.mrf.mxu0
    %v1809 = vadd.f32 %v1517, %v1808
    %1810 = vdwg.mxu0
    %1811 = vmatpush.msra.mxu0 0.0
    %1812 = vmatpush.msra.mxu0 0.0
    %1813 = vmatpush.msra.mxu0 0.0
    %1814 = vmatpush.msra.mxu0 0.0
    %1815 = vmatpush.msra.mxu0 0.0
    %1816 = vmatpush.msra.mxu0 0.0
    %1817 = vmatpush.msra.mxu0 0.0
    %1818 = vmatpush.msra.mxu0 0.0
    %1819 = vmatpush.msra.mxu0 0.0
    %1820 = vmatpush.msra.mxu0 0.0
    %1821 = vmatpush.msra.mxu0 0.0
    %1822 = vmatpush.msra.mxu0 %v1560
    %1823 = vmatpush.msra.mxu0 %v1508
    %1824 = vmatpush.msra.mxu0 %v1492
    %1825 = vmatpush.msra.mxu0 %v1476
    %1826 = vmatpush.msra.mxu0 %v1460
    %1827 = vmatmul.f32.gmra.mxu0 %v1521
    %v1828 = vpop.f32.mrf.mxu0
    %v1829 = vadd.f32 %v1517, %v1828
    %1830 = vdwg.mxu0
    %1831 = vmatpush.msra.mxu0 0.0
    %1832 = vmatpush.msra.mxu0 0.0
    %1833 = vmatpush.msra.mxu0 0.0
    %1834 = vmatpush.msra.mxu0 0.0
    %1835 = vmatpush.msra.mxu0 0.0
    %1836 = vmatpush.msra.mxu0 0.0
    %1837 = vmatpush.msra.mxu0 0.0
    %1838 = vmatpush.msra.mxu0 0.0
    %1839 = vmatpush.msra.mxu0 0.0
    %1840 = vmatpush.msra.mxu0 0.0
    %1841 = vmatpush.msra.mxu0 0.0
    %1842 = vmatpush.msra.mxu0 %v1563
    %1843 = vmatpush.msra.mxu0 %v1509
    %1844 = vmatpush.msra.mxu0 %v1493
    %1845 = vmatpush.msra.mxu0 %v1477
    %1846 = vmatpush.msra.mxu0 %v1461
    %1847 = vmatmul.f32.gmra.mxu0 %v1521
    %v1848 = vpop.f32.mrf.mxu0
    %v1849 = vadd.f32 %v1517, %v1848
    %1850 = vdwg.mxu0
    %1851 = vmatpush.msra.mxu0 0.0
    %1852 = vmatpush.msra.mxu0 0.0
    %1853 = vmatpush.msra.mxu0 0.0
    %1854 = vmatpush.msra.mxu0 0.0
    %1855 = vmatpush.msra.mxu0 0.0
    %1856 = vmatpush.msra.mxu0 0.0
    %1857 = vmatpush.msra.mxu0 0.0
    %1858 = vmatpush.msra.mxu0 0.0
    %1859 = vmatpush.msra.mxu0 0.0
    %1860 = vmatpush.msra.mxu0 0.0
    %1861 = vmatpush.msra.mxu0 0.0
    %1862 = vmatpush.msra.mxu0 %v1566
    %1863 = vmatpush.msra.mxu0 %v1510
    %1864 = vmatpush.msra.mxu0 %v1494
    %1865 = vmatpush.msra.mxu0 %v1478
    %1866 = vmatpush.msra.mxu0 %v1462
    %1867 = vmatmul.f32.gmra.mxu0 %v1521
    %v1868 = vpop.f32.mrf.mxu0
    %v1869 = vadd.f32 %v1517, %v1868
    %1870 = vdwg.mxu0
    %1871 = vmatpush.msra.mxu0 0.0
    %1872 = vmatpush.msra.mxu0 0.0
    %1873 = vmatpush.msra.mxu0 0.0
    %1874 = vmatpush.msra.mxu0 0.0
    %1875 = vmatpush.msra.mxu0 0.0
    %1876 = vmatpush.msra.mxu0 0.0
    %1877 = vmatpush.msra.mxu0 0.0
    %1878 = vmatpush.msra.mxu0 0.0
    %1879 = vmatpush.msra.mxu0 0.0
    %1880 = vmatpush.msra.mxu0 0.0
    %1881 = vmatpush.msra.mxu0 0.0
    %1882 = vmatpush.msra.mxu0 %v1569
    %1883 = vmatpush.msra.mxu0 %v1511
    %1884 = vmatpush.msra.mxu0 %v1495
    %1885 = vmatpush.msra.mxu0 %v1479
    %1886 = vmatpush.msra.mxu0 %v1463
    %1887 = vmatmul.f32.gmra.mxu0 %v1521
    %v1888 = vpop.f32.mrf.mxu0
    %v1889 = vadd.f32 %v1517, %v1888
    %1890 = vdwg.mxu0
    %v1891 = vmax.f32 %v1589, 0.0
    %v1892 = vmax.f32 %v1609, 0.0
    %v1893 = vmax.f32 %v1629, 0.0
    %v1894 = vmax.f32 %v1649, 0.0
    %v1895 = vmax.f32 %v1669, 0.0
    %v1896 = vmax.f32 %v1689, 0.0
    %v1897 = vmax.f32 %v1709, 0.0
    %v1898 = vmax.f32 %v1729, 0.0
    %v1899 = vmax.f32 %v1749, 0.0
    %v1900 = vmax.f32 %v1769, 0.0
    %v1901 = vmax.f32 %v1789, 0.0
    %v1902 = vmax.f32 %v1809, 0.0
    %v1903 = vmax.f32 %v1829, 0.0
    %v1904 = vmax.f32 %v1849, 0.0
    %v1905 = vmax.f32 %v1869, 0.0
    %v1906 = vmax.f32 %v1889, 0.0
    %1908 = vrot.lane.b32.xlu0 %v1906, 17
    %v1909 = vpop.permute.xlu0 %1908
    %1926 = vrot.lane.b32.xlu0 %v1891, 17
    %v1927 = vpop.permute.xlu0 %1926
    %1928 = vrot.lane.b32.xlu0 %v1892, 17
    %v1929 = vpop.permute.xlu0 %1928
    %1930 = vrot.lane.b32.xlu0 %v1893, 17
    %v1931 = vpop.permute.xlu0 %1930
    %1932 = vrot.lane.b32.xlu0 %v1894, 17
    %v1933 = vpop.permute.xlu0 %1932
    %1934 = vrot.lane.b32.xlu0 %v1895, 17
    %v1935 = vpop.permute.xlu0 %1934
    %1936 = vrot.lane.b32.xlu0 %v1896, 17
    %v1937 = vpop.permute.xlu0 %1936
    %1938 = vrot.lane.b32.xlu0 %v1897, 17
    %v1939 = vpop.permute.xlu0 %1938
    %1940 = vrot.lane.b32.xlu0 %v1898, 17
    %v1941 = vpop.permute.xlu0 %1940
    %1942 = vrot.lane.b32.xlu0 %v1899, 17
    %v1943 = vpop.permute.xlu0 %1942
    %1944 = vrot.lane.b32.xlu0 %v1900, 17
    %v1945 = vpop.permute.xlu0 %1944
    %1946 = vrot.lane.b32.xlu0 %v1901, 17
    %v1947 = vpop.permute.xlu0 %1946
    %1948 = vrot.lane.b32.xlu0 %v1902, 17
    %v1949 = vpop.permute.xlu0 %1948
    %1950 = vrot.lane.b32.xlu0 %v1903, 17
    %v1951 = vpop.permute.xlu0 %1950
    %1952 = vrot.lane.b32.xlu0 %v1904, 17
    %v1953 = vpop.permute.xlu0 %1952
    %1954 = vrot.lane.b32.xlu0 %v1905, 17
    %v1955 = vpop.permute.xlu0 %1954
    %v1956 = vsel %vm172, %v1927, %v1929
    %v1957 = vsel %vm172, %v1929, %v1931
    %v1958 = vsel %vm172, %v1931, %v1933
    %v1959 = vsel %vm172, %v1933, %v1935
    %v1960 = vsel %vm172, %v1935, %v1937
    %v1961 = vsel %vm172, %v1937, %v1939
    %v1962 = vsel %vm172, %v1939, %v1941
    %v1963 = vsel %vm172, %v1941, %v1943
    %v1964 = vsel %vm172, %v1943, %v1945
    %v1965 = vsel %vm172, %v1945, %v1947
    %v1966 = vsel %vm172, %v1947, %v1949
    %v1967 = vsel %vm172, %v1949, %v1951
    %v1968 = vsel %vm172, %v1951, %v1953
    %v1969 = vsel %vm172, %v1953, %v1955
    %v1970 = vsel %vm172, %v1955, %v1909
    %v1987 = vsel %vm172, %v1909, %v1927
    %v1988 = vmul.f32 %v1987, %v205
    %v1989 = vmul.f32 %v1956, %v206
    %v1990 = vmul.f32 %v1957, %v207
    %v1991 = vmul.f32 %v1958, %v208
    %v1992 = vmul.f32 %v1959, %v209
    %v1993 = vmul.f32 %v1960, %v210
    %v1994 = vmul.f32 %v1961, %v211
    %v1995 = vmul.f32 %v1962, %v212
    %v1996 = vmul.f32 %v1963, %v213
    %v1997 = vmul.f32 %v1964, %v214
    %v1998 = vmul.f32 %v1965, %v215
    %v1999 = vmul.f32 %v1966, %v216
    %v2000 = vmul.f32 %v1967, %v217
    %v2001 = vmul.f32 %v1968, %v218
    %v2002 = vmul.f32 %v1969, %v219
    %v2003 = vmul.f32 %v1970, %v220
    %2004 = vrot.lane.b32.xlu0 %v1906, 16
    %v2005 = vpop.permute.xlu0 %2004
    %2007 = vrot.lane.b32.xlu0 %v1891, 16
    %v2008 = vpop.permute.xlu0 %2007
    %2009 = vrot.lane.b32.xlu0 %v1892, 16
    %v2010 = vpop.permute.xlu0 %2009
    %2011 = vrot.lane.b32.xlu0 %v1893, 16
    %v2012 = vpop.permute.xlu0 %2011
    %2013 = vrot.lane.b32.xlu0 %v1894, 16
    %v2014 = vpop.permute.xlu0 %2013
    %2015 = vrot.lane.b32.xlu0 %v1895, 16
    %v2016 = vpop.permute.xlu0 %2015
    %2017 = vrot.lane.b32.xlu0 %v1896, 16
    %v2018 = vpop.permute.xlu0 %2017
    %2019 = vrot.lane.b32.xlu0 %v1897, 16
    %v2020 = vpop.permute.xlu0 %2019
    %2021 = vrot.lane.b32.xlu0 %v1898, 16
    %v2022 = vpop.permute.xlu0 %2021
    %2023 = vrot.lane.b32.xlu0 %v1899, 16
    %v2024 = vpop.permute.xlu0 %2023
    %2025 = vrot.lane.b32.xlu0 %v1900, 16
    %v2026 = vpop.permute.xlu0 %2025
    %2027 = vrot.lane.b32.xlu0 %v1901, 16
    %v2028 = vpop.permute.xlu0 %2027
    %2029 = vrot.lane.b32.xlu0 %v1902, 16
    %v2030 = vpop.permute.xlu0 %2029
    %2031 = vrot.lane.b32.xlu0 %v1903, 16
    %v2032 = vpop.permute.xlu0 %2031
    %2033 = vrot.lane.b32.xlu0 %v1904, 16
    %v2034 = vpop.permute.xlu0 %2033
    %2035 = vrot.lane.b32.xlu0 %v1905, 16
    %v2036 = vpop.permute.xlu0 %2035
    %v2037 = vsel %vm301, %v2008, %v2010
    %v2038 = vsel %vm301, %v2010, %v2012
    %v2039 = vsel %vm301, %v2012, %v2014
    %v2040 = vsel %vm301, %v2014, %v2016
    %v2041 = vsel %vm301, %v2016, %v2018
    %v2042 = vsel %vm301, %v2018, %v2020
    %v2043 = vsel %vm301, %v2020, %v2022
    %v2044 = vsel %vm301, %v2022, %v2024
    %v2045 = vsel %vm301, %v2024, %v2026
    %v2046 = vsel %vm301, %v2026, %v2028
    %v2047 = vsel %vm301, %v2028, %v2030
    %v2048 = vsel %vm301, %v2030, %v2032
    %v2049 = vsel %vm301, %v2032, %v2034
    %v2050 = vsel %vm301, %v2034, %v2036
    %v2051 = vsel %vm301, %v2036, %v2005
    %v2068 = vsel %vm301, %v2005, %v2008
    %v2069 = vmul.f32 %v2068, %v334
    %v2070 = vmul.f32 %v2037, %v335
    %v2071 = vmul.f32 %v2038, %v336
    %v2072 = vmul.f32 %v2039, %v337
    %v2073 = vmul.f32 %v2040, %v338
    %v2074 = vmul.f32 %v2041, %v339
    %v2075 = vmul.f32 %v2042, %v340
    %v2076 = vmul.f32 %v2043, %v341
    %v2077 = vmul.f32 %v2044, %v342
    %v2078 = vmul.f32 %v2045, %v343
    %v2079 = vmul.f32 %v2046, %v344
    %v2080 = vmul.f32 %v2047, %v345
    %v2081 = vmul.f32 %v2048, %v346
    %v2082 = vmul.f32 %v2049, %v347
    %v2083 = vmul.f32 %v2050, %v348
    %v2084 = vmul.f32 %v2051, %v349
    %2085 = vrot.lane.b32.xlu0 %v1906, 15
    %v2086 = vpop.permute.xlu0 %2085
    %2088 = vrot.lane.b32.xlu0 %v1891, 15
    %v2089 = vpop.permute.xlu0 %2088
    %2090 = vrot.lane.b32.xlu0 %v1892, 15
    %v2091 = vpop.permute.xlu0 %2090
    %2092 = vrot.lane.b32.xlu0 %v1893, 15
    %v2093 = vpop.permute.xlu0 %2092
    %2094 = vrot.lane.b32.xlu0 %v1894, 15
    %v2095 = vpop.permute.xlu0 %2094
    %2096 = vrot.lane.b32.xlu0 %v1895, 15
    %v2097 = vpop.permute.xlu0 %2096
    %2098 = vrot.lane.b32.xlu0 %v1896, 15
    %v2099 = vpop.permute.xlu0 %2098
    %2100 = vrot.lane.b32.xlu0 %v1897, 15
    %v2101 = vpop.permute.xlu0 %2100
    %2102 = vrot.lane.b32.xlu0 %v1898, 15
    %v2103 = vpop.permute.xlu0 %2102
    %2104 = vrot.lane.b32.xlu0 %v1899, 15
    %v2105 = vpop.permute.xlu0 %2104
    %2106 = vrot.lane.b32.xlu0 %v1900, 15
    %v2107 = vpop.permute.xlu0 %2106
    %2108 = vrot.lane.b32.xlu0 %v1901, 15
    %v2109 = vpop.permute.xlu0 %2108
    %2110 = vrot.lane.b32.xlu0 %v1902, 15
    %v2111 = vpop.permute.xlu0 %2110
    %2112 = vrot.lane.b32.xlu0 %v1903, 15
    %v2113 = vpop.permute.xlu0 %2112
    %2114 = vrot.lane.b32.xlu0 %v1904, 15
    %v2115 = vpop.permute.xlu0 %2114
    %2116 = vrot.lane.b32.xlu0 %v1905, 15
    %v2117 = vpop.permute.xlu0 %2116
    %v2118 = vsel %vm430, %v2089, %v2091
    %v2119 = vsel %vm430, %v2091, %v2093
    %v2120 = vsel %vm430, %v2093, %v2095
    %v2121 = vsel %vm430, %v2095, %v2097
    %v2122 = vsel %vm430, %v2097, %v2099
    %v2123 = vsel %vm430, %v2099, %v2101
    %v2124 = vsel %vm430, %v2101, %v2103
    %v2125 = vsel %vm430, %v2103, %v2105
    %v2126 = vsel %vm430, %v2105, %v2107
    %v2127 = vsel %vm430, %v2107, %v2109
    %v2128 = vsel %vm430, %v2109, %v2111
    %v2129 = vsel %vm430, %v2111, %v2113
    %v2130 = vsel %vm430, %v2113, %v2115
    %v2131 = vsel %vm430, %v2115, %v2117
    %v2132 = vsel %vm430, %v2117, %v2086
    %v2149 = vsel %vm430, %v2086, %v2089
    %v2150 = vmul.f32 %v2149, %v463
    %v2151 = vmul.f32 %v2118, %v464
    %v2152 = vmul.f32 %v2119, %v465
    %v2153 = vmul.f32 %v2120, %v466
    %v2154 = vmul.f32 %v2121, %v467
    %v2155 = vmul.f32 %v2122, %v468
    %v2156 = vmul.f32 %v2123, %v469
    %v2157 = vmul.f32 %v2124, %v470
    %v2158 = vmul.f32 %v2125, %v471
    %v2159 = vmul.f32 %v2126, %v472
    %v2160 = vmul.f32 %v2127, %v473
    %v2161 = vmul.f32 %v2128, %v474
    %v2162 = vmul.f32 %v2129, %v475
    %v2163 = vmul.f32 %v2130, %v476
    %v2164 = vmul.f32 %v2131, %v477
    %v2165 = vmul.f32 %v2132, %v478
    %2166 = vrot.lane.b32.xlu0 %v1906, 1
    %v2167 = vpop.permute.xlu0 %2166
    %2169 = vrot.lane.b32.xlu0 %v1891, 1
    %v2170 = vpop.permute.xlu0 %2169
    %2171 = vrot.lane.b32.xlu0 %v1892, 1
    %v2172 = vpop.permute.xlu0 %2171
    %2173 = vrot.lane.b32.xlu0 %v1893, 1
    %v2174 = vpop.permute.xlu0 %2173
    %2175 = vrot.lane.b32.xlu0 %v1894, 1
    %v2176 = vpop.permute.xlu0 %2175
    %2177 = vrot.lane.b32.xlu0 %v1895, 1
    %v2178 = vpop.permute.xlu0 %2177
    %2179 = vrot.lane.b32.xlu0 %v1896, 1
    %v2180 = vpop.permute.xlu0 %2179
    %2181 = vrot.lane.b32.xlu0 %v1897, 1
    %v2182 = vpop.permute.xlu0 %2181
    %2183 = vrot.lane.b32.xlu0 %v1898, 1
    %v2184 = vpop.permute.xlu0 %2183
    %2185 = vrot.lane.b32.xlu0 %v1899, 1
    %v2186 = vpop.permute.xlu0 %2185
    %2187 = vrot.lane.b32.xlu0 %v1900, 1
    %v2188 = vpop.permute.xlu0 %2187
    %2189 = vrot.lane.b32.xlu0 %v1901, 1
    %v2190 = vpop.permute.xlu0 %2189
    %2191 = vrot.lane.b32.xlu0 %v1902, 1
    %v2192 = vpop.permute.xlu0 %2191
    %2193 = vrot.lane.b32.xlu0 %v1903, 1
    %v2194 = vpop.permute.xlu0 %2193
    %2195 = vrot.lane.b32.xlu0 %v1904, 1
    %v2196 = vpop.permute.xlu0 %2195
    %2197 = vrot.lane.b32.xlu0 %v1905, 1
    %v2198 = vpop.permute.xlu0 %2197
    %v2199 = vsel %vm559, %v2170, %v2172
    %v2200 = vsel %vm559, %v2172, %v2174
    %v2201 = vsel %vm559, %v2174, %v2176
    %v2202 = vsel %vm559, %v2176, %v2178
    %v2203 = vsel %vm559, %v2178, %v2180
    %v2204 = vsel %vm559, %v2180, %v2182
    %v2205 = vsel %vm559, %v2182, %v2184
    %v2206 = vsel %vm559, %v2184, %v2186
    %v2207 = vsel %vm559, %v2186, %v2188
    %v2208 = vsel %vm559, %v2188, %v2190
    %v2209 = vsel %vm559, %v2190, %v2192
    %v2210 = vsel %vm559, %v2192, %v2194
    %v2211 = vsel %vm559, %v2194, %v2196
    %v2212 = vsel %vm559, %v2196, %v2198
    %v2213 = vsel %vm559, %v2198, %v2167
    %v2230 = vsel %vm559, %v2167, %v2170
    %v2231 = vmul.f32 %v2230, %v592
    %v2232 = vmul.f32 %v2199, %v593
    %v2233 = vmul.f32 %v2200, %v594
    %v2234 = vmul.f32 %v2201, %v595
    %v2235 = vmul.f32 %v2202, %v596
    %v2236 = vmul.f32 %v2203, %v597
    %v2237 = vmul.f32 %v2204, %v598
    %v2238 = vmul.f32 %v2205, %v599
    %v2239 = vmul.f32 %v2206, %v600
    %v2240 = vmul.f32 %v2207, %v601
    %v2241 = vmul.f32 %v2208, %v602
    %v2242 = vmul.f32 %v2209, %v603
    %v2243 = vmul.f32 %v2210, %v604
    %v2244 = vmul.f32 %v2211, %v605
    %v2245 = vmul.f32 %v2212, %v606
    %v2246 = vmul.f32 %v2213, %v607
    %v2247 = vmul.f32 %v1891, %v624
    %v2248 = vmul.f32 %v1892, %v625
    %v2249 = vmul.f32 %v1893, %v626
    %v2250 = vmul.f32 %v1894, %v627
    %v2251 = vmul.f32 %v1895, %v628
    %v2252 = vmul.f32 %v1896, %v629
    %v2253 = vmul.f32 %v1897, %v630
    %v2254 = vmul.f32 %v1898, %v631
    %v2255 = vmul.f32 %v1899, %v632
    %v2256 = vmul.f32 %v1900, %v633
    %v2257 = vmul.f32 %v1901, %v634
    %v2258 = vmul.f32 %v1902, %v635
    %v2259 = vmul.f32 %v1903, %v636
    %v2260 = vmul.f32 %v1904, %v637
    %v2261 = vmul.f32 %v1905, %v638
    %v2262 = vmul.f32 %v1906, %v639
    %2263 = vrot.lane.b32.xlu0 %v1891, 127
    %v2264 = vpop.permute.xlu0 %2263
    %2265 = vrot.lane.b32.xlu0 %v1892, 127
    %v2266 = vpop.permute.xlu0 %2265
    %2267 = vrot.lane.b32.xlu0 %v1893, 127
    %v2268 = vpop.permute.xlu0 %2267
    %2269 = vrot.lane.b32.xlu0 %v1894, 127
    %v2270 = vpop.permute.xlu0 %2269
    %2271 = vrot.lane.b32.xlu0 %v1895, 127
    %v2272 = vpop.permute.xlu0 %2271
    %2273 = vrot.lane.b32.xlu0 %v1896, 127
    %v2274 = vpop.permute.xlu0 %2273
    %2275 = vrot.lane.b32.xlu0 %v1897, 127
    %v2276 = vpop.permute.xlu0 %2275
    %2277 = vrot.lane.b32.xlu0 %v1898, 127
    %v2278 = vpop.permute.xlu0 %2277
    %2279 = vrot.lane.b32.xlu0 %v1899, 127
    %v2280 = vpop.permute.xlu0 %2279
    %2281 = vrot.lane.b32.xlu0 %v1900, 127
    %v2282 = vpop.permute.xlu0 %2281
    %2283 = vrot.lane.b32.xlu0 %v1901, 127
    %v2284 = vpop.permute.xlu0 %2283
    %2285 = vrot.lane.b32.xlu0 %v1902, 127
    %v2286 = vpop.permute.xlu0 %2285
    %2287 = vrot.lane.b32.xlu0 %v1903, 127
    %v2288 = vpop.permute.xlu0 %2287
    %2289 = vrot.lane.b32.xlu0 %v1904, 127
    %v2290 = vpop.permute.xlu0 %2289
    %2291 = vrot.lane.b32.xlu0 %v1905, 127
    %v2292 = vpop.permute.xlu0 %2291
    %2293 = vrot.lane.b32.xlu0 %v1906, 127
    %v2294 = vpop.permute.xlu0 %2293
    %v2295 = vsel %vm748, %v2264, %v2266
    %v2296 = vsel %vm748, %v2266, %v2268
    %v2297 = vsel %vm748, %v2268, %v2270
    %v2298 = vsel %vm748, %v2270, %v2272
    %v2299 = vsel %vm748, %v2272, %v2274
    %v2300 = vsel %vm748, %v2274, %v2276
    %v2301 = vsel %vm748, %v2276, %v2278
    %v2302 = vsel %vm748, %v2278, %v2280
    %v2303 = vsel %vm748, %v2280, %v2282
    %v2304 = vsel %vm748, %v2282, %v2284
    %v2305 = vsel %vm748, %v2284, %v2286
    %v2306 = vsel %vm748, %v2286, %v2288
    %v2307 = vsel %vm748, %v2288, %v2290
    %v2308 = vsel %vm748, %v2290, %v2292
    %v2309 = vsel %vm748, %v2292, %v2294
    %v2327 = vsel %vm748, %v2294, %v2264
    %v2328 = vmul.f32 %v2295, %v786
    %v2329 = vmul.f32 %v2296, %v787
    %v2330 = vmul.f32 %v2297, %v788
    %v2331 = vmul.f32 %v2298, %v789
    %v2332 = vmul.f32 %v2299, %v790
    %v2333 = vmul.f32 %v2300, %v791
    %v2334 = vmul.f32 %v2301, %v792
    %v2335 = vmul.f32 %v2302, %v793
    %v2336 = vmul.f32 %v2303, %v794
    %v2337 = vmul.f32 %v2304, %v795
    %v2338 = vmul.f32 %v2305, %v796
    %v2339 = vmul.f32 %v2306, %v797
    %v2340 = vmul.f32 %v2307, %v798
    %v2341 = vmul.f32 %v2308, %v799
    %v2342 = vmul.f32 %v2309, %v800
    %v2343 = vmul.f32 %v2327, %v801
    %2344 = vrot.lane.b32.xlu0 %v1891, 113
    %v2345 = vpop.permute.xlu0 %2344
    %2346 = vrot.lane.b32.xlu0 %v1892, 113
    %v2347 = vpop.permute.xlu0 %2346
    %2348 = vrot.lane.b32.xlu0 %v1893, 113
    %v2349 = vpop.permute.xlu0 %2348
    %2350 = vrot.lane.b32.xlu0 %v1894, 113
    %v2351 = vpop.permute.xlu0 %2350
    %2352 = vrot.lane.b32.xlu0 %v1895, 113
    %v2353 = vpop.permute.xlu0 %2352
    %2354 = vrot.lane.b32.xlu0 %v1896, 113
    %v2355 = vpop.permute.xlu0 %2354
    %2356 = vrot.lane.b32.xlu0 %v1897, 113
    %v2357 = vpop.permute.xlu0 %2356
    %2358 = vrot.lane.b32.xlu0 %v1898, 113
    %v2359 = vpop.permute.xlu0 %2358
    %2360 = vrot.lane.b32.xlu0 %v1899, 113
    %v2361 = vpop.permute.xlu0 %2360
    %2362 = vrot.lane.b32.xlu0 %v1900, 113
    %v2363 = vpop.permute.xlu0 %2362
    %2364 = vrot.lane.b32.xlu0 %v1901, 113
    %v2365 = vpop.permute.xlu0 %2364
    %2366 = vrot.lane.b32.xlu0 %v1902, 113
    %v2367 = vpop.permute.xlu0 %2366
    %2368 = vrot.lane.b32.xlu0 %v1903, 113
    %v2369 = vpop.permute.xlu0 %2368
    %2370 = vrot.lane.b32.xlu0 %v1904, 113
    %v2371 = vpop.permute.xlu0 %2370
    %2372 = vrot.lane.b32.xlu0 %v1905, 113
    %v2373 = vpop.permute.xlu0 %2372
    %2374 = vrot.lane.b32.xlu0 %v1906, 113
    %v2375 = vpop.permute.xlu0 %2374
    %v2376 = vsel %vm877, %v2345, %v2347
    %v2377 = vsel %vm877, %v2347, %v2349
    %v2378 = vsel %vm877, %v2349, %v2351
    %v2379 = vsel %vm877, %v2351, %v2353
    %v2380 = vsel %vm877, %v2353, %v2355
    %v2381 = vsel %vm877, %v2355, %v2357
    %v2382 = vsel %vm877, %v2357, %v2359
    %v2383 = vsel %vm877, %v2359, %v2361
    %v2384 = vsel %vm877, %v2361, %v2363
    %v2385 = vsel %vm877, %v2363, %v2365
    %v2386 = vsel %vm877, %v2365, %v2367
    %v2387 = vsel %vm877, %v2367, %v2369
    %v2388 = vsel %vm877, %v2369, %v2371
    %v2389 = vsel %vm877, %v2371, %v2373
    %v2390 = vsel %vm877, %v2373, %v2375
    %v2408 = vsel %vm877, %v2375, %v2345
    %v2409 = vmul.f32 %v2376, %v915
    %v2410 = vmul.f32 %v2377, %v916
    %v2411 = vmul.f32 %v2378, %v917
    %v2412 = vmul.f32 %v2379, %v918
    %v2413 = vmul.f32 %v2380, %v919
    %v2414 = vmul.f32 %v2381, %v920
    %v2415 = vmul.f32 %v2382, %v921
    %v2416 = vmul.f32 %v2383, %v922
    %v2417 = vmul.f32 %v2384, %v923
    %v2418 = vmul.f32 %v2385, %v924
    %v2419 = vmul.f32 %v2386, %v925
    %v2420 = vmul.f32 %v2387, %v926
    %v2421 = vmul.f32 %v2388, %v927
    %v2422 = vmul.f32 %v2389, %v928
    %v2423 = vmul.f32 %v2390, %v929
    %v2424 = vmul.f32 %v2408, %v930
    %2425 = vrot.lane.b32.xlu0 %v1891, 112
    %v2426 = vpop.permute.xlu0 %2425
    %2427 = vrot.lane.b32.xlu0 %v1892, 112
    %v2428 = vpop.permute.xlu0 %2427
    %2429 = vrot.lane.b32.xlu0 %v1893, 112
    %v2430 = vpop.permute.xlu0 %2429
    %2431 = vrot.lane.b32.xlu0 %v1894, 112
    %v2432 = vpop.permute.xlu0 %2431
    %2433 = vrot.lane.b32.xlu0 %v1895, 112
    %v2434 = vpop.permute.xlu0 %2433
    %2435 = vrot.lane.b32.xlu0 %v1896, 112
    %v2436 = vpop.permute.xlu0 %2435
    %2437 = vrot.lane.b32.xlu0 %v1897, 112
    %v2438 = vpop.permute.xlu0 %2437
    %2439 = vrot.lane.b32.xlu0 %v1898, 112
    %v2440 = vpop.permute.xlu0 %2439
    %2441 = vrot.lane.b32.xlu0 %v1899, 112
    %v2442 = vpop.permute.xlu0 %2441
    %2443 = vrot.lane.b32.xlu0 %v1900, 112
    %v2444 = vpop.permute.xlu0 %2443
    %2445 = vrot.lane.b32.xlu0 %v1901, 112
    %v2446 = vpop.permute.xlu0 %2445
    %2447 = vrot.lane.b32.xlu0 %v1902, 112
    %v2448 = vpop.permute.xlu0 %2447
    %2449 = vrot.lane.b32.xlu0 %v1903, 112
    %v2450 = vpop.permute.xlu0 %2449
    %2451 = vrot.lane.b32.xlu0 %v1904, 112
    %v2452 = vpop.permute.xlu0 %2451
    %2453 = vrot.lane.b32.xlu0 %v1905, 112
    %v2454 = vpop.permute.xlu0 %2453
    %2455 = vrot.lane.b32.xlu0 %v1906, 112
    %v2456 = vpop.permute.xlu0 %2455
    %v2457 = vsel %vm1006, %v2426, %v2428
    %v2458 = vsel %vm1006, %v2428, %v2430
    %v2459 = vsel %vm1006, %v2430, %v2432
    %v2460 = vsel %vm1006, %v2432, %v2434
    %v2461 = vsel %vm1006, %v2434, %v2436
    %v2462 = vsel %vm1006, %v2436, %v2438
    %v2463 = vsel %vm1006, %v2438, %v2440
    %v2464 = vsel %vm1006, %v2440, %v2442
    %v2465 = vsel %vm1006, %v2442, %v2444
    %v2466 = vsel %vm1006, %v2444, %v2446
    %v2467 = vsel %vm1006, %v2446, %v2448
    %v2468 = vsel %vm1006, %v2448, %v2450
    %v2469 = vsel %vm1006, %v2450, %v2452
    %v2470 = vsel %vm1006, %v2452, %v2454
    %v2471 = vsel %vm1006, %v2454, %v2456
    %v2489 = vsel %vm1006, %v2456, %v2426
    %v2490 = vmul.f32 %v2457, %v1044
    %v2491 = vmul.f32 %v2458, %v1045
    %v2492 = vmul.f32 %v2459, %v1046
    %v2493 = vmul.f32 %v2460, %v1047
    %v2494 = vmul.f32 %v2461, %v1048
    %v2495 = vmul.f32 %v2462, %v1049
    %v2496 = vmul.f32 %v2463, %v1050
    %v2497 = vmul.f32 %v2464, %v1051
    %v2498 = vmul.f32 %v2465, %v1052
    %v2499 = vmul.f32 %v2466, %v1053
    %v2500 = vmul.f32 %v2467, %v1054
    %v2501 = vmul.f32 %v2468, %v1055
    %v2502 = vmul.f32 %v2469, %v1056
    %v2503 = vmul.f32 %v2470, %v1057
    %v2504 = vmul.f32 %v2471, %v1058
    %v2505 = vmul.f32 %v2489, %v1059
    %2506 = vrot.lane.b32.xlu0 %v1891, 111
    %v2507 = vpop.permute.xlu0 %2506
    %2508 = vrot.lane.b32.xlu0 %v1892, 111
    %v2509 = vpop.permute.xlu0 %2508
    %2510 = vrot.lane.b32.xlu0 %v1893, 111
    %v2511 = vpop.permute.xlu0 %2510
    %2512 = vrot.lane.b32.xlu0 %v1894, 111
    %v2513 = vpop.permute.xlu0 %2512
    %2514 = vrot.lane.b32.xlu0 %v1895, 111
    %v2515 = vpop.permute.xlu0 %2514
    %2516 = vrot.lane.b32.xlu0 %v1896, 111
    %v2517 = vpop.permute.xlu0 %2516
    %2518 = vrot.lane.b32.xlu0 %v1897, 111
    %v2519 = vpop.permute.xlu0 %2518
    %2520 = vrot.lane.b32.xlu0 %v1898, 111
    %v2521 = vpop.permute.xlu0 %2520
    %2522 = vrot.lane.b32.xlu0 %v1899, 111
    %v2523 = vpop.permute.xlu0 %2522
    %2524 = vrot.lane.b32.xlu0 %v1900, 111
    %v2525 = vpop.permute.xlu0 %2524
    %2526 = vrot.lane.b32.xlu0 %v1901, 111
    %v2527 = vpop.permute.xlu0 %2526
    %2528 = vrot.lane.b32.xlu0 %v1902, 111
    %v2529 = vpop.permute.xlu0 %2528
    %2530 = vrot.lane.b32.xlu0 %v1903, 111
    %v2531 = vpop.permute.xlu0 %2530
    %2532 = vrot.lane.b32.xlu0 %v1904, 111
    %v2533 = vpop.permute.xlu0 %2532
    %2534 = vrot.lane.b32.xlu0 %v1905, 111
    %v2535 = vpop.permute.xlu0 %2534
    %2536 = vrot.lane.b32.xlu0 %v1906, 111
    %v2537 = vpop.permute.xlu0 %2536
    %v2538 = vsel %vm1135, %v2507, %v2509
    %v2539 = vsel %vm1135, %v2509, %v2511
    %v2540 = vsel %vm1135, %v2511, %v2513
    %v2541 = vsel %vm1135, %v2513, %v2515
    %v2542 = vsel %vm1135, %v2515, %v2517
    %v2543 = vsel %vm1135, %v2517, %v2519
    %v2544 = vsel %vm1135, %v2519, %v2521
    %v2545 = vsel %vm1135, %v2521, %v2523
    %v2546 = vsel %vm1135, %v2523, %v2525
    %v2547 = vsel %vm1135, %v2525, %v2527
    %v2548 = vsel %vm1135, %v2527, %v2529
    %v2549 = vsel %vm1135, %v2529, %v2531
    %v2550 = vsel %vm1135, %v2531, %v2533
    %v2551 = vsel %vm1135, %v2533, %v2535
    %v2552 = vsel %vm1135, %v2535, %v2537
    %v2570 = vsel %vm1135, %v2537, %v2507
    %v2571 = vmul.f32 %v2538, %v1173
    %v2572 = vmul.f32 %v2539, %v1174
    %v2573 = vmul.f32 %v2540, %v1175
    %v2574 = vmul.f32 %v2541, %v1176
    %v2575 = vmul.f32 %v2542, %v1177
    %v2576 = vmul.f32 %v2543, %v1178
    %v2577 = vmul.f32 %v2544, %v1179
    %v2578 = vmul.f32 %v2545, %v1180
    %v2579 = vmul.f32 %v2546, %v1181
    %v2580 = vmul.f32 %v2547, %v1182
    %v2581 = vmul.f32 %v2548, %v1183
    %v2582 = vmul.f32 %v2549, %v1184
    %v2583 = vmul.f32 %v2550, %v1185
    %v2584 = vmul.f32 %v2551, %v1186
    %v2585 = vmul.f32 %v2552, %v1187
    %v2586 = vmul.f32 %v2570, %v1188
    %v2587 = vld [vmem:[%s5] sm:$0xff]
    %v2588 = vld [vmem:[%s6] sm:$0xff]
    %2590 = vset.pattern.permute.xlu0 0
    %2591 = vperm.xlu0 %2590, %v2588
    %v2592 = vpop.permute.xlu0 %2591
    %vm2594 = vcmask 588800
    %v2596 = vsel %vm2594, %v2587, 0
    %2598 = vmatpush.msra.mxu0 0.0
    %2599 = vmatpush.msra.mxu0 0.0
    %2600 = vmatpush.msra.mxu0 0.0
    %2601 = vmatpush.msra.mxu0 0.0
    %2602 = vmatpush.msra.mxu0 0.0
    %2603 = vmatpush.msra.mxu0 0.0
    %2604 = vmatpush.msra.mxu0 0.0
    %2605 = vmatpush.msra.mxu0 %v2571
    %2606 = vmatpush.msra.mxu0 %v2490
    %2607 = vmatpush.msra.mxu0 %v2409
    %2608 = vmatpush.msra.mxu0 %v2328
    %2609 = vmatpush.msra.mxu0 %v2247
    %2610 = vmatpush.msra.mxu0 %v2231
    %2611 = vmatpush.msra.mxu0 %v2150
    %2612 = vmatpush.msra.mxu0 %v2069
    %2613 = vmatpush.msra.mxu0 %v1988
    %2614 = vmatmul.f32.gmra.mxu0 %v2596
    %v2615 = vpop.f32.mrf.mxu0
    %v2616 = vadd.f32 %v2592, %v2615
    %2617 = vdwg.mxu0
    %2618 = vmatpush.msra.mxu0 0.0
    %2619 = vmatpush.msra.mxu0 0.0
    %2620 = vmatpush.msra.mxu0 0.0
    %2621 = vmatpush.msra.mxu0 0.0
    %2622 = vmatpush.msra.mxu0 0.0
    %2623 = vmatpush.msra.mxu0 0.0
    %2624 = vmatpush.msra.mxu0 0.0
    %2625 = vmatpush.msra.mxu0 %v2572
    %2626 = vmatpush.msra.mxu0 %v2491
    %2627 = vmatpush.msra.mxu0 %v2410
    %2628 = vmatpush.msra.mxu0 %v2329
    %2629 = vmatpush.msra.mxu0 %v2248
    %2630 = vmatpush.msra.mxu0 %v2232
    %2631 = vmatpush.msra.mxu0 %v2151
    %2632 = vmatpush.msra.mxu0 %v2070
    %2633 = vmatpush.msra.mxu0 %v1989
    %2634 = vmatmul.f32.gmra.mxu0 %v2596
    %v2635 = vpop.f32.mrf.mxu0
    %v2636 = vadd.f32 %v2592, %v2635
    %2637 = vdwg.mxu0
    %2638 = vmatpush.msra.mxu0 0.0
    %2639 = vmatpush.msra.mxu0 0.0
    %2640 = vmatpush.msra.mxu0 0.0
    %2641 = vmatpush.msra.mxu0 0.0
    %2642 = vmatpush.msra.mxu0 0.0
    %2643 = vmatpush.msra.mxu0 0.0
    %2644 = vmatpush.msra.mxu0 0.0
    %2645 = vmatpush.msra.mxu0 %v2573
    %2646 = vmatpush.msra.mxu0 %v2492
    %2647 = vmatpush.msra.mxu0 %v2411
    %2648 = vmatpush.msra.mxu0 %v2330
    %2649 = vmatpush.msra.mxu0 %v2249
    %2650 = vmatpush.msra.mxu0 %v2233
    %2651 = vmatpush.msra.mxu0 %v2152
    %2652 = vmatpush.msra.mxu0 %v2071
    %2653 = vmatpush.msra.mxu0 %v1990
    %2654 = vmatmul.f32.gmra.mxu0 %v2596
    %v2655 = vpop.f32.mrf.mxu0
    %v2656 = vadd.f32 %v2592, %v2655
    %2657 = vdwg.mxu0
    %2658 = vmatpush.msra.mxu0 0.0
    %2659 = vmatpush.msra.mxu0 0.0
    %2660 = vmatpush.msra.mxu0 0.0
    %2661 = vmatpush.msra.mxu0 0.0
    %2662 = vmatpush.msra.mxu0 0.0
    %2663 = vmatpush.msra.mxu0 0.0
    %2664 = vmatpush.msra.mxu0 0.0
    %2665 = vmatpush.msra.mxu0 %v2574
    %2666 = vmatpush.msra.mxu0 %v2493
    %2667 = vmatpush.msra.mxu0 %v2412
    %2668 = vmatpush.msra.mxu0 %v2331
    %2669 = vmatpush.msra.mxu0 %v2250
    %2670 = vmatpush.msra.mxu0 %v2234
    %2671 = vmatpush.msra.mxu0 %v2153
    %2672 = vmatpush.msra.mxu0 %v2072
    %2673 = vmatpush.msra.mxu0 %v1991
    %2674 = vmatmul.f32.gmra.mxu0 %v2596
    %v2675 = vpop.f32.mrf.mxu0
    %v2676 = vadd.f32 %v2592, %v2675
    %2677 = vdwg.mxu0
    %2678 = vmatpush.msra.mxu0 0.0
    %2679 = vmatpush.msra.mxu0 0.0
    %2680 = vmatpush.msra.mxu0 0.0
    %2681 = vmatpush.msra.mxu0 0.0
    %2682 = vmatpush.msra.mxu0 0.0
    %2683 = vmatpush.msra.mxu0 0.0
    %2684 = vmatpush.msra.mxu0 0.0
    %2685 = vmatpush.msra.mxu0 %v2575
    %2686 = vmatpush.msra.mxu0 %v2494
    %2687 = vmatpush.msra.mxu0 %v2413
    %2688 = vmatpush.msra.mxu0 %v2332
    %2689 = vmatpush.msra.mxu0 %v2251
    %2690 = vmatpush.msra.mxu0 %v2235
    %2691 = vmatpush.msra.mxu0 %v2154
    %2692 = vmatpush.msra.mxu0 %v2073
    %2693 = vmatpush.msra.mxu0 %v1992
    %2694 = vmatmul.f32.gmra.mxu0 %v2596
    %v2695 = vpop.f32.mrf.mxu0
    %v2696 = vadd.f32 %v2592, %v2695
    %2697 = vdwg.mxu0
    %2698 = vmatpush.msra.mxu0 0.0
    %2699 = vmatpush.msra.mxu0 0.0
    %2700 = vmatpush.msra.mxu0 0.0
    %2701 = vmatpush.msra.mxu0 0.0
    %2702 = vmatpush.msra.mxu0 0.0
    %2703 = vmatpush.msra.mxu0 0.0
    %2704 = vmatpush.msra.mxu0 0.0
    %2705 = vmatpush.msra.mxu0 %v2576
    %2706 = vmatpush.msra.mxu0 %v2495
    %2707 = vmatpush.msra.mxu0 %v2414
    %2708 = vmatpush.msra.mxu0 %v2333
    %2709 = vmatpush.msra.mxu0 %v2252
    %2710 = vmatpush.msra.mxu0 %v2236
    %2711 = vmatpush.msra.mxu0 %v2155
    %2712 = vmatpush.msra.mxu0 %v2074
    %2713 = vmatpush.msra.mxu0 %v1993
    %2714 = vmatmul.f32.gmra.mxu0 %v2596
    %v2715 = vpop.f32.mrf.mxu0
    %v2716 = vadd.f32 %v2592, %v2715
    %2717 = vdwg.mxu0
    %2718 = vmatpush.msra.mxu0 0.0
    %2719 = vmatpush.msra.mxu0 0.0
    %2720 = vmatpush.msra.mxu0 0.0
    %2721 = vmatpush.msra.mxu0 0.0
    %2722 = vmatpush.msra.mxu0 0.0
    %2723 = vmatpush.msra.mxu0 0.0
    %2724 = vmatpush.msra.mxu0 0.0
    %2725 = vmatpush.msra.mxu0 %v2577
    %2726 = vmatpush.msra.mxu0 %v2496
    %2727 = vmatpush.msra.mxu0 %v2415
    %2728 = vmatpush.msra.mxu0 %v2334
    %2729 = vmatpush.msra.mxu0 %v2253
    %2730 = vmatpush.msra.mxu0 %v2237
    %2731 = vmatpush.msra.mxu0 %v2156
    %2732 = vmatpush.msra.mxu0 %v2075
    %2733 = vmatpush.msra.mxu0 %v1994
    %2734 = vmatmul.f32.gmra.mxu0 %v2596
    %v2735 = vpop.f32.mrf.mxu0
    %v2736 = vadd.f32 %v2592, %v2735
    %2737 = vdwg.mxu0
    %2738 = vmatpush.msra.mxu0 0.0
    %2739 = vmatpush.msra.mxu0 0.0
    %2740 = vmatpush.msra.mxu0 0.0
    %2741 = vmatpush.msra.mxu0 0.0
    %2742 = vmatpush.msra.mxu0 0.0
    %2743 = vmatpush.msra.mxu0 0.0
    %2744 = vmatpush.msra.mxu0 0.0
    %2745 = vmatpush.msra.mxu0 %v2578
    %2746 = vmatpush.msra.mxu0 %v2497
    %2747 = vmatpush.msra.mxu0 %v2416
    %2748 = vmatpush.msra.mxu0 %v2335
    %2749 = vmatpush.msra.mxu0 %v2254
    %2750 = vmatpush.msra.mxu0 %v2238
    %2751 = vmatpush.msra.mxu0 %v2157
    %2752 = vmatpush.msra.mxu0 %v2076
    %2753 = vmatpush.msra.mxu0 %v1995
    %2754 = vmatmul.f32.gmra.mxu0 %v2596
    %v2755 = vpop.f32.mrf.mxu0
    %v2756 = vadd.f32 %v2592, %v2755
    %2757 = vdwg.mxu0
    %2758 = vmatpush.msra.mxu0 0.0
    %2759 = vmatpush.msra.mxu0 0.0
    %2760 = vmatpush.msra.mxu0 0.0
    %2761 = vmatpush.msra.mxu0 0.0
    %2762 = vmatpush.msra.mxu0 0.0
    %2763 = vmatpush.msra.mxu0 0.0
    %2764 = vmatpush.msra.mxu0 0.0
    %2765 = vmatpush.msra.mxu0 %v2579
    %2766 = vmatpush.msra.mxu0 %v2498
    %2767 = vmatpush.msra.mxu0 %v2417
    %2768 = vmatpush.msra.mxu0 %v2336
    %2769 = vmatpush.msra.mxu0 %v2255
    %2770 = vmatpush.msra.mxu0 %v2239
    %2771 = vmatpush.msra.mxu0 %v2158
    %2772 = vmatpush.msra.mxu0 %v2077
    %2773 = vmatpush.msra.mxu0 %v1996
    %2774 = vmatmul.f32.gmra.mxu0 %v2596
    %v2775 = vpop.f32.mrf.mxu0
    %v2776 = vadd.f32 %v2592, %v2775
    %2777 = vdwg.mxu0
    %2778 = vmatpush.msra.mxu0 0.0
    %2779 = vmatpush.msra.mxu0 0.0
    %2780 = vmatpush.msra.mxu0 0.0
    %2781 = vmatpush.msra.mxu0 0.0
    %2782 = vmatpush.msra.mxu0 0.0
    %2783 = vmatpush.msra.mxu0 0.0
    %2784 = vmatpush.msra.mxu0 0.0
    %2785 = vmatpush.msra.mxu0 %v2580
    %2786 = vmatpush.msra.mxu0 %v2499
    %2787 = vmatpush.msra.mxu0 %v2418
    %2788 = vmatpush.msra.mxu0 %v2337
    %2789 = vmatpush.msra.mxu0 %v2256
    %2790 = vmatpush.msra.mxu0 %v2240
    %2791 = vmatpush.msra.mxu0 %v2159
    %2792 = vmatpush.msra.mxu0 %v2078
    %2793 = vmatpush.msra.mxu0 %v1997
    %2794 = vmatmul.f32.gmra.mxu0 %v2596
    %v2795 = vpop.f32.mrf.mxu0
    %v2796 = vadd.f32 %v2592, %v2795
    %2797 = vdwg.mxu0
    %2798 = vmatpush.msra.mxu0 0.0
    %2799 = vmatpush.msra.mxu0 0.0
    %2800 = vmatpush.msra.mxu0 0.0
    %2801 = vmatpush.msra.mxu0 0.0
    %2802 = vmatpush.msra.mxu0 0.0
    %2803 = vmatpush.msra.mxu0 0.0
    %2804 = vmatpush.msra.mxu0 0.0
    %2805 = vmatpush.msra.mxu0 %v2581
    %2806 = vmatpush.msra.mxu0 %v2500
    %2807 = vmatpush.msra.mxu0 %v2419
    %2808 = vmatpush.msra.mxu0 %v2338
    %2809 = vmatpush.msra.mxu0 %v2257
    %2810 = vmatpush.msra.mxu0 %v2241
    %2811 = vmatpush.msra.mxu0 %v2160
    %2812 = vmatpush.msra.mxu0 %v2079
    %2813 = vmatpush.msra.mxu0 %v1998
    %2814 = vmatmul.f32.gmra.mxu0 %v2596
    %v2815 = vpop.f32.mrf.mxu0
    %v2816 = vadd.f32 %v2592, %v2815
    %2817 = vdwg.mxu0
    %2818 = vmatpush.msra.mxu0 0.0
    %2819 = vmatpush.msra.mxu0 0.0
    %2820 = vmatpush.msra.mxu0 0.0
    %2821 = vmatpush.msra.mxu0 0.0
    %2822 = vmatpush.msra.mxu0 0.0
    %2823 = vmatpush.msra.mxu0 0.0
    %2824 = vmatpush.msra.mxu0 0.0
    %2825 = vmatpush.msra.mxu0 %v2582
    %2826 = vmatpush.msra.mxu0 %v2501
    %2827 = vmatpush.msra.mxu0 %v2420
    %2828 = vmatpush.msra.mxu0 %v2339
    %2829 = vmatpush.msra.mxu0 %v2258
    %2830 = vmatpush.msra.mxu0 %v2242
    %2831 = vmatpush.msra.mxu0 %v2161
    %2832 = vmatpush.msra.mxu0 %v2080
    %2833 = vmatpush.msra.mxu0 %v1999
    %2834 = vmatmul.f32.gmra.mxu0 %v2596
    %v2835 = vpop.f32.mrf.mxu0
    %v2836 = vadd.f32 %v2592, %v2835
    %2837 = vdwg.mxu0
    %2838 = vmatpush.msra.mxu0 0.0
    %2839 = vmatpush.msra.mxu0 0.0
    %2840 = vmatpush.msra.mxu0 0.0
    %2841 = vmatpush.msra.mxu0 0.0
    %2842 = vmatpush.msra.mxu0 0.0
    %2843 = vmatpush.msra.mxu0 0.0
    %2844 = vmatpush.msra.mxu0 0.0
    %2845 = vmatpush.msra.mxu0 %v2583
    %2846 = vmatpush.msra.mxu0 %v2502
    %2847 = vmatpush.msra.mxu0 %v2421
    %2848 = vmatpush.msra.mxu0 %v2340
    %2849 = vmatpush.msra.mxu0 %v2259
    %2850 = vmatpush.msra.mxu0 %v2243
    %2851 = vmatpush.msra.mxu0 %v2162
    %2852 = vmatpush.msra.mxu0 %v2081
    %2853 = vmatpush.msra.mxu0 %v2000
    %2854 = vmatmul.f32.gmra.mxu0 %v2596
    %v2855 = vpop.f32.mrf.mxu0
    %v2856 = vadd.f32 %v2592, %v2855
    %2857 = vdwg.mxu0
    %2858 = vmatpush.msra.mxu0 0.0
    %2859 = vmatpush.msra.mxu0 0.0
    %2860 = vmatpush.msra.mxu0 0.0
    %2861 = vmatpush.msra.mxu0 0.0
    %2862 = vmatpush.msra.mxu0 0.0
    %2863 = vmatpush.msra.mxu0 0.0
    %2864 = vmatpush.msra.mxu0 0.0
    %2865 = vmatpush.msra.mxu0 %v2584
    %2866 = vmatpush.msra.mxu0 %v2503
    %2867 = vmatpush.msra.mxu0 %v2422
    %2868 = vmatpush.msra.mxu0 %v2341
    %2869 = vmatpush.msra.mxu0 %v2260
    %2870 = vmatpush.msra.mxu0 %v2244
    %2871 = vmatpush.msra.mxu0 %v2163
    %2872 = vmatpush.msra.mxu0 %v2082
    %2873 = vmatpush.msra.mxu0 %v2001
    %2874 = vmatmul.f32.gmra.mxu0 %v2596
    %v2875 = vpop.f32.mrf.mxu0
    %v2876 = vadd.f32 %v2592, %v2875
    %2877 = vdwg.mxu0
    %2878 = vmatpush.msra.mxu0 0.0
    %2879 = vmatpush.msra.mxu0 0.0
    %2880 = vmatpush.msra.mxu0 0.0
    %2881 = vmatpush.msra.mxu0 0.0
    %2882 = vmatpush.msra.mxu0 0.0
    %2883 = vmatpush.msra.mxu0 0.0
    %2884 = vmatpush.msra.mxu0 0.0
    %2885 = vmatpush.msra.mxu0 %v2585
    %2886 = vmatpush.msra.mxu0 %v2504
    %2887 = vmatpush.msra.mxu0 %v2423
    %2888 = vmatpush.msra.mxu0 %v2342
    %2889 = vmatpush.msra.mxu0 %v2261
    %2890 = vmatpush.msra.mxu0 %v2245
    %2891 = vmatpush.msra.mxu0 %v2164
    %2892 = vmatpush.msra.mxu0 %v2083
    %2893 = vmatpush.msra.mxu0 %v2002
    %2894 = vmatmul.f32.gmra.mxu0 %v2596
    %v2895 = vpop.f32.mrf.mxu0
    %v2896 = vadd.f32 %v2592, %v2895
    %2897 = vdwg.mxu0
    %2898 = vmatpush.msra.mxu0 0.0
    %2899 = vmatpush.msra.mxu0 0.0
    %2900 = vmatpush.msra.mxu0 0.0
    %2901 = vmatpush.msra.mxu0 0.0
    %2902 = vmatpush.msra.mxu0 0.0
    %2903 = vmatpush.msra.mxu0 0.0
    %2904 = vmatpush.msra.mxu0 0.0
    %2905 = vmatpush.msra.mxu0 %v2586
    %2906 = vmatpush.msra.mxu0 %v2505
    %2907 = vmatpush.msra.mxu0 %v2424
    %2908 = vmatpush.msra.mxu0 %v2343
    %2909 = vmatpush.msra.mxu0 %v2262
    %2910 = vmatpush.msra.mxu0 %v2246
    %2911 = vmatpush.msra.mxu0 %v2165
    %2912 = vmatpush.msra.mxu0 %v2084
    %2913 = vmatpush.msra.mxu0 %v2003
    %2914 = vmatmul.f32.gmra.mxu0 %v2596
    %v2915 = vpop.f32.mrf.mxu0
    %v2916 = vadd.f32 %v2592, %v2915
    %2917 = vdwg.mxu0
    %v2918 = vmax.f32 %v2616, 0.0
    %v2919 = vmax.f32 %v2636, 0.0
    %v2920 = vmax.f32 %v2656, 0.0
    %v2921 = vmax.f32 %v2676, 0.0
    %v2922 = vmax.f32 %v2696, 0.0
    %v2923 = vmax.f32 %v2716, 0.0
    %v2924 = vmax.f32 %v2736, 0.0
    %v2925 = vmax.f32 %v2756, 0.0
    %v2926 = vmax.f32 %v2776, 0.0
    %v2927 = vmax.f32 %v2796, 0.0
    %v2928 = vmax.f32 %v2816, 0.0
    %v2929 = vmax.f32 %v2836, 0.0
    %v2930 = vmax.f32 %v2856, 0.0
    %v2931 = vmax.f32 %v2876, 0.0
    %v2932 = vmax.f32 %v2896, 0.0
    %v2933 = vmax.f32 %v2916, 0.0
    %v2936 = vrot.slane %v2919, 4
    %v2937 = vsel %vm664, %v2918, %v2936
    %v2938 = vsel %vm664, %v2936, %v2918
    %v2939 = vrot.slane %v2938, 4
    %v2943 = vunpack.c.l.s4 1935823168
    %v2944 = vunpack.c.0.s8 %v2943
    %v2945 = vperm.slane %v2937, %v2944
    %v2947 = vunpack.c.l.s4 1935823168
    %v2948 = vunpack.c.0.s8 %v2947
    %v2949 = vperm.slane %v2939, %v2948
    %v2952 = vrot.slane %v2921, 4
    %v2953 = vsel %vm664, %v2920, %v2952
    %v2954 = vsel %vm664, %v2952, %v2920
    %v2955 = vrot.slane %v2954, 4
    %v2959 = vunpack.c.l.s4 1935823168
    %v2960 = vunpack.c.0.s8 %v2959
    %v2961 = vperm.slane %v2953, %v2960
    %v2963 = vunpack.c.l.s4 1935823168
    %v2964 = vunpack.c.0.s8 %v2963
    %v2965 = vperm.slane %v2955, %v2964
    %v2968 = vrot.slane %v2923, 4
    %v2969 = vsel %vm664, %v2922, %v2968
    %v2970 = vsel %vm664, %v2968, %v2922
    %v2971 = vrot.slane %v2970, 4
    %v2975 = vunpack.c.l.s4 1935823168
    %v2976 = vunpack.c.0.s8 %v2975
    %v2977 = vperm.slane %v2969, %v2976
    %v2979 = vunpack.c.l.s4 1935823168
    %v2980 = vunpack.c.0.s8 %v2979
    %v2981 = vperm.slane %v2971, %v2980
    %v2984 = vrot.slane %v2925, 4
    %v2985 = vsel %vm664, %v2924, %v2984
    %v2986 = vsel %vm664, %v2984, %v2924
    %v2987 = vrot.slane %v2986, 4
    %v2991 = vunpack.c.l.s4 1935823168
    %v2992 = vunpack.c.0.s8 %v2991
    %v2993 = vperm.slane %v2985, %v2992
    %v2995 = vunpack.c.l.s4 1935823168
    %v2996 = vunpack.c.0.s8 %v2995
    %v2997 = vperm.slane %v2987, %v2996
    %v3000 = vrot.slane %v2927, 4
    %v3001 = vsel %vm664, %v2926, %v3000
    %v3002 = vsel %vm664, %v3000, %v2926
    %v3003 = vrot.slane %v3002, 4
    %v3007 = vunpack.c.l.s4 1935823168
    %v3008 = vunpack.c.0.s8 %v3007
    %v3009 = vperm.slane %v3001, %v3008
    %v3011 = vunpack.c.l.s4 1935823168
    %v3012 = vunpack.c.0.s8 %v3011
    %v3013 = vperm.slane %v3003, %v3012
    %v3016 = vrot.slane %v2929, 4
    %v3017 = vsel %vm664, %v2928, %v3016
    %v3018 = vsel %vm664, %v3016, %v2928
    %v3019 = vrot.slane %v3018, 4
    %v3023 = vunpack.c.l.s4 1935823168
    %v3024 = vunpack.c.0.s8 %v3023
    %v3025 = vperm.slane %v3017, %v3024
    %v3027 = vunpack.c.l.s4 1935823168
    %v3028 = vunpack.c.0.s8 %v3027
    %v3029 = vperm.slane %v3019, %v3028
    %v3032 = vrot.slane %v2931, 4
    %v3033 = vsel %vm664, %v2930, %v3032
    %v3034 = vsel %vm664, %v3032, %v2930
    %v3035 = vrot.slane %v3034, 4
    %v3039 = vunpack.c.l.s4 1935823168
    %v3040 = vunpack.c.0.s8 %v3039
    %v3041 = vperm.slane %v3033, %v3040
    %v3043 = vunpack.c.l.s4 1935823168
    %v3044 = vunpack.c.0.s8 %v3043
    %v3045 = vperm.slane %v3035, %v3044
    %v3048 = vrot.slane %v2933, 4
    %v3049 = vsel %vm664, %v2932, %v3048
    %v3050 = vsel %vm664, %v3048, %v2932
    %v3051 = vrot.slane %v3050, 4
    %v3055 = vunpack.c.l.s4 1935823168
    %v3056 = vunpack.c.0.s8 %v3055
    %v3057 = vperm.slane %v3049, %v3056
    %v3059 = vunpack.c.l.s4 1935823168
    %v3060 = vunpack.c.0.s8 %v3059
    %v3061 = vperm.slane %v3051, %v3060
    %v3064 = vperm.slane %v2945, 0
    %v3065 = vperm.slane %v2945, 1
    %v3066 = vperm.slane %v2945, 2
    %v3067 = vperm.slane %v2945, 3
    %v3068 = vperm.slane %v2945, 4
    %v3069 = vperm.slane %v2945, 5
    %v3070 = vperm.slane %v2945, 6
    %v3071 = vperm.slane %v2945, 7
    %v3072 = vperm.slane %v2949, 0
    %v3073 = vperm.slane %v2949, 1
    %v3074 = vperm.slane %v2949, 2
    %v3075 = vperm.slane %v2949, 3
    %v3076 = vperm.slane %v2949, 4
    %v3077 = vperm.slane %v2949, 5
    %v3078 = vperm.slane %v2949, 6
    %v3079 = vperm.slane %v2949, 7
    %v3098 = vperm.slane %v2961, 0
    %v3099 = vperm.slane %v2961, 1
    %v3100 = vperm.slane %v2961, 2
    %v3101 = vperm.slane %v2961, 3
    %v3102 = vperm.slane %v2961, 4
    %v3103 = vperm.slane %v2961, 5
    %v3104 = vperm.slane %v2961, 6
    %v3105 = vperm.slane %v2961, 7
    %v3106 = vperm.slane %v2965, 0
    %v3107 = vperm.slane %v2965, 1
    %v3108 = vperm.slane %v2965, 2
    %v3109 = vperm.slane %v2965, 3
    %v3110 = vperm.slane %v2965, 4
    %v3111 = vperm.slane %v2965, 5
    %v3112 = vperm.slane %v2965, 6
    %v3113 = vperm.slane %v2965, 7
    %v3132 = vperm.slane %v2977, 0
    %v3133 = vperm.slane %v2977, 1
    %v3134 = vperm.slane %v2977, 2
    %v3135 = vperm.slane %v2977, 3
    %v3136 = vperm.slane %v2977, 4
    %v3137 = vperm.slane %v2977, 5
    %v3138 = vperm.slane %v2977, 6
    %v3139 = vperm.slane %v2977, 7
    %v3140 = vperm.slane %v2981, 0
    %v3141 = vperm.slane %v2981, 1
    %v3142 = vperm.slane %v2981, 2
    %v3143 = vperm.slane %v2981, 3
    %v3144 = vperm.slane %v2981, 4
    %v3145 = vperm.slane %v2981, 5
    %v3146 = vperm.slane %v2981, 6
    %v3147 = vperm.slane %v2981, 7
    %v3166 = vperm.slane %v2993, 0
    %v3167 = vperm.slane %v2993, 1
    %v3168 = vperm.slane %v2993, 2
    %v3169 = vperm.slane %v2993, 3
    %v3170 = vperm.slane %v2993, 4
    %v3171 = vperm.slane %v2993, 5
    %v3172 = vperm.slane %v2993, 6
    %v3173 = vperm.slane %v2993, 7
    %v3174 = vperm.slane %v2997, 0
    %v3175 = vperm.slane %v2997, 1
    %v3176 = vperm.slane %v2997, 2
    %v3177 = vperm.slane %v2997, 3
    %v3178 = vperm.slane %v2997, 4
    %v3179 = vperm.slane %v2997, 5
    %v3180 = vperm.slane %v2997, 6
    %v3181 = vperm.slane %v2997, 7
    %v3200 = vperm.slane %v3009, 0
    %v3201 = vperm.slane %v3009, 1
    %v3202 = vperm.slane %v3009, 2
    %v3203 = vperm.slane %v3009, 3
    %v3204 = vperm.slane %v3009, 4
    %v3205 = vperm.slane %v3009, 5
    %v3206 = vperm.slane %v3009, 6
    %v3207 = vperm.slane %v3009, 7
    %v3208 = vperm.slane %v3013, 0
    %v3209 = vperm.slane %v3013, 1
    %v3210 = vperm.slane %v3013, 2
    %v3211 = vperm.slane %v3013, 3
    %v3212 = vperm.slane %v3013, 4
    %v3213 = vperm.slane %v3013, 5
    %v3214 = vperm.slane %v3013, 6
    %v3215 = vperm.slane %v3013, 7
    %v3234 = vperm.slane %v3025, 0
    %v3235 = vperm.slane %v3025, 1
    %v3236 = vperm.slane %v3025, 2
    %v3237 = vperm.slane %v3025, 3
    %v3238 = vperm.slane %v3025, 4
    %v3239 = vperm.slane %v3025, 5
    %v3240 = vperm.slane %v3025, 6
    %v3241 = vperm.slane %v3025, 7
    %v3242 = vperm.slane %v3029, 0
    %v3243 = vperm.slane %v3029, 1
    %v3244 = vperm.slane %v3029, 2
    %v3245 = vperm.slane %v3029, 3
    %v3246 = vperm.slane %v3029, 4
    %v3247 = vperm.slane %v3029, 5
    %v3248 = vperm.slane %v3029, 6
    %v3249 = vperm.slane %v3029, 7
    %v3268 = vperm.slane %v3041, 0
    %v3269 = vperm.slane %v3041, 1
    %v3270 = vperm.slane %v3041, 2
    %v3271 = vperm.slane %v3041, 3
    %v3272 = vperm.slane %v3041, 4
    %v3273 = vperm.slane %v3041, 5
    %v3274 = vperm.slane %v3041, 6
    %v3275 = vperm.slane %v3041, 7
    %v3276 = vperm.slane %v3045, 0
    %v3277 = vperm.slane %v3045, 1
    %v3278 = vperm.slane %v3045, 2
    %v3279 = vperm.slane %v3045, 3
    %v3280 = vperm.slane %v3045, 4
    %v3281 = vperm.slane %v3045, 5
    %v3282 = vperm.slane %v3045, 6
    %v3283 = vperm.slane %v3045, 7
    %v3302 = vperm.slane %v3057, 0
    %v3303 = vperm.slane %v3057, 1
    %v3304 = vperm.slane %v3057, 2
    %v3305 = vperm.slane %v3057, 3
    %v3306 = vperm.slane %v3057, 4
    %v3307 = vperm.slane %v3057, 5
    %v3308 = vperm.slane %v3057, 6
    %v3309 = vperm.slane %v3057, 7
    %v3310 = vperm.slane %v3061, 0
    %v3311 = vperm.slane %v3061, 1
    %v3312 = vperm.slane %v3061, 2
    %v3313 = vperm.slane %v3061, 3
    %v3314 = vperm.slane %v3061, 4
    %v3315 = vperm.slane %v3061, 5
    %v3316 = vperm.slane %v3061, 6
    %v3317 = vperm.slane %v3061, 7
    %vm3334 = vcmask 1040384
    %v3335 = vsel %vm3334, %v3064, %v3098
    %v3336 = vsel %vm3334, %v3065, %v3099
    %v3337 = vsel %vm3334, %v3066, %v3100
    %v3338 = vsel %vm3334, %v3067, %v3101
    %v3339 = vsel %vm3334, %v3068, %v3102
    %v3340 = vsel %vm3334, %v3069, %v3103
    %v3341 = vsel %vm3334, %v3070, %v3104
    %v3342 = vsel %vm3334, %v3071, %v3105
    %v3343 = vsel %vm3334, %v3072, %v3106
    %v3344 = vsel %vm3334, %v3073, %v3107
    %v3345 = vsel %vm3334, %v3074, %v3108
    %v3346 = vsel %vm3334, %v3075, %v3109
    %v3347 = vsel %vm3334, %v3076, %v3110
    %v3348 = vsel %vm3334, %v3077, %v3111
    %v3349 = vsel %vm3334, %v3078, %v3112
    %v3350 = vsel %vm3334, %v3079, %v3113
    %vm3351 = vcmask 1041408
    %v3352 = vsel %vm3351, %v3335, %v3132
    %v3353 = vsel %vm3351, %v3336, %v3133
    %v3354 = vsel %vm3351, %v3337, %v3134
    %v3355 = vsel %vm3351, %v3338, %v3135
    %v3356 = vsel %vm3351, %v3339, %v3136
    %v3357 = vsel %vm3351, %v3340, %v3137
    %v3358 = vsel %vm3351, %v3341, %v3138
    %v3359 = vsel %vm3351, %v3342, %v3139
    %v3360 = vsel %vm3351, %v3343, %v3140
    %v3361 = vsel %vm3351, %v3344, %v3141
    %v3362 = vsel %vm3351, %v3345, %v3142
    %v3363 = vsel %vm3351, %v3346, %v3143
    %v3364 = vsel %vm3351, %v3347, %v3144
    %v3365 = vsel %vm3351, %v3348, %v3145
    %v3366 = vsel %vm3351, %v3349, %v3146
    %v3367 = vsel %vm3351, %v3350, %v3147
    %vm3368 = vcmask 1042432
    %v3369 = vsel %vm3368, %v3352, %v3166
    %v3370 = vsel %vm3368, %v3353, %v3167
    %v3371 = vsel %vm3368, %v3354, %v3168
    %v3372 = vsel %vm3368, %v3355, %v3169
    %v3373 = vsel %vm3368, %v3356, %v3170
    %v3374 = vsel %vm3368, %v3357, %v3171
    %v3375 = vsel %vm3368, %v3358, %v3172
    %v3376 = vsel %vm3368, %v3359, %v3173
    %v3377 = vsel %vm3368, %v3360, %v3174
    %v3378 = vsel %vm3368, %v3361, %v3175
    %v3379 = vsel %vm3368, %v3362, %v3176
    %v3380 = vsel %vm3368, %v3363, %v3177
    %v3381 = vsel %vm3368, %v3364, %v3178
    %v3382 = vsel %vm3368, %v3365, %v3179
    %v3383 = vsel %vm3368, %v3366, %v3180
    %v3384 = vsel %vm3368, %v3367, %v3181
    %v3385 = vsel %vm664, %v3369, %v3200
    %v3386 = vsel %vm664, %v3370, %v3201
    %v3387 = vsel %vm664, %v3371, %v3202
    %v3388 = vsel %vm664, %v3372, %v3203
    %v3389 = vsel %vm664, %v3373, %v3204
    %v3390 = vsel %vm664, %v3374, %v3205
    %v3391 = vsel %vm664, %v3375, %v3206
    %v3392 = vsel %vm664, %v3376, %v3207
    %v3393 = vsel %vm664, %v3377, %v3208
    %v3394 = vsel %vm664, %v3378, %v3209
    %v3395 = vsel %vm664, %v3379, %v3210
    %v3396 = vsel %vm664, %v3380, %v3211
    %v3397 = vsel %vm664, %v3381, %v3212
    %v3398 = vsel %vm664, %v3382, %v3213
    %v3399 = vsel %vm664, %v3383, %v3214
    %v3400 = vsel %vm664, %v3384, %v3215
    %vm3401 = vcmask 1044480
    %v3402 = vsel %vm3401, %v3385, %v3234
    %v3403 = vsel %vm3401, %v3386, %v3235
    %v3404 = vsel %vm3401, %v3387, %v3236
    %v3405 = vsel %vm3401, %v3388, %v3237
    %v3406 = vsel %vm3401, %v3389, %v3238
    %v3407 = vsel %vm3401, %v3390, %v3239
    %v3408 = vsel %vm3401, %v3391, %v3240
    %v3409 = vsel %vm3401, %v3392, %v3241
    %v3410 = vsel %vm3401, %v3393, %v3242
    %v3411 = vsel %vm3401, %v3394, %v3243
    %v3412 = vsel %vm3401, %v3395, %v3244
    %v3413 = vsel %vm3401, %v3396, %v3245
    %v3414 = vsel %vm3401, %v3397, %v3246
    %v3415 = vsel %vm3401, %v3398, %v3247
    %v3416 = vsel %vm3401, %v3399, %v3248
    %v3417 = vsel %vm3401, %v3400, %v3249
    %vm3418 = vcmask 1045504
    %v3419 = vsel %vm3418, %v3402, %v3268
    %v3420 = vsel %vm3418, %v3403, %v3269
    %v3421 = vsel %vm3418, %v3404, %v3270
    %v3422 = vsel %vm3418, %v3405, %v3271
    %v3423 = vsel %vm3418, %v3406, %v3272
    %v3424 = vsel %vm3418, %v3407, %v3273
    %v3425 = vsel %vm3418, %v3408, %v3274
    %v3426 = vsel %vm3418, %v3409, %v3275
    %v3427 = vsel %vm3418, %v3410, %v3276
    %v3428 = vsel %vm3418, %v3411, %v3277
    %v3429 = vsel %vm3418, %v3412, %v3278
    %v3430 = vsel %vm3418, %v3413, %v3279
    %v3431 = vsel %vm3418, %v3414, %v3280
    %v3432 = vsel %vm3418, %v3415, %v3281
    %v3433 = vsel %vm3418, %v3416, %v3282
    %v3434 = vsel %vm3418, %v3417, %v3283
    %vm3435 = vcmask 1046528
    %v3436 = vsel %vm3435, %v3419, %v3302
    %v3437 = vsel %vm3435, %v3420, %v3303
    %v3438 = vsel %vm3435, %v3421, %v3304
    %v3439 = vsel %vm3435, %v3422, %v3305
    %v3440 = vsel %vm3435, %v3423, %v3306
    %v3441 = vsel %vm3435, %v3424, %v3307
    %v3442 = vsel %vm3435, %v3425, %v3308
    %v3443 = vsel %vm3435, %v3426, %v3309
    %v3444 = vsel %vm3435, %v3427, %v3310
    %v3445 = vsel %vm3435, %v3428, %v3311
    %v3446 = vsel %vm3435, %v3429, %v3312
    %v3447 = vsel %vm3435, %v3430, %v3313
    %v3448 = vsel %vm3435, %v3431, %v3314
    %v3449 = vsel %vm3435, %v3432, %v3315
    %v3450 = vsel %vm3435, %v3433, %v3316
    %v3451 = vsel %vm3435, %v3434, %v3317
    %v3452 = vld [vmem:[#allocation2] sm:$0xff]
    %v3453 = vld [vmem:[#allocation2 + $0x8] sm:$0xff]
    %v3454 = vld [vmem:[#allocation2 + $0x10] sm:$0xff]
    %v3455 = vld [vmem:[#allocation2 + $0x18] sm:$0xff]
    %v3456 = vld [vmem:[#allocation2 + $0x20] sm:$0xff]
    %v3457 = vld [vmem:[#allocation2 + $0x28] sm:$0xff]
    %v3458 = vld [vmem:[#allocation2 + $0x30] sm:$0xff]
    %v3459 = vld [vmem:[#allocation2 + $0x38] sm:$0xff]
    %v3460 = vld [vmem:[#allocation2 + $0x40] sm:$0xff]
    %v3461 = vld [vmem:[#allocation2 + $0x48] sm:$0xff]
    %v3462 = vld [vmem:[#allocation2 + $0x50] sm:$0xff]
    %v3463 = vld [vmem:[#allocation2 + $0x58] sm:$0xff]
    %v3464 = vld [vmem:[#allocation2 + $0x60] sm:$0xff]
    %v3465 = vld [vmem:[#allocation2 + $0x68] sm:$0xff]
    %v3466 = vld [vmem:[#allocation2 + $0x70] sm:$0xff]
    %v3467 = vld [vmem:[#allocation2 + $0x78] sm:$0xff]
    %v3468 = vld [vmem:[#allocation2 + $0x80] sm:$0xff]
    %v3469 = vld [vmem:[#allocation2 + $0x88] sm:$0xff]
    %v3470 = vld [vmem:[#allocation2 + $0x90] sm:$0xff]
    %v3471 = vld [vmem:[#allocation2 + $0x98] sm:$0xff]
    %v3472 = vld [vmem:[#allocation2 + $0xa0] sm:$0xff]
    %v3473 = vld [vmem:[#allocation2 + $0xa8] sm:$0xff]
    %v3474 = vld [vmem:[#allocation2 + $0xb0] sm:$0xff]
    %v3475 = vld [vmem:[#allocation2 + $0xb8] sm:$0xff]
    %v3476 = vld [vmem:[#allocation2 + $0xc0] sm:$0xff]
    %v3477 = vld [vmem:[#allocation2 + $0xc8] sm:$0xff]
    %v3478 = vld [vmem:[#allocation2 + $0xd0] sm:$0xff]
    %v3479 = vld [vmem:[#allocation2 + $0xd8] sm:$0xff]
    %v3480 = vld [vmem:[#allocation2 + $0xe0] sm:$0xff]
    %v3481 = vld [vmem:[#allocation2 + $0xe8] sm:$0xff]
    %v3482 = vld [vmem:[#allocation2 + $0xf0] sm:$0xff]
    %v3483 = vld [vmem:[#allocation2 + $0xf8] sm:$0xff]
    %v3484 = vld [vmem:[#allocation2 + $0x100] sm:$0xff]
    %v3485 = vld [vmem:[#allocation2 + $0x108] sm:$0xff]
    %v3486 = vld [vmem:[#allocation2 + $0x110] sm:$0xff]
    %v3487 = vld [vmem:[#allocation2 + $0x118] sm:$0xff]
    %v3488 = vld [vmem:[#allocation2 + $0x120] sm:$0xff]
    %v3489 = vld [vmem:[#allocation2 + $0x128] sm:$0xff]
    %v3490 = vld [vmem:[#allocation2 + $0x130] sm:$0xff]
    %v3491 = vld [vmem:[#allocation2 + $0x138] sm:$0xff]
    %v3492 = vld [vmem:[#allocation2 + $0x140] sm:$0xff]
    %v3493 = vld [vmem:[#allocation2 + $0x148] sm:$0xff]
    %v3494 = vld [vmem:[#allocation2 + $0x150] sm:$0xff]
    %v3495 = vld [vmem:[#allocation2 + $0x158] sm:$0xff]
    %v3496 = vld [vmem:[#allocation2 + $0x160] sm:$0xff]
    %v3497 = vld [vmem:[#allocation2 + $0x168] sm:$0xff]
    %v3498 = vld [vmem:[#allocation2 + $0x170] sm:$0xff]
    %v3499 = vld [vmem:[#allocation2 + $0x178] sm:$0xff]
    %v3500 = vld [vmem:[#allocation2 + $0x180] sm:$0xff]
    %v3501 = vld [vmem:[#allocation2 + $0x188] sm:$0xff]
    %v3502 = vld [vmem:[#allocation2 + $0x190] sm:$0xff]
    %v3503 = vld [vmem:[#allocation2 + $0x198] sm:$0xff]
    %v3504 = vld [vmem:[#allocation2 + $0x1a0] sm:$0xff]
    %v3505 = vld [vmem:[#allocation2 + $0x1a8] sm:$0xff]
    %v3506 = vld [vmem:[#allocation2 + $0x1b0] sm:$0xff]
    %v3507 = vld [vmem:[#allocation2 + $0x1b8] sm:$0xff]
    %v3508 = vld [vmem:[#allocation2 + $0x1c0] sm:$0xff]
    %v3509 = vld [vmem:[#allocation2 + $0x1c8] sm:$0xff]
    %v3510 = vld [vmem:[#allocation2 + $0x1d0] sm:$0xff]
    %v3511 = vld [vmem:[#allocation2 + $0x1d8] sm:$0xff]
    %v3512 = vld [vmem:[#allocation2 + $0x1e0] sm:$0xff]
    %v3513 = vld [vmem:[#allocation2 + $0x1e8] sm:$0xff]
    %v3514 = vld [vmem:[#allocation2 + $0x1f0] sm:$0xff]
    %v3515 = vld [vmem:[#allocation2 + $0x1f8] sm:$0xff]
    %v3516 = vld [vmem:[%s1] sm:$0xff]
    %v3517 = vld [vmem:[%s8] sm:$0xff]
    %v3518 = vld [vmem:[%s8 + $0x8] sm:$0xff]
    %v3519 = vld [vmem:[%s8 + $0x10] sm:$0xff]
    %v3520 = vld [vmem:[%s8 + $0x18] sm:$0x7]
    %vm3521 = vcmask 220160
    %v3523 = vsel %vm3521, %v3516, 0
    %v3526 = vsel %vm3368, %v3520, 0
    %3528 = vmatpush.msra.mxu0 0.0
    %3529 = vmatpush.msra.mxu0 0.0
    %3530 = vmatpush.msra.mxu0 0.0
    %3531 = vmatpush.msra.mxu0 0.0
    %3532 = vmatpush.msra.mxu0 0.0
    %3533 = vmatpush.msra.mxu0 0.0
    %3534 = vmatpush.msra.mxu0 0.0
    %3535 = vmatpush.msra.mxu0 0.0
    %3536 = vmatpush.msra.mxu0 0.0
    %3537 = vmatpush.msra.mxu0 0.0
    %3538 = vmatpush.msra.mxu0 0.0
    %3539 = vmatpush.msra.mxu0 0.0
    %3540 = vmatpush.msra.mxu0 %v3526
    %3541 = vmatpush.msra.mxu0 %v3519
    %3542 = vmatpush.msra.mxu0 %v3518
    %3543 = vmatpush.msra.mxu0 %v3517
    %3544 = vmatmul.f32.gmra.mxu0 %v3523
    %v3545 = vpop.f32.mrf.mxu0
    %v3546 = vadd.f32 0.0, %v3545
    %3547 = vdwg.mxu0
    %3548 = vmatpush.xpose.msra.mxu0 0.0
    %3549 = vmatpush.xpose.msra.mxu0 0.0
    %3550 = vmatpush.xpose.msra.mxu0 0.0
    %3551 = vmatpush.xpose.msra.mxu0 0.0
    %3552 = vmatpush.xpose.msra.mxu0 0.0
    %3553 = vmatpush.xpose.msra.mxu0 0.0
    %3554 = vmatpush.xpose.msra.mxu0 0.0
    %3555 = vmatpush.xpose.msra.mxu0 0.0
    %3556 = vmatpush.xpose.msra.mxu0 0.0
    %3557 = vmatpush.xpose.msra.mxu0 0.0
    %3558 = vmatpush.xpose.msra.mxu0 0.0
    %3559 = vmatpush.xpose.msra.mxu0 0.0
    %3560 = vmatpush.xpose.msra.mxu0 %v3500
    %3561 = vmatpush.xpose.msra.mxu0 %v3484
    %3562 = vmatpush.xpose.msra.mxu0 %v3468
    %3563 = vmatpush.xpose.msra.mxu0 %v3452
    %3564 = vmatmul.f32.gmra.mxu0 %v3436
    %v3565 = vpop.f32.mrf.mxu0
    %v3566 = vadd.f32 %v3546, %v3565
    %3567 = vdwg.mxu0
    %3568 = vmatpush.xpose.msra.mxu0 0.0
    %3569 = vmatpush.xpose.msra.mxu0 0.0
    %3570 = vmatpush.xpose.msra.mxu0 0.0
    %3571 = vmatpush.xpose.msra.mxu0 0.0
    %3572 = vmatpush.xpose.msra.mxu0 0.0
    %3573 = vmatpush.xpose.msra.mxu0 0.0
    %3574 = vmatpush.xpose.msra.mxu0 0.0
    %3575 = vmatpush.xpose.msra.mxu0 0.0
    %3576 = vmatpush.xpose.msra.mxu0 0.0
    %3577 = vmatpush.xpose.msra.mxu0 0.0
    %3578 = vmatpush.xpose.msra.mxu0 0.0
    %3579 = vmatpush.xpose.msra.mxu0 0.0
    %3580 = vmatpush.xpose.msra.mxu0 %v3501
    %3581 = vmatpush.xpose.msra.mxu0 %v3485
    %3582 = vmatpush.xpose.msra.mxu0 %v3469
    %3583 = vmatpush.xpose.msra.mxu0 %v3453
    %3584 = vmatmul.f32.gmra.mxu0 %v3437
    %v3585 = vpop.f32.mrf.mxu0
    %v3586 = vadd.f32 %v3566, %v3585
    %3587 = vdwg.mxu0
    %3588 = vmatpush.xpose.msra.mxu0 0.0
    %3589 = vmatpush.xpose.msra.mxu0 0.0
    %3590 = vmatpush.xpose.msra.mxu0 0.0
    %3591 = vmatpush.xpose.msra.mxu0 0.0
    %3592 = vmatpush.xpose.msra.mxu0 0.0
    %3593 = vmatpush.xpose.msra.mxu0 0.0
    %3594 = vmatpush.xpose.msra.mxu0 0.0
    %3595 = vmatpush.xpose.msra.mxu0 0.0
    %3596 = vmatpush.xpose.msra.mxu0 0.0
    %3597 = vmatpush.xpose.msra.mxu0 0.0
    %3598 = vmatpush.xpose.msra.mxu0 0.0
    %3599 = vmatpush.xpose.msra.mxu0 0.0
    %3600 = vmatpush.xpose.msra.mxu0 %v3502
    %3601 = vmatpush.xpose.msra.mxu0 %v3486
    %3602 = vmatpush.xpose.msra.mxu0 %v3470
    %3603 = vmatpush.xpose.msra.mxu0 %v3454
    %3604 = vmatmul.f32.gmra.mxu0 %v3438
    %v3605 = vpop.f32.mrf.mxu0
    %v3606 = vadd.f32 %v3586, %v3605
    %3607 = vdwg.mxu0
    %3608 = vmatpush.xpose.msra.mxu0 0.0
    %3609 = vmatpush.xpose.msra.mxu0 0.0
    %3610 = vmatpush.xpose.msra.mxu0 0.0
    %3611 = vmatpush.xpose.msra.mxu0 0.0
    %3612 = vmatpush.xpose.msra.mxu0 0.0
    %3613 = vmatpush.xpose.msra.mxu0 0.0
    %3614 = vmatpush.xpose.msra.mxu0 0.0
    %3615 = vmatpush.xpose.msra.mxu0 0.0
    %3616 = vmatpush.xpose.msra.mxu0 0.0
    %3617 = vmatpush.xpose.msra.mxu0 0.0
    %3618 = vmatpush.xpose.msra.mxu0 0.0
    %3619 = vmatpush.xpose.msra.mxu0 0.0
    %3620 = vmatpush.xpose.msra.mxu0 %v3503
    %3621 = vmatpush.xpose.msra.mxu0 %v3487
    %3622 = vmatpush.xpose.msra.mxu0 %v3471
    %3623 = vmatpush.xpose.msra.mxu0 %v3455
    %3624 = vmatmul.f32.gmra.mxu0 %v3439
    %v3625 = vpop.f32.mrf.mxu0
    %v3626 = vadd.f32 %v3606, %v3625
    %3627 = vdwg.mxu0
    %3628 = vmatpush.xpose.msra.mxu0 0.0
    %3629 = vmatpush.xpose.msra.mxu0 0.0
    %3630 = vmatpush.xpose.msra.mxu0 0.0
    %3631 = vmatpush.xpose.msra.mxu0 0.0
    %3632 = vmatpush.xpose.msra.mxu0 0.0
    %3633 = vmatpush.xpose.msra.mxu0 0.0
    %3634 = vmatpush.xpose.msra.mxu0 0.0
    %3635 = vmatpush.xpose.msra.mxu0 0.0
    %3636 = vmatpush.xpose.msra.mxu0 0.0
    %3637 = vmatpush.xpose.msra.mxu0 0.0
    %3638 = vmatpush.xpose.msra.mxu0 0.0
    %3639 = vmatpush.xpose.msra.mxu0 0.0
    %3640 = vmatpush.xpose.msra.mxu0 %v3504
    %3641 = vmatpush.xpose.msra.mxu0 %v3488
    %3642 = vmatpush.xpose.msra.mxu0 %v3472
    %3643 = vmatpush.xpose.msra.mxu0 %v3456
    %3644 = vmatmul.f32.gmra.mxu0 %v3440
    %v3645 = vpop.f32.mrf.mxu0
    %v3646 = vadd.f32 %v3626, %v3645
    %3647 = vdwg.mxu0
    %3648 = vmatpush.xpose.msra.mxu0 0.0
    %3649 = vmatpush.xpose.msra.mxu0 0.0
    %3650 = vmatpush.xpose.msra.mxu0 0.0
    %3651 = vmatpush.xpose.msra.mxu0 0.0
    %3652 = vmatpush.xpose.msra.mxu0 0.0
    %3653 = vmatpush.xpose.msra.mxu0 0.0
    %3654 = vmatpush.xpose.msra.mxu0 0.0
    %3655 = vmatpush.xpose.msra.mxu0 0.0
    %3656 = vmatpush.xpose.msra.mxu0 0.0
    %3657 = vmatpush.xpose.msra.mxu0 0.0
    %3658 = vmatpush.xpose.msra.mxu0 0.0
    %3659 = vmatpush.xpose.msra.mxu0 0.0
    %3660 = vmatpush.xpose.msra.mxu0 %v3505
    %3661 = vmatpush.xpose.msra.mxu0 %v3489
    %3662 = vmatpush.xpose.msra.mxu0 %v3473
    %3663 = vmatpush.xpose.msra.mxu0 %v3457
    %3664 = vmatmul.f32.gmra.mxu0 %v3441
    %v3665 = vpop.f32.mrf.mxu0
    %v3666 = vadd.f32 %v3646, %v3665
    %3667 = vdwg.mxu0
    %3668 = vmatpush.xpose.msra.mxu0 0.0
    %3669 = vmatpush.xpose.msra.mxu0 0.0
    %3670 = vmatpush.xpose.msra.mxu0 0.0
    %3671 = vmatpush.xpose.msra.mxu0 0.0
    %3672 = vmatpush.xpose.msra.mxu0 0.0
    %3673 = vmatpush.xpose.msra.mxu0 0.0
    %3674 = vmatpush.xpose.msra.mxu0 0.0
    %3675 = vmatpush.xpose.msra.mxu0 0.0
    %3676 = vmatpush.xpose.msra.mxu0 0.0
    %3677 = vmatpush.xpose.msra.mxu0 0.0
    %3678 = vmatpush.xpose.msra.mxu0 0.0
    %3679 = vmatpush.xpose.msra.mxu0 0.0
    %3680 = vmatpush.xpose.msra.mxu0 %v3506
    %3681 = vmatpush.xpose.msra.mxu0 %v3490
    %3682 = vmatpush.xpose.msra.mxu0 %v3474
    %3683 = vmatpush.xpose.msra.mxu0 %v3458
    %3684 = vmatmul.f32.gmra.mxu0 %v3442
    %v3685 = vpop.f32.mrf.mxu0
    %v3686 = vadd.f32 %v3666, %v3685
    %3687 = vdwg.mxu0
    %3688 = vmatpush.xpose.msra.mxu0 0.0
    %3689 = vmatpush.xpose.msra.mxu0 0.0
    %3690 = vmatpush.xpose.msra.mxu0 0.0
    %3691 = vmatpush.xpose.msra.mxu0 0.0
    %3692 = vmatpush.xpose.msra.mxu0 0.0
    %3693 = vmatpush.xpose.msra.mxu0 0.0
    %3694 = vmatpush.xpose.msra.mxu0 0.0
    %3695 = vmatpush.xpose.msra.mxu0 0.0
    %3696 = vmatpush.xpose.msra.mxu0 0.0
    %3697 = vmatpush.xpose.msra.mxu0 0.0
    %3698 = vmatpush.xpose.msra.mxu0 0.0
    %3699 = vmatpush.xpose.msra.mxu0 0.0
    %3700 = vmatpush.xpose.msra.mxu0 %v3507
    %3701 = vmatpush.xpose.msra.mxu0 %v3491
    %3702 = vmatpush.xpose.msra.mxu0 %v3475
    %3703 = vmatpush.xpose.msra.mxu0 %v3459
    %3704 = vmatmul.f32.gmra.mxu0 %v3443
    %v3705 = vpop.f32.mrf.mxu0
    %v3706 = vadd.f32 %v3686, %v3705
    %3707 = vdwg.mxu0
    %3708 = vmatpush.xpose.msra.mxu0 0.0
    %3709 = vmatpush.xpose.msra.mxu0 0.0
    %3710 = vmatpush.xpose.msra.mxu0 0.0
    %3711 = vmatpush.xpose.msra.mxu0 0.0
    %3712 = vmatpush.xpose.msra.mxu0 0.0
    %3713 = vmatpush.xpose.msra.mxu0 0.0
    %3714 = vmatpush.xpose.msra.mxu0 0.0
    %3715 = vmatpush.xpose.msra.mxu0 0.0
    %3716 = vmatpush.xpose.msra.mxu0 0.0
    %3717 = vmatpush.xpose.msra.mxu0 0.0
    %3718 = vmatpush.xpose.msra.mxu0 0.0
    %3719 = vmatpush.xpose.msra.mxu0 0.0
    %3720 = vmatpush.xpose.msra.mxu0 %v3508
    %3721 = vmatpush.xpose.msra.mxu0 %v3492
    %3722 = vmatpush.xpose.msra.mxu0 %v3476
    %3723 = vmatpush.xpose.msra.mxu0 %v3460
    %3724 = vmatmul.f32.gmra.mxu0 %v3444
    %v3725 = vpop.f32.mrf.mxu0
    %v3726 = vadd.f32 %v3706, %v3725
    %3727 = vdwg.mxu0
    %3728 = vmatpush.xpose.msra.mxu0 0.0
    %3729 = vmatpush.xpose.msra.mxu0 0.0
    %3730 = vmatpush.xpose.msra.mxu0 0.0
    %3731 = vmatpush.xpose.msra.mxu0 0.0
    %3732 = vmatpush.xpose.msra.mxu0 0.0
    %3733 = vmatpush.xpose.msra.mxu0 0.0
    %3734 = vmatpush.xpose.msra.mxu0 0.0
    %3735 = vmatpush.xpose.msra.mxu0 0.0
    %3736 = vmatpush.xpose.msra.mxu0 0.0
    %3737 = vmatpush.xpose.msra.mxu0 0.0
    %3738 = vmatpush.xpose.msra.mxu0 0.0
    %3739 = vmatpush.xpose.msra.mxu0 0.0
    %3740 = vmatpush.xpose.msra.mxu0 %v3509
    %3741 = vmatpush.xpose.msra.mxu0 %v3493
    %3742 = vmatpush.xpose.msra.mxu0 %v3477
    %3743 = vmatpush.xpose.msra.mxu0 %v3461
    %3744 = vmatmul.f32.gmra.mxu0 %v3445
    %v3745 = vpop.f32.mrf.mxu0
    %v3746 = vadd.f32 %v3726, %v3745
    %3747 = vdwg.mxu0
    %3748 = vmatpush.xpose.msra.mxu0 0.0
    %3749 = vmatpush.xpose.msra.mxu0 0.0
    %3750 = vmatpush.xpose.msra.mxu0 0.0
    %3751 = vmatpush.xpose.msra.mxu0 0.0
    %3752 = vmatpush.xpose.msra.mxu0 0.0
    %3753 = vmatpush.xpose.msra.mxu0 0.0
    %3754 = vmatpush.xpose.msra.mxu0 0.0
    %3755 = vmatpush.xpose.msra.mxu0 0.0
    %3756 = vmatpush.xpose.msra.mxu0 0.0
    %3757 = vmatpush.xpose.msra.mxu0 0.0
    %3758 = vmatpush.xpose.msra.mxu0 0.0
    %3759 = vmatpush.xpose.msra.mxu0 0.0
    %3760 = vmatpush.xpose.msra.mxu0 %v3510
    %3761 = vmatpush.xpose.msra.mxu0 %v3494
    %3762 = vmatpush.xpose.msra.mxu0 %v3478
    %3763 = vmatpush.xpose.msra.mxu0 %v3462
    %3764 = vmatmul.f32.gmra.mxu0 %v3446
    %v3765 = vpop.f32.mrf.mxu0
    %v3766 = vadd.f32 %v3746, %v3765
    %3767 = vdwg.mxu0
    %3768 = vmatpush.xpose.msra.mxu0 0.0
    %3769 = vmatpush.xpose.msra.mxu0 0.0
    %3770 = vmatpush.xpose.msra.mxu0 0.0
    %3771 = vmatpush.xpose.msra.mxu0 0.0
    %3772 = vmatpush.xpose.msra.mxu0 0.0
    %3773 = vmatpush.xpose.msra.mxu0 0.0
    %3774 = vmatpush.xpose.msra.mxu0 0.0
    %3775 = vmatpush.xpose.msra.mxu0 0.0
    %3776 = vmatpush.xpose.msra.mxu0 0.0
    %3777 = vmatpush.xpose.msra.mxu0 0.0
    %3778 = vmatpush.xpose.msra.mxu0 0.0
    %3779 = vmatpush.xpose.msra.mxu0 0.0
    %3780 = vmatpush.xpose.msra.mxu0 %v3511
    %3781 = vmatpush.xpose.msra.mxu0 %v3495
    %3782 = vmatpush.xpose.msra.mxu0 %v3479
    %3783 = vmatpush.xpose.msra.mxu0 %v3463
    %3784 = vmatmul.f32.gmra.mxu0 %v3447
    %v3785 = vpop.f32.mrf.mxu0
    %v3786 = vadd.f32 %v3766, %v3785
    %3787 = vdwg.mxu0
    %3788 = vmatpush.xpose.msra.mxu0 0.0
    %3789 = vmatpush.xpose.msra.mxu0 0.0
    %3790 = vmatpush.xpose.msra.mxu0 0.0
    %3791 = vmatpush.xpose.msra.mxu0 0.0
    %3792 = vmatpush.xpose.msra.mxu0 0.0
    %3793 = vmatpush.xpose.msra.mxu0 0.0
    %3794 = vmatpush.xpose.msra.mxu0 0.0
    %3795 = vmatpush.xpose.msra.mxu0 0.0
    %3796 = vmatpush.xpose.msra.mxu0 0.0
    %3797 = vmatpush.xpose.msra.mxu0 0.0
    %3798 = vmatpush.xpose.msra.mxu0 0.0
    %3799 = vmatpush.xpose.msra.mxu0 0.0
    %3800 = vmatpush.xpose.msra.mxu0 %v3512
    %3801 = vmatpush.xpose.msra.mxu0 %v3496
    %3802 = vmatpush.xpose.msra.mxu0 %v3480
    %3803 = vmatpush.xpose.msra.mxu0 %v3464
    %3804 = vmatmul.f32.gmra.mxu0 %v3448
    %v3805 = vpop.f32.mrf.mxu0
    %v3806 = vadd.f32 %v3786, %v3805
    %3807 = vdwg.mxu0
    %3808 = vmatpush.xpose.msra.mxu0 0.0
    %3809 = vmatpush.xpose.msra.mxu0 0.0
    %3810 = vmatpush.xpose.msra.mxu0 0.0
    %3811 = vmatpush.xpose.msra.mxu0 0.0
    %3812 = vmatpush.xpose.msra.mxu0 0.0
    %3813 = vmatpush.xpose.msra.mxu0 0.0
    %3814 = vmatpush.xpose.msra.mxu0 0.0
    %3815 = vmatpush.xpose.msra.mxu0 0.0
    %3816 = vmatpush.xpose.msra.mxu0 0.0
    %3817 = vmatpush.xpose.msra.mxu0 0.0
    %3818 = vmatpush.xpose.msra.mxu0 0.0
    %3819 = vmatpush.xpose.msra.mxu0 0.0
    %3820 = vmatpush.xpose.msra.mxu0 %v3513
    %3821 = vmatpush.xpose.msra.mxu0 %v3497
    %3822 = vmatpush.xpose.msra.mxu0 %v3481
    %3823 = vmatpush.xpose.msra.mxu0 %v3465
    %3824 = vmatmul.f32.gmra.mxu0 %v3449
    %v3825 = vpop.f32.mrf.mxu0
    %v3826 = vadd.f32 %v3806, %v3825
    %3827 = vdwg.mxu0
    %3828 = vmatpush.xpose.msra.mxu0 0.0
    %3829 = vmatpush.xpose.msra.mxu0 0.0
    %3830 = vmatpush.xpose.msra.mxu0 0.0
    %3831 = vmatpush.xpose.msra.mxu0 0.0
    %3832 = vmatpush.xpose.msra.mxu0 0.0
    %3833 = vmatpush.xpose.msra.mxu0 0.0
    %3834 = vmatpush.xpose.msra.mxu0 0.0
    %3835 = vmatpush.xpose.msra.mxu0 0.0
    %3836 = vmatpush.xpose.msra.mxu0 0.0
    %3837 = vmatpush.xpose.msra.mxu0 0.0
    %3838 = vmatpush.xpose.msra.mxu0 0.0
    %3839 = vmatpush.xpose.msra.mxu0 0.0
    %3840 = vmatpush.xpose.msra.mxu0 %v3514
    %3841 = vmatpush.xpose.msra.mxu0 %v3498
    %3842 = vmatpush.xpose.msra.mxu0 %v3482
    %3843 = vmatpush.xpose.msra.mxu0 %v3466
    %3844 = vmatmul.f32.gmra.mxu0 %v3450
    %v3845 = vpop.f32.mrf.mxu0
    %v3846 = vadd.f32 %v3826, %v3845
    %3847 = vdwg.mxu0
    %3848 = vmatpush.xpose.msra.mxu0 0.0
    %3849 = vmatpush.xpose.msra.mxu0 0.0
    %3850 = vmatpush.xpose.msra.mxu0 0.0
    %3851 = vmatpush.xpose.msra.mxu0 0.0
    %3852 = vmatpush.xpose.msra.mxu0 0.0
    %3853 = vmatpush.xpose.msra.mxu0 0.0
    %3854 = vmatpush.xpose.msra.mxu0 0.0
    %3855 = vmatpush.xpose.msra.mxu0 0.0
    %3856 = vmatpush.xpose.msra.mxu0 0.0
    %3857 = vmatpush.xpose.msra.mxu0 0.0
    %3858 = vmatpush.xpose.msra.mxu0 0.0
    %3859 = vmatpush.xpose.msra.mxu0 0.0
    %3860 = vmatpush.xpose.msra.mxu0 %v3515
    %3861 = vmatpush.xpose.msra.mxu0 %v3499
    %3862 = vmatpush.xpose.msra.mxu0 %v3483
    %3863 = vmatpush.xpose.msra.mxu0 %v3467
    %3864 = vmatmul.f32.gmra.mxu0 %v3451
    %v3865 = vpop.f32.mrf.mxu0
    %v3866 = vadd.f32 %v3846, %v3865
    %3867 = vdwg.mxu0
    %v3868 = vld [vmem:[%s9] sm:$0x1]
    %v3870 = vperm.slane %v3868, 0
    %v3872 = vadd.f32 %v3866, %v3870
    %v3873 = vmax.f32 %v3872, 0.0
    %v3874 = vld [vmem:[%s10] sm:$0xff]
    %v3875 = vld [vmem:[%s10 + $0x8] sm:$0xff]
    %v3876 = vld [vmem:[%s10 + $0x10] sm:$0xff]
    %v3877 = vld [vmem:[%s10 + $0x18] sm:$0xff]
    %v3878 = vld [vmem:[%s11] sm:$0x1]
    %v3880 = vperm.slane %v3878, 0
    %vm3882 = vcmask 261120
    %v3884 = vsel %vm3882, %v3873, 0
    %3886 = vmatpush.msra.mxu0 0.0
    %3887 = vmatpush.msra.mxu0 0.0
    %3888 = vmatpush.msra.mxu0 0.0
    %3889 = vmatpush.msra.mxu0 0.0
    %3890 = vmatpush.msra.mxu0 0.0
    %3891 = vmatpush.msra.mxu0 0.0
    %3892 = vmatpush.msra.mxu0 0.0
    %3893 = vmatpush.msra.mxu0 0.0
    %3894 = vmatpush.msra.mxu0 0.0
    %3895 = vmatpush.msra.mxu0 0.0
    %3896 = vmatpush.msra.mxu0 0.0
    %3897 = vmatpush.msra.mxu0 0.0
    %3898 = vmatpush.msra.mxu0 %v3877
    %3899 = vmatpush.msra.mxu0 %v3876
    %3900 = vmatpush.msra.mxu0 %v3875
    %3901 = vmatpush.msra.mxu0 %v3874
    %3902 = vmatmul.f32.gmra.mxu0 %v3884
    %v3903 = vpop.f32.mrf.mxu0
    %v3904 = vadd.f32 %v3880, %v3903
    %3905 = vdwg.mxu0
    %v3906 = vmax.f32 %v3904, 0.0
    %v3907 = vsel %vm301, %v3906, -inf
    %3908 = vmax.xlane.f32.xlu0 %v3907
    %v3909 = vpop.xlane.xlu0 %3908
    %v3910 = vsub.f32 %v3906, %v3909
    %v3911 = vmul.f32 %v3910, 1.442695
    %v3912 = vpow.pop %v3911
    %v3913 = vsel %vm301, %v3912, 0.0
    %3914 = vadd.xlane.f32.xlu0 %v3913
    %v3915 = vpop.xlane.xlu0 %3914
    %v3916 = vlog2.pop %v3915
    %v3917 = vmul.f32 %v3916, 0.6931472
    %v3918 = vadd.f32 %v3909, %v3917
    %v3919 = vsub.f32 %v3906, %v3918
    %vm3920 = vcmask 261248
    %v3921 = vsel %vm3920, %v3906, -inf
    %3922 = vmax.xlane.f32.xlu0 %v3921
    %v3923 = vpop.xlane.xlu0 %3922
    %v3924 = vsub.f32 %v3906, %v3923
    %v3925 = vmul.f32 %v3924, 1.442695
    %v3926 = vpow.pop %v3925
    %3928 = vrot.lane.b32.xlu0 %v3926, 112
    %v3929 = vpop.permute.xlu0 %3928
    %v3931 = vsel %vm301, %v3929, 0.0
    %3932 = vadd.xlane.f32.xlu0 %v3931
    %v3933 = vpop.xlane.xlu0 %3932
    %v3934 = vlog2.pop %v3933
    %v3935 = vmul.f32 %v3934, 0.6931472
    %v3936 = vadd.f32 %v3923, %v3935
    %v3937 = vsub.f32 %v3906, %v3936
    %vm3938 = vcmask 392448
    %v3939 = vsel %vm3938, %v3906, -inf
    %3940 = vmax.xlane.f32.xlu0 %v3939
    %v3941 = vpop.xlane.xlu0 %3940
    %v3942 = vsub.f32 %v3906, %v3941
    %v3943 = vmul.f32 %v3942, 1.442695
    %v3944 = vpow.pop %v3943
    %3946 = vrot.lane.b32.xlu0 %v3944, 96
    %v3947 = vpop.permute.xlu0 %3946
    %v3949 = vsel %vm301, %v3947, 0.0
    %3950 = vadd.xlane.f32.xlu0 %v3949
    %v3951 = vpop.xlane.xlu0 %3950
    %v3952 = vlog2.pop %v3951
    %v3953 = vmul.f32 %v3952, 0.6931472
    %v3954 = vadd.f32 %v3941, %v3953
    %v3955 = vsub.f32 %v3906, %v3954
    %v3956 = vsel %vm301, %v3919, %v3937
    %v3957 = vsel %vm3882, %v3956, %v3955
    %v3958 = vmul.f32 %v3957, 1.442695
    %v3959 = vpow.pop %v3958
    %v3960 = vld [vmem:[%s12] sm:$0xff]
    %v3961 = vld [vmem:[%s12 + $0x8] sm:$0xff]
    %v3962 = vld [vmem:[%s12 + $0x10] sm:$0xff]
    %v3963 = vld [vmem:[%s12 + $0x18] sm:$0xff]
    %v3964 = vld [vmem:[%s12 + $0x20] sm:$0xff]
    %v3965 = vld [vmem:[%s12 + $0x28] sm:$0xff]
    %vm3966 = vcmask 392192
    %v3968 = vsel %vm3966, %v3959, 0
    %3970 = vmatpush.msra.mxu0 0.0
    %3971 = vmatpush.msra.mxu0 0.0
    %3972 = vmatpush.msra.mxu0 0.0
    %3973 = vmatpush.msra.mxu0 0.0
    %3974 = vmatpush.msra.mxu0 0.0
    %3975 = vmatpush.msra.mxu0 0.0
    %3976 = vmatpush.msra.mxu0 0.0
    %3977 = vmatpush.msra.mxu0 0.0
    %3978 = vmatpush.msra.mxu0 0.0
    %3979 = vmatpush.msra.mxu0 0.0
    %3980 = vmatpush.msra.mxu0 %v3965
    %3981 = vmatpush.msra.mxu0 %v3964
    %3982 = vmatpush.msra.mxu0 %v3963
    %3983 = vmatpush.msra.mxu0 %v3962
    %3984 = vmatpush.msra.mxu0 %v3961
    %3985 = vmatpush.msra.mxu0 %v3960
    %3986 = vmatmul.f32.gmra.mxu0 %v3968
    %v3987 = vpop.f32.mrf.mxu0
    %v3988 = vadd.f32 0.0, %v3987
    %3989 = vdwg.mxu0
    %3991 = vrot.lane.b32.xlu0 %v3988, 48
    %v3992 = vpop.permute.xlu0 %3991
    %v3994 = vsel %vm3966, %v3957, %v3992
    %vm3995 = vcmask 441344
    %v3996 = vsel %vm3995, %v3994, 0.0
    %3997 = vst [vmem:[%s13] sm:$0xff] %v3996
    // Predicated region
    $region58: #{_forward.1} parent=1 // pred_check
      _
    $region59: #{_forward.1} parent=1 // pred_check_branch
      %3999 = sbr.rel (0) target = $region61
    $region60: #{_forward.1} parent=1 // pred_region
      _
    $region61: #{_forward.1} parent=1 // pred_fallthru
      _
    // Predicated region
    $region62: #{_forward.1} parent=1 // pred_check
      _
    $region63: #{_forward.1} parent=1 // pred_check_branch
      %4001 = sbr.rel (0) target = $region65
    $region64: #{_forward.1} parent=1 // pred_region
      _
    $region65: #{_forward.1} parent=1 // pred_fallthru
      _
    %4002 = vsyncpa [#allocation3], 1

</llo_original>
